<compile_context>
chip_gen: v6e
topology: v6e:2x2x1
jax: 0.10.0
libtpu: 0.0.40
codegen_flags: <defaults>
</compile_context>

<pallas_src>
import math
import jax
import jax.numpy as jnp
from jax.experimental import pallas as pl
from jax.experimental.pallas import tpu as pltpu


# --------------------------------------------------------------------------
# Helpers
# --------------------------------------------------------------------------

def _round_up(n, m):
    return ((n + m - 1) // m) * m


def _pick_tile(padded, preferred, granule):
    """Largest multiple of `granule` <= `preferred` that divides `padded`."""
    if padded <= preferred:
        return padded
    t = (preferred // granule) * granule
    while padded % t:
        t -= granule
    return t


def _pad2d(a, rows, cols):
    pr, pc = rows - a.shape[0], cols - a.shape[1]
    if pr == 0 and pc == 0:
        return a
    return jnp.pad(a, ((0, pr), (0, pc)))


# --------------------------------------------------------------------------
# Pallas kernels
# --------------------------------------------------------------------------

def matmul_bias(x, w, b, residual=None, activation=None,
                out_dtype=jnp.float32, tm=256, tn=256, tk=512):
    """y = x @ w + b [+ GELU] [+ residual], tiled on the MXU.

    Operands are fed to the MXU as bfloat16; accumulation, bias, GELU and the
    residual add all happen in f32 on the resident output tile.
    Tile sizes default to a v7x-safe (64 MiB VMEM) configuration.
    """
    M, K = x.shape
    K2, N = w.shape
    assert K == K2

    Kp = _round_up(K, 128)
    Np = _round_up(N, 128)
    tk = _pick_tile(Kp, tk, 128)
    tn = _pick_tile(Np, tn, 128)
    tm = min(tm, _round_up(M, 8))
    Mp = _round_up(M, tm)

    x_p = _pad2d(x, Mp, Kp).astype(jnp.bfloat16)
    w_p = _pad2d(w, Kp, Np).astype(jnp.bfloat16)
    b_p = _pad2d(b.reshape(1, N).astype(jnp.float32), 1, Np)

    has_res = residual is not None
    inputs = [x_p, w_p, b_p]
    if has_res:
        inputs.append(_pad2d(residual, Mp, Np))

    inv_sqrt2 = 0.7071067811865475

    def kernel(*refs):
        if has_res:
            x_ref, w_ref, b_ref, r_ref, o_ref, acc_ref = refs
        else:
            x_ref, w_ref, b_ref, o_ref, acc_ref = refs
            r_ref = None
        k_id = pl.program_id(2)

        @pl.when(k_id == 0)
        def _():
            acc_ref[...] = jnp.zeros_like(acc_ref)

        acc_ref[...] += jnp.dot(x_ref[...], w_ref[...],
                                preferred_element_type=jnp.float32)

        @pl.when(k_id == pl.num_programs(2) - 1)
        def _():
            y = acc_ref[...] + b_ref[...]
            if activation == "gelu":
                # exact (erf) GELU, matching torch.nn.GELU default
                y = 0.5 * y * (1.0 + jax.lax.erf(y * inv_sqrt2))
            if has_res:
                y = y + r_ref[...].astype(jnp.float32)
            o_ref[...] = y.astype(o_ref.dtype)

    in_specs = [
        pl.BlockSpec((tm, tk), lambda i, j, k: (i, k)),
        pl.BlockSpec((tk, tn), lambda i, j, k: (k, j)),
        pl.BlockSpec((1, tn), lambda i, j, k: (0, j)),
    ]
    if has_res:
        in_specs.append(pl.BlockSpec((tm, tn), lambda i, j, k: (i, j)))

    out = pl.pallas_call(
        kernel,
        out_shape=jax.ShapeDtypeStruct((Mp, Np), out_dtype),
        grid=(Mp // tm, Np // tn, Kp // tk),
        in_specs=in_specs,
        out_specs=pl.BlockSpec((tm, tn), lambda i, j, k: (i, j)),
        scratch_shapes=[pltpu.VMEM((tm, tn), jnp.float32)],
        compiler_params=pltpu.CompilerParams(
            dimension_semantics=("parallel", "parallel", "arbitrary"),
            vmem_limit_bytes=48 * 1024 * 1024),
    )(*inputs)
    return out[:M, :N]


def layernorm(x, gamma, beta, eps=1e-6, out_dtype=jnp.float32, tm=512):
    """Row-wise LayerNorm, tiled over rows so it pipelines / shards."""
    M, D = x.shape
    tm = min(tm, _round_up(M, 8))
    Mp = _round_up(M, tm)
    x_p = _pad2d(x, Mp, D)
    g2 = gamma.reshape(1, D).astype(jnp.float32)
    b2 = beta.reshape(1, D).astype(jnp.float32)

    def kernel(x_ref, g_ref, b_ref, o_ref):
        xv = x_ref[...].astype(jnp.float32)
        mean = jnp.mean(xv, axis=-1, keepdims=True)
        xc = xv - mean
        var = jnp.mean(xc * xc, axis=-1, keepdims=True)
        y = xc * jax.lax.rsqrt(var + eps)
        o_ref[...] = (y * g_ref[...] + b_ref[...]).astype(o_ref.dtype)

    out = pl.pallas_call(
        kernel,
        out_shape=jax.ShapeDtypeStruct((Mp, D), out_dtype),
        grid=(Mp // tm,),
        in_specs=[
            pl.BlockSpec((tm, D), lambda i: (i, 0)),
            pl.BlockSpec((1, D), lambda i: (0, 0)),
            pl.BlockSpec((1, D), lambda i: (0, 0)),
        ],
        out_specs=pl.BlockSpec((tm, D), lambda i: (i, 0)),
        compiler_params=pltpu.CompilerParams(
            dimension_semantics=("parallel",)),
    )(x_p, g2, b2)
    return out[:M]


def mhsa(q, k, v, scale, n_valid):
    """Softmax attention over all heads of one batch element per grid step.

    q, k, v: (B, H, N, hd).  N is padded to a multiple of 8; padded keys are
    masked out of the softmax.  No explicit transpose: dot_general contracts
    the head dims directly; the softmax divide runs on the EUP via
    pl.reciprocal(approx=True).
    """
    B, H, N, hd = q.shape
    Np = _round_up(N, 8)
    if Np != N:
        pad = ((0, 0), (0, 0), (0, Np - N), (0, 0))
        q = jnp.pad(q, pad)
        k = jnp.pad(k, pad)
        v = jnp.pad(v, pad)
    need_mask = Np != n_valid

    def kernel(q_ref, k_ref, v_ref, o_ref):
        qv = q_ref[...]                              # (H, Np, hd)
        kv = k_ref[...]
        vv = v_ref[...]
        s = jnp.einsum('hqd,hkd->hqk', qv, kv,
                       preferred_element_type=jnp.float32) * scale
        if need_mask:
            key_id = jax.lax.broadcasted_iota(jnp.int32, s.shape, 2)
            s = jnp.where(key_id < n_valid, s, -1e30)
        m = jnp.max(s, axis=-1, keepdims=True)
        p = jnp.exp(s - m)
        l = jnp.sum(p, axis=-1, keepdims=True)
        out = jnp.einsum('hqk,hkd->hqd', p.astype(vv.dtype), vv,
                         preferred_element_type=jnp.float32)
        out = out * pl.reciprocal(l, approx=True)
        o_ref[...] = out.astype(o_ref.dtype)

    spec = pl.BlockSpec((pl.Squeezed(), H, Np, hd), lambda b: (b, 0, 0, 0))
    out = pl.pallas_call(
        kernel,
        out_shape=jax.ShapeDtypeStruct((B, H, Np, hd), q.dtype),
        grid=(B,),
        in_specs=[spec, spec, spec],
        out_specs=spec,
        compiler_params=pltpu.CompilerParams(
            dimension_semantics=("parallel",)),
    )(q, k, v)
    return out[:, :, :N, :]


# --------------------------------------------------------------------------
# Model (glue in plain JAX, compute in Pallas kernels)
# --------------------------------------------------------------------------

def block_forward(x, p, num_heads):
    """Pre-norm transformer encoder block (Attention + MLP, residual adds)."""
    B, N, D = x.shape
    hd = D // num_heads
    scale = 1.0 / math.sqrt(hd)
    x2 = x.reshape(B * N, D)                                       # f32 residual stream

    # --- attention branch ---
    h = layernorm(x2, p["norm1_g"], p["norm1_b"], out_dtype=jnp.bfloat16)
    qkv = matmul_bias(h, p["qkv_w"], p["qkv_b"], out_dtype=jnp.bfloat16)   # (B*N, 3D)
    # TODO(synk): the head-split transpose could be folded into the QKV
    # matmul's out_specs / the proj matmul's in_specs to save HBM passes.
    qkv = qkv.reshape(B, N, 3, num_heads, hd).transpose(2, 0, 3, 1, 4)
    q, k, v = qkv[0], qkv[1], qkv[2]                               # (B, H, N, hd) bf16
    o = mhsa(q, k, v, scale, n_valid=N)                            # (B, H, N, hd) bf16
    o = o.transpose(0, 2, 1, 3).reshape(B * N, D)
    x2 = matmul_bias(o, p["proj_w"], p["proj_b"], residual=x2)     # fused residual add

    # --- MLP branch ---
    h = layernorm(x2, p["norm2_g"], p["norm2_b"], out_dtype=jnp.bfloat16)
    h = matmul_bias(h, p["fc1_w"], p["fc1_b"], activation="gelu",
                    out_dtype=jnp.bfloat16)
    x2 = matmul_bias(h, p["fc2_w"], p["fc2_b"], residual=x2)       # fused residual add
    return x2.reshape(B, N, D)


def vit_backbone_forward(x, params, config):
    """Equivalent of ViTBackbone.forward: returns {'logits', 'features'}."""
    B, C, H, W = x.shape
    p = config["patch_size"]
    D = config["embed_dim"]
    assert H % p == 0 and W % p == 0, "image dims must be multiples of patch_size"
    nH, nW = H // p, W // p
    num_patches = nH * nW

    # Patch embedding: conv16x16/stride16 == per-patch flatten (C, ph, pw) -> matmul.
    patches = x.reshape(B, C, nH, p, nW, p).transpose(0, 2, 4, 1, 3, 5)
    patches = patches.reshape(B * num_patches, C * p * p)
    tokens = matmul_bias(patches, params["patch_w"], params["patch_b"])
    tokens = tokens.reshape(B, num_patches, D)

    cls = jnp.broadcast_to(params["cls_token"], (B, 1, D))
    xseq = jnp.concatenate([cls, tokens], axis=1) + params["pos_embed"]

    for blk in params["blocks"]:
        xseq = block_forward(xseq, blk, config["num_heads"])

    N = num_patches + 1
    xn = layernorm(xseq.reshape(B * N, D), params["norm_g"], params["norm_b"])
    xn = xn.reshape(B, N, D)
    features = xn[:, 0]                                            # cls token, (B, D)
    logits = matmul_bias(features, params["head_w"], params["head_b"])
    return {"logits": logits, "features": features}


# --------------------------------------------------------------------------
# Deterministic synthetic parameter init (shapes from the module's __init__,
# scaled down for a small runnable example).
# --------------------------------------------------------------------------

def init_params(key, config):
    C, p, D = config["in_chans"], config["patch_size"], config["embed_dim"]
    depth = config["depth"]
    hidden = int(D * config["mlp_ratio"])
    num_patches = (config["img_size"] // p) ** 2
    nc = config["num_classes"]

    keys = iter(jax.random.split(key, 8 + depth * 6))

    def nrm(k, shape, std=0.02):
        return (std * jax.random.normal(k, shape)).astype(jnp.float32)

    params = {
        "patch_w": nrm(next(keys), (C * p * p, D)),
        "patch_b": jnp.zeros((D,), jnp.float32),
        "cls_token": nrm(next(keys), (1, 1, D)),
        "pos_embed": nrm(next(keys), (1, num_patches + 1, D)),
        "norm_g": jnp.ones((D,), jnp.float32),
        "norm_b": jnp.zeros((D,), jnp.float32),
        "head_w": nrm(next(keys), (D, nc)),
        "head_b": jnp.zeros((nc,), jnp.float32),
        "blocks": [],
    }
    for _ in range(depth):
        params["blocks"].append({
            "norm1_g": jnp.ones((D,), jnp.float32),
            "norm1_b": jnp.zeros((D,), jnp.float32),
            "qkv_w": nrm(next(keys), (D, 3 * D)),
            "qkv_b": jnp.zeros((3 * D,), jnp.float32),
            "proj_w": nrm(next(keys), (D, D)),
            "proj_b": jnp.zeros((D,), jnp.float32),
            "norm2_g": jnp.ones((D,), jnp.float32),
            "norm2_b": jnp.zeros((D,), jnp.float32),
            "fc1_w": nrm(next(keys), (D, hidden)),
            "fc1_b": jnp.zeros((hidden,), jnp.float32),
            "fc2_w": nrm(next(keys), (hidden, D)),
            "fc2_b": jnp.zeros((D,), jnp.float32),
        })
    return params


if __name__ == "__main__":
    # Small ViT consistent with the module's forward (patch=16, pre-norm blocks,
    # qkv_bias, LN eps=1e-6); dims scaled down: 768->64, depth 12->2, heads 12->4,
    # num_classes 80->8, image 224->32.
    config = dict(img_size=32, patch_size=16, in_chans=3, embed_dim=64,
                  depth=2, num_heads=4, mlp_ratio=4.0, num_classes=8)

    key = jax.random.PRNGKey(0)
    kp, kx = jax.random.split(key)
    params = init_params(kp, config)
    x = jax.random.normal(kx, (2, 3, 32, 32), dtype=jnp.float32)   # NCHW like PyTorch

    fwd = jax.jit(lambda xx, pp: vit_backbone_forward(xx, pp, config))
    out = fwd(x, params)
    jax.block_until_ready(out)

    assert out["logits"].shape == (2, config["num_classes"])
    assert out["features"].shape == (2, config["embed_dim"])
    assert jnp.all(jnp.isfinite(out["logits"])) and jnp.all(jnp.isfinite(out["features"]))
    print("KERNEL_OK")
</pallas_src>

<mosaic_0001>
module attributes {stable_mosaic.version = 11 : i64} {
  func.func @kernel(%arg0: i32, %arg1: i32, %arg2: i32, %arg3: memref<8x384xbf16, #tpu.memory_space<vmem>>, %arg4: memref<384x128xbf16, #tpu.memory_space<vmem>>, %arg5: memref<1x128xf32, #tpu.memory_space<vmem>>, %arg6: memref<8x128xf32, #tpu.memory_space<vmem>>, %arg7: memref<8x128xf32, #tpu.memory_space<vmem>>) attributes {dimension_semantics = [#tpu.dimension_semantics<parallel>, #tpu.dimension_semantics<parallel>, #tpu.dimension_semantics<arbitrary>], iteration_bounds = array<i64: 1, 1, 2>, scalar_prefetch = 0 : i64, scratch_operands = 1 : i64, tpu.core_type = #tpu.core_type<tc>, window_params = [{transform_indices = @transform_0, window_bounds = array<i64: 8, 384>}, {transform_indices = @transform_1, window_bounds = array<i64: 384, 128>}, {transform_indices = @transform_2, window_bounds = array<i64: 1, 128>}, {transform_indices = @transform_3, window_bounds = array<i64: 8, 128>}]} {
    %c0_i32 = arith.constant 0 : i32
    %0 = arith.cmpi eq, %arg2, %c0_i32 : i32
    %1 = arith.extui %0 : i1 to i32
    %c0_i32_0 = arith.constant 0 : i32
    %2 = arith.cmpi ne, %1, %c0_i32_0 : i32
    scf.if %2 {
      %cst_9 = arith.constant 0.000000e+00 : f32
      %12 = vector.broadcast %cst_9 : f32 to vector<8x128xf32>
      %c0_10 = arith.constant 0 : index
      %c0_11 = arith.constant 0 : index
      %13 = vector.load %arg7[%c0_10, %c0_11] : memref<8x128xf32, #tpu.memory_space<vmem>>, vector<8x128xf32>
      tpu.vector_store %arg7[%c0_10, %c0_11], %12 {strides = array<i32>} : memref<8x128xf32, #tpu.memory_space<vmem>>, vector<8x128xf32>,
    } else {
    }
    %c0 = arith.constant 0 : index
    %c0_1 = arith.constant 0 : index
    %3 = vector.load %arg7[%c0, %c0_1] : memref<8x128xf32, #tpu.memory_space<vmem>>, vector<8x128xf32>
    %c0_2 = arith.constant 0 : index
    %c0_3 = arith.constant 0 : index
    %4 = vector.load %arg3[%c0_2, %c0_3] : memref<8x384xbf16, #tpu.memory_space<vmem>>, vector<8x384xbf16>
    %c0_4 = arith.constant 0 : index
    %c0_5 = arith.constant 0 : index
    %5 = vector.load %arg4[%c0_4, %c0_5] : memref<384x128xbf16, #tpu.memory_space<vmem>>, vector<384x128xbf16>
    %cst = arith.constant dense<0.000000e+00> : vector<8x128xf32>
    %6 = tpu.matmul %4, %5, %cst {dimension_numbers = #tpu.dot_dimension_numbers<[1], [0], [0], [1], [0, 0, 1, 1], [], []>} : vector<8x384xbf16>, vector<384x128xbf16>, vector<8x128xf32> -> vector<8x128xf32>
    %7 = arith.addf %3, %6 : vector<8x128xf32>
    %c0_6 = arith.constant 0 : index
    %c0_7 = arith.constant 0 : index
    %8 = vector.load %arg7[%c0_6, %c0_7] : memref<8x128xf32, #tpu.memory_space<vmem>>, vector<8x128xf32>
    tpu.vector_store %arg7[%c0_6, %c0_7], %7 {strides = array<i32>} : memref<8x128xf32, #tpu.memory_space<vmem>>, vector<8x128xf32>,
    %c1_i32 = arith.constant 1 : i32
    %9 = arith.cmpi eq, %arg2, %c1_i32 : i32
    %10 = arith.extui %9 : i1 to i32
    %c0_i32_8 = arith.constant 0 : i32
    %11 = arith.cmpi ne, %10, %c0_i32_8 : i32
    scf.if %11 {
      %c0_9 = arith.constant 0 : index
      %c0_10 = arith.constant 0 : index
      %12 = vector.load %arg7[%c0_9, %c0_10] : memref<8x128xf32, #tpu.memory_space<vmem>>, vector<8x128xf32>
      %c0_11 = arith.constant 0 : index
      %c0_12 = arith.constant 0 : index
      %13 = vector.load %arg5[%c0_11, %c0_12] : memref<1x128xf32, #tpu.memory_space<vmem>>, vector<1x128xf32>
      %14 = vector.broadcast %13 : vector<1x128xf32> to vector<8x128xf32>
      %15 = arith.addf %12, %14 : vector<8x128xf32>
      %c0_13 = arith.constant 0 : index
      %c0_14 = arith.constant 0 : index
      %16 = vector.load %arg6[%c0_13, %c0_14] : memref<8x128xf32, #tpu.memory_space<vmem>>, vector<8x128xf32>
      tpu.vector_store %arg6[%c0_13, %c0_14], %15 {strides = array<i32>} : memref<8x128xf32, #tpu.memory_space<vmem>>, vector<8x128xf32>,
    } else {
    }
    return
  }
  func.func @transform_0(%arg0: i32, %arg1: i32, %arg2: i32) -> (i32, i32) {
    %c0_i32 = arith.constant 0 : i32
    return %arg0, %arg2 : i32, i32
  }
  func.func @transform_1(%arg0: i32, %arg1: i32, %arg2: i32) -> (i32, i32) {
    %c0_i32 = arith.constant 0 : i32
    return %arg2, %arg1 : i32, i32
  }
  func.func @transform_2(%arg0: i32, %arg1: i32, %arg2: i32) -> (i32, i32) {
    %c0_i32 = arith.constant 0 : i32
    %c0_i32_0 = arith.constant 0 : i32
    return %c0_i32, %arg1 : i32, i32
  }
  func.func @transform_3(%arg0: i32, %arg1: i32, %arg2: i32) -> (i32, i32) {
    %c0_i32 = arith.constant 0 : i32
    return %arg0, %arg1 : i32, i32
  }
}

module attributes {stable_mosaic.version = 11 : i64} {
  func.func @kernel(%arg0: i32, %arg1: i32, %arg2: i32, %arg3: memref<16x128xbf16, #tpu.memory_space<vmem>>, %arg4: memref<128x256xbf16, #tpu.memory_space<vmem>>, %arg5: memref<1x256xf32, #tpu.memory_space<vmem>>, %arg6: memref<16x256xbf16, #tpu.memory_space<vmem>>, %arg7: memref<16x256xf32, #tpu.memory_space<vmem>>) attributes {dimension_semantics = [#tpu.dimension_semantics<parallel>, #tpu.dimension_semantics<parallel>, #tpu.dimension_semantics<arbitrary>], iteration_bounds = array<i64: 1, 1, 1>, scalar_prefetch = 0 : i64, scratch_operands = 1 : i64, tpu.core_type = #tpu.core_type<tc>, window_params = [{transform_indices = @transform_0, window_bounds = array<i64: 16, 128>}, {transform_indices = @transform_1, window_bounds = array<i64: 128, 256>}, {transform_indices = @transform_2, window_bounds = array<i64: 1, 256>}, {transform_indices = @transform_3, window_bounds = array<i64: 16, 256>}]} {
    %c0_i32 = arith.constant 0 : i32
    %0 = arith.cmpi eq, %arg2, %c0_i32 : i32
    %1 = arith.extui %0 : i1 to i32
    %c0_i32_0 = arith.constant 0 : i32
    %2 = arith.cmpi ne, %1, %c0_i32_0 : i32
    scf.if %2 {
      %cst_10 = arith.constant 0.000000e+00 : f32
      %12 = vector.broadcast %cst_10 : f32 to vector<16x256xf32>
      %c0_11 = arith.constant 0 : index
      %c0_12 = arith.constant 0 : index
      %13 = vector.load %arg7[%c0_11, %c0_12] : memref<16x256xf32, #tpu.memory_space<vmem>>, vector<16x256xf32>
      tpu.vector_store %arg7[%c0_11, %c0_12], %12 {strides = array<i32>} : memref<16x256xf32, #tpu.memory_space<vmem>>, vector<16x256xf32>,
    } else {
    }
    %c0 = arith.constant 0 : index
    %c0_1 = arith.constant 0 : index
    %3 = vector.load %arg7[%c0, %c0_1] : memref<16x256xf32, #tpu.memory_space<vmem>>, vector<16x256xf32>
    %c0_2 = arith.constant 0 : index
    %c0_3 = arith.constant 0 : index
    %4 = vector.load %arg3[%c0_2, %c0_3] : memref<16x128xbf16, #tpu.memory_space<vmem>>, vector<16x128xbf16>
    %c0_4 = arith.constant 0 : index
    %c0_5 = arith.constant 0 : index
    %5 = vector.load %arg4[%c0_4, %c0_5] : memref<128x256xbf16, #tpu.memory_space<vmem>>, vector<128x256xbf16>
    %cst = arith.constant dense<0.000000e+00> : vector<16x256xf32>
    %6 = tpu.matmul %4, %5, %cst {dimension_numbers = #tpu.dot_dimension_numbers<[1], [0], [0], [1], [0, 0, 1, 1], [], []>} : vector<16x128xbf16>, vector<128x256xbf16>, vector<16x256xf32> -> vector<16x256xf32>
    %7 = arith.addf %3, %6 : vector<16x256xf32>
    %c0_6 = arith.constant 0 : index
    %c0_7 = arith.constant 0 : index
    %8 = vector.load %arg7[%c0_6, %c0_7] : memref<16x256xf32, #tpu.memory_space<vmem>>, vector<16x256xf32>
    tpu.vector_store %arg7[%c0_6, %c0_7], %7 {strides = array<i32>} : memref<16x256xf32, #tpu.memory_space<vmem>>, vector<16x256xf32>,
    %c0_i32_8 = arith.constant 0 : i32
    %9 = arith.cmpi eq, %arg2, %c0_i32_8 : i32
    %10 = arith.extui %9 : i1 to i32
    %c0_i32_9 = arith.constant 0 : i32
    %11 = arith.cmpi ne, %10, %c0_i32_9 : i32
    scf.if %11 {
      %c0_10 = arith.constant 0 : index
      %c0_11 = arith.constant 0 : index
      %12 = vector.load %arg7[%c0_10, %c0_11] : memref<16x256xf32, #tpu.memory_space<vmem>>, vector<16x256xf32>
      %c0_12 = arith.constant 0 : index
      %c0_13 = arith.constant 0 : index
      %13 = vector.load %arg5[%c0_12, %c0_13] : memref<1x256xf32, #tpu.memory_space<vmem>>, vector<1x256xf32>
      %14 = vector.broadcast %13 : vector<1x256xf32> to vector<16x256xf32>
      %15 = arith.addf %12, %14 : vector<16x256xf32>
      %16 = arith.truncf %15 : vector<16x256xf32> to vector<16x256xbf16>
      %c0_14 = arith.constant 0 : index
      %c0_15 = arith.constant 0 : index
      %17 = vector.load %arg6[%c0_14, %c0_15] : memref<16x256xbf16, #tpu.memory_space<vmem>>, vector<16x256xbf16>
      tpu.vector_store %arg6[%c0_14, %c0_15], %16 {strides = array<i32>} : memref<16x256xbf16, #tpu.memory_space<vmem>>, vector<16x256xbf16>,
    } else {
    }
    return
  }
  func.func @transform_0(%arg0: i32, %arg1: i32, %arg2: i32) -> (i32, i32) {
    %c0_i32 = arith.constant 0 : i32
    return %arg0, %arg2 : i32, i32
  }
  func.func @transform_1(%arg0: i32, %arg1: i32, %arg2: i32) -> (i32, i32) {
    %c0_i32 = arith.constant 0 : i32
    return %arg2, %arg1 : i32, i32
  }
  func.func @transform_2(%arg0: i32, %arg1: i32, %arg2: i32) -> (i32, i32) {
    %c0_i32 = arith.constant 0 : i32
    %c0_i32_0 = arith.constant 0 : i32
    return %c0_i32, %arg1 : i32, i32
  }
  func.func @transform_3(%arg0: i32, %arg1: i32, %arg2: i32) -> (i32, i32) {
    %c0_i32 = arith.constant 0 : i32
    return %arg0, %arg1 : i32, i32
  }
}

module attributes {stable_mosaic.version = 11 : i64} {
  func.func @kernel(%arg0: i32, %arg1: memref<16x64xf32, #tpu.memory_space<vmem>>, %arg2: memref<1x64xf32, #tpu.memory_space<vmem>>, %arg3: memref<1x64xf32, #tpu.memory_space<vmem>>, %arg4: memref<16x64xbf16, #tpu.memory_space<vmem>>) attributes {dimension_semantics = [#tpu.dimension_semantics<parallel>], iteration_bounds = array<i64: 1>, scalar_prefetch = 0 : i64, scratch_operands = 0 : i64, tpu.core_type = #tpu.core_type<tc>, window_params = [{transform_indices = @transform_0, window_bounds = array<i64: 16, 64>}, {pipeline_mode = #tpu.pipeline_mode<synchronous>, transform_indices = @transform_1, window_bounds = array<i64: 1, 64>}, {pipeline_mode = #tpu.pipeline_mode<synchronous>, transform_indices = @transform_2, window_bounds = array<i64: 1, 64>}, {transform_indices = @transform_3, window_bounds = array<i64: 16, 64>}]} {
    %c0 = arith.constant 0 : index
    %c0_0 = arith.constant 0 : index
    %0 = vector.load %arg1[%c0, %c0_0] : memref<16x64xf32, #tpu.memory_space<vmem>>, vector<16x64xf32>
    %cst = arith.constant dense<0.000000e+00> : vector<16xf32>
    %1 = vector.multi_reduction <add>, %0, %cst [1] : vector<16x64xf32> to vector<16xf32>
    %2 = vector.shape_cast %1 : vector<16xf32> to vector<16x1xf32>
    %cst_1 = arith.constant 6.400000e+01 : f32
    %3 = vector.broadcast %cst_1 : f32 to vector<16x1xf32>
    %4 = arith.divf %2, %3 : vector<16x1xf32>
    %5 = vector.broadcast %4 : vector<16x1xf32> to vector<16x64xf32>
    %6 = arith.subf %0, %5 : vector<16x64xf32>
    %7 = arith.mulf %6, %6 : vector<16x64xf32>
    %cst_2 = arith.constant dense<0.000000e+00> : vector<16xf32>
    %8 = vector.multi_reduction <add>, %7, %cst_2 [1] : vector<16x64xf32> to vector<16xf32>
    %9 = vector.shape_cast %8 : vector<16xf32> to vector<16x1xf32>
    %cst_3 = arith.constant 6.400000e+01 : f32
    %10 = vector.broadcast %cst_3 : f32 to vector<16x1xf32>
    %11 = arith.divf %9, %10 : vector<16x1xf32>
    %cst_4 = arith.constant 9.99999997E-7 : f32
    %12 = vector.broadcast %cst_4 : f32 to vector<16x1xf32>
    %13 = arith.addf %11, %12 : vector<16x1xf32>
    %14 = math.rsqrt %13 : vector<16x1xf32>
    %15 = vector.broadcast %14 : vector<16x1xf32> to vector<16x64xf32>
    %16 = arith.mulf %6, %15 : vector<16x64xf32>
    %c0_5 = arith.constant 0 : index
    %c0_6 = arith.constant 0 : index
    %17 = vector.load %arg2[%c0_5, %c0_6] : memref<1x64xf32, #tpu.memory_space<vmem>>, vector<1x64xf32>
    %18 = vector.broadcast %17 : vector<1x64xf32> to vector<16x64xf32>
    %19 = arith.mulf %16, %18 : vector<16x64xf32>
    %c0_7 = arith.constant 0 : index
    %c0_8 = arith.constant 0 : index
    %20 = vector.load %arg3[%c0_7, %c0_8] : memref<1x64xf32, #tpu.memory_space<vmem>>, vector<1x64xf32>
    %21 = vector.broadcast %20 : vector<1x64xf32> to vector<16x64xf32>
    %22 = arith.addf %19, %21 : vector<16x64xf32>
    %23 = arith.truncf %22 : vector<16x64xf32> to vector<16x64xbf16>
    %c0_9 = arith.constant 0 : index
    %c0_10 = arith.constant 0 : index
    %24 = vector.load %arg4[%c0_9, %c0_10] : memref<16x64xbf16, #tpu.memory_space<vmem>>, vector<16x64xbf16>
    tpu.vector_store %arg4[%c0_9, %c0_10], %23 {strides = array<i32>} : memref<16x64xbf16, #tpu.memory_space<vmem>>, vector<16x64xbf16>,
    return
  }
  func.func @transform_0(%arg0: i32) -> (i32, i32) {
    %c0_i32 = arith.constant 0 : i32
    %c0_i32_0 = arith.constant 0 : i32
    return %arg0, %c0_i32 : i32, i32
  }
  func.func @transform_1(%arg0: i32) -> (i32, i32) {
    %c0_i32 = arith.constant 0 : i32
    %c0_i32_0 = arith.constant 0 : i32
    %c0_i32_1 = arith.constant 0 : i32
    return %c0_i32, %c0_i32_0 : i32, i32
  }
  func.func @transform_2(%arg0: i32) -> (i32, i32) {
    %c0_i32 = arith.constant 0 : i32
    %c0_i32_0 = arith.constant 0 : i32
    %c0_i32_1 = arith.constant 0 : i32
    return %c0_i32, %c0_i32_0 : i32, i32
  }
  func.func @transform_3(%arg0: i32) -> (i32, i32) {
    %c0_i32 = arith.constant 0 : i32
    %c0_i32_0 = arith.constant 0 : i32
    return %arg0, %c0_i32 : i32, i32
  }
}

module attributes {stable_mosaic.version = 11 : i64} {
  func.func @kernel(%arg0: i32, %arg1: memref<1x4x8x16xbf16, #tpu.memory_space<vmem>>, %arg2: memref<1x4x8x16xbf16, #tpu.memory_space<vmem>>, %arg3: memref<1x4x8x16xbf16, #tpu.memory_space<vmem>>, %arg4: memref<1x4x8x16xbf16, #tpu.memory_space<vmem>>) attributes {dimension_semantics = [#tpu.dimension_semantics<parallel>], iteration_bounds = array<i64: 2>, scalar_prefetch = 0 : i64, scratch_operands = 0 : i64, tpu.core_type = #tpu.core_type<tc>, window_params = [{transform_indices = @transform_0, window_bounds = array<i64: 1, 4, 8, 16>}, {transform_indices = @transform_1, window_bounds = array<i64: 1, 4, 8, 16>}, {transform_indices = @transform_2, window_bounds = array<i64: 1, 4, 8, 16>}, {transform_indices = @transform_3, window_bounds = array<i64: 1, 4, 8, 16>}]} {
    %c0 = arith.constant 0 : index
    %c0_0 = arith.constant 0 : index
    %c0_1 = arith.constant 0 : index
    %c0_2 = arith.constant 0 : index
    %0 = vector.load %arg1[%c0, %c0_0, %c0_1, %c0_2] : memref<1x4x8x16xbf16, #tpu.memory_space<vmem>>, vector<1x4x8x16xbf16>
    %1 = vector.shape_cast %0 : vector<1x4x8x16xbf16> to vector<4x8x16xbf16>
    %c0_3 = arith.constant 0 : index
    %c0_4 = arith.constant 0 : index
    %c0_5 = arith.constant 0 : index
    %c0_6 = arith.constant 0 : index
    %2 = vector.load %arg2[%c0_3, %c0_4, %c0_5, %c0_6] : memref<1x4x8x16xbf16, #tpu.memory_space<vmem>>, vector<1x4x8x16xbf16>
    %3 = vector.shape_cast %2 : vector<1x4x8x16xbf16> to vector<4x8x16xbf16>
    %c0_7 = arith.constant 0 : index
    %c0_8 = arith.constant 0 : index
    %c0_9 = arith.constant 0 : index
    %c0_10 = arith.constant 0 : index
    %4 = vector.load %arg3[%c0_7, %c0_8, %c0_9, %c0_10] : memref<1x4x8x16xbf16, #tpu.memory_space<vmem>>, vector<1x4x8x16xbf16>
    %5 = vector.shape_cast %4 : vector<1x4x8x16xbf16> to vector<4x8x16xbf16>
    "tpu.trace_start"() <{level = 10 : i32, message = "hqd,hkd->hqk"}> : () -> ()
    %cst = arith.constant dense<0.000000e+00> : vector<4x8x8xf32>
    %6 = tpu.matmul %1, %3, %cst {dimension_numbers = #tpu.dot_dimension_numbers<[2], [2], [1], [1], [0, 0, 0, 1, 1, 1], [0], [0]>} : vector<4x8x16xbf16>, vector<4x8x16xbf16>, vector<4x8x8xf32> -> vector<4x8x8xf32>
    "tpu.trace_stop"() : () -> ()
    %cst_11 = arith.constant 2.500000e-01 : f32
    %7 = vector.broadcast %cst_11 : f32 to vector<4x8x8xf32>
    %8 = arith.mulf %6, %7 : vector<4x8x8xf32>
    %9 = tpu.iota {dimensions = array<i32: 2>} : vector<4x8x8xi32>
    %c5_i32 = arith.constant 5 : i32
    %10 = vector.broadcast %c5_i32 : i32 to vector<4x8x8xi32>
    %11 = arith.cmpi slt, %9, %10 : vector<4x8x8xi32>
    %cst_12 = arith.constant -1.000000e+30 : f32
    %12 = vector.broadcast %cst_12 : f32 to vector<4x8x8xf32>
    %13 = arith.select %11, %8, %12 : vector<4x8x8xi1>, vector<4x8x8xf32>
    %cst_13 = arith.constant dense<0xFF800000> : vector<4x8xf32>
    %14 = vector.multi_reduction <maximumf>, %13, %cst_13 [2] : vector<4x8x8xf32> to vector<4x8xf32>
    %15 = vector.shape_cast %14 : vector<4x8xf32> to vector<4x8x1xf32>
    %16 = vector.broadcast %15 : vector<4x8x1xf32> to vector<4x8x8xf32>
    %17 = arith.subf %13, %16 : vector<4x8x8xf32>
    %18 = math.exp %17 : vector<4x8x8xf32>
    %cst_14 = arith.constant dense<0.000000e+00> : vector<4x8xf32>
    %19 = vector.multi_reduction <add>, %18, %cst_14 [2] : vector<4x8x8xf32> to vector<4x8xf32>
    %20 = vector.shape_cast %19 : vector<4x8xf32> to vector<4x8x1xf32>
    %21 = arith.truncf %18 : vector<4x8x8xf32> to vector<4x8x8xbf16>
    "tpu.trace_start"() <{level = 10 : i32, message = "hqk,hkd->hqd"}> : () -> ()
    %cst_15 = arith.constant dense<0.000000e+00> : vector<4x8x16xf32>
    %22 = tpu.matmul %21, %5, %cst_15 {dimension_numbers = #tpu.dot_dimension_numbers<[2], [1], [1], [2], [0, 0, 0, 1, 1, 2], [0], [0]>} : vector<4x8x8xbf16>, vector<4x8x16xbf16>, vector<4x8x16xf32> -> vector<4x8x16xf32>
    "tpu.trace_stop"() : () -> ()
    %23 = tpu.reciprocal %20 {approx = true} : vector<4x8x1xf32> -> vector<4x8x1xf32>
    %24 = vector.broadcast %23 : vector<4x8x1xf32> to vector<4x8x16xf32>
    %25 = arith.mulf %22, %24 : vector<4x8x16xf32>
    %26 = arith.truncf %25 : vector<4x8x16xf32> to vector<4x8x16xbf16>
    %c0_16 = arith.constant 0 : index
    %c0_17 = arith.constant 0 : index
    %c0_18 = arith.constant 0 : index
    %c0_19 = arith.constant 0 : index
    %27 = vector.load %arg4[%c0_16, %c0_17, %c0_18, %c0_19] : memref<1x4x8x16xbf16, #tpu.memory_space<vmem>>, vector<1x4x8x16xbf16>
    %28 = vector.shape_cast %27 : vector<1x4x8x16xbf16> to vector<4x8x16xbf16>
    %29 = vector.shape_cast %26 : vector<4x8x16xbf16> to vector<1x4x8x16xbf16>
    tpu.vector_store %arg4[%c0_16, %c0_17, %c0_18, %c0_19], %29 {strides = array<i32>} : memref<1x4x8x16xbf16, #tpu.memory_space<vmem>>, vector<1x4x8x16xbf16>,
    return
  }
  func.func @transform_0(%arg0: i32) -> (i32, i32, i32, i32) {
    %c0_i32 = arith.constant 0 : i32
    %c0_i32_0 = arith.constant 0 : i32
    %c0_i32_1 = arith.constant 0 : i32
    %c0_i32_2 = arith.constant 0 : i32
    return %arg0, %c0_i32, %c0_i32_0, %c0_i32_1 : i32, i32, i32, i32
  }
  func.func @transform_1(%arg0: i32) -> (i32, i32, i32, i32) {
    %c0_i32 = arith.constant 0 : i32
    %c0_i32_0 = arith.constant 0 : i32
    %c0_i32_1 = arith.constant 0 : i32
    %c0_i32_2 = arith.constant 0 : i32
    return %arg0, %c0_i32, %c0_i32_0, %c0_i32_1 : i32, i32, i32, i32
  }
  func.func @transform_2(%arg0: i32) -> (i32, i32, i32, i32) {
    %c0_i32 = arith.constant 0 : i32
    %c0_i32_0 = arith.constant 0 : i32
    %c0_i32_1 = arith.constant 0 : i32
    %c0_i32_2 = arith.constant 0 : i32
    return %arg0, %c0_i32, %c0_i32_0, %c0_i32_1 : i32, i32, i32, i32
  }
  func.func @transform_3(%arg0: i32) -> (i32, i32, i32, i32) {
    %c0_i32 = arith.constant 0 : i32
    %c0_i32_0 = arith.constant 0 : i32
    %c0_i32_1 = arith.constant 0 : i32
    %c0_i32_2 = arith.constant 0 : i32
    return %arg0, %c0_i32, %c0_i32_0, %c0_i32_1 : i32, i32, i32, i32
  }
}

module attributes {stable_mosaic.version = 11 : i64} {
  func.func @kernel(%arg0: i32, %arg1: i32, %arg2: i32, %arg3: memref<16x128xbf16, #tpu.memory_space<vmem>>, %arg4: memref<128x128xbf16, #tpu.memory_space<vmem>>, %arg5: memref<1x128xf32, #tpu.memory_space<vmem>>, %arg6: memref<16x128xf32, #tpu.memory_space<vmem>>, %arg7: memref<16x128xf32, #tpu.memory_space<vmem>>, %arg8: memref<16x128xf32, #tpu.memory_space<vmem>>) attributes {dimension_semantics = [#tpu.dimension_semantics<parallel>, #tpu.dimension_semantics<parallel>, #tpu.dimension_semantics<arbitrary>], iteration_bounds = array<i64: 1, 1, 1>, scalar_prefetch = 0 : i64, scratch_operands = 1 : i64, tpu.core_type = #tpu.core_type<tc>, window_params = [{transform_indices = @transform_0, window_bounds = array<i64: 16, 128>}, {transform_indices = @transform_1, window_bounds = array<i64: 128, 128>}, {transform_indices = @transform_2, window_bounds = array<i64: 1, 128>}, {transform_indices = @transform_3, window_bounds = array<i64: 16, 128>}, {transform_indices = @transform_4, window_bounds = array<i64: 16, 128>}]} {
    %c0_i32 = arith.constant 0 : i32
    %0 = arith.cmpi eq, %arg2, %c0_i32 : i32
    %1 = arith.extui %0 : i1 to i32
    %c0_i32_0 = arith.constant 0 : i32
    %2 = arith.cmpi ne, %1, %c0_i32_0 : i32
    scf.if %2 {
      %cst_10 = arith.constant 0.000000e+00 : f32
      %12 = vector.broadcast %cst_10 : f32 to vector<16x128xf32>
      %c0_11 = arith.constant 0 : index
      %c0_12 = arith.constant 0 : index
      %13 = vector.load %arg8[%c0_11, %c0_12] : memref<16x128xf32, #tpu.memory_space<vmem>>, vector<16x128xf32>
      tpu.vector_store %arg8[%c0_11, %c0_12], %12 {strides = array<i32>} : memref<16x128xf32, #tpu.memory_space<vmem>>, vector<16x128xf32>,
    } else {
    }
    %c0 = arith.constant 0 : index
    %c0_1 = arith.constant 0 : index
    %3 = vector.load %arg8[%c0, %c0_1] : memref<16x128xf32, #tpu.memory_space<vmem>>, vector<16x128xf32>
    %c0_2 = arith.constant 0 : index
    %c0_3 = arith.constant 0 : index
    %4 = vector.load %arg3[%c0_2, %c0_3] : memref<16x128xbf16, #tpu.memory_space<vmem>>, vector<16x128xbf16>
    %c0_4 = arith.constant 0 : index
    %c0_5 = arith.constant 0 : index
    %5 = vector.load %arg4[%c0_4, %c0_5] : memref<128x128xbf16, #tpu.memory_space<vmem>>, vector<128x128xbf16>
    %cst = arith.constant dense<0.000000e+00> : vector<16x128xf32>
    %6 = tpu.matmul %4, %5, %cst {dimension_numbers = #tpu.dot_dimension_numbers<[1], [0], [0], [1], [0, 0, 1, 1], [], []>} : vector<16x128xbf16>, vector<128x128xbf16>, vector<16x128xf32> -> vector<16x128xf32>
    %7 = arith.addf %3, %6 : vector<16x128xf32>
    %c0_6 = arith.constant 0 : index
    %c0_7 = arith.constant 0 : index
    %8 = vector.load %arg8[%c0_6, %c0_7] : memref<16x128xf32, #tpu.memory_space<vmem>>, vector<16x128xf32>
    tpu.vector_store %arg8[%c0_6, %c0_7], %7 {strides = array<i32>} : memref<16x128xf32, #tpu.memory_space<vmem>>, vector<16x128xf32>,
    %c0_i32_8 = arith.constant 0 : i32
    %9 = arith.cmpi eq, %arg2, %c0_i32_8 : i32
    %10 = arith.extui %9 : i1 to i32
    %c0_i32_9 = arith.constant 0 : i32
    %11 = arith.cmpi ne, %10, %c0_i32_9 : i32
    scf.if %11 {
      %c0_10 = arith.constant 0 : index
      %c0_11 = arith.constant 0 : index
      %12 = vector.load %arg8[%c0_10, %c0_11] : memref<16x128xf32, #tpu.memory_space<vmem>>, vector<16x128xf32>
      %c0_12 = arith.constant 0 : index
      %c0_13 = arith.constant 0 : index
      %13 = vector.load %arg5[%c0_12, %c0_13] : memref<1x128xf32, #tpu.memory_space<vmem>>, vector<1x128xf32>
      %14 = vector.broadcast %13 : vector<1x128xf32> to vector<16x128xf32>
      %15 = arith.addf %12, %14 : vector<16x128xf32>
      %c0_14 = arith.constant 0 : index
      %c0_15 = arith.constant 0 : index
      %16 = vector.load %arg6[%c0_14, %c0_15] : memref<16x128xf32, #tpu.memory_space<vmem>>, vector<16x128xf32>
      %17 = arith.addf %15, %16 : vector<16x128xf32>
      %c0_16 = arith.constant 0 : index
      %c0_17 = arith.constant 0 : index
      %18 = vector.load %arg7[%c0_16, %c0_17] : memref<16x128xf32, #tpu.memory_space<vmem>>, vector<16x128xf32>
      tpu.vector_store %arg7[%c0_16, %c0_17], %17 {strides = array<i32>} : memref<16x128xf32, #tpu.memory_space<vmem>>, vector<16x128xf32>,
    } else {
    }
    return
  }
  func.func @transform_0(%arg0: i32, %arg1: i32, %arg2: i32) -> (i32, i32) {
    %c0_i32 = arith.constant 0 : i32
    return %arg0, %arg2 : i32, i32
  }
  func.func @transform_1(%arg0: i32, %arg1: i32, %arg2: i32) -> (i32, i32) {
    %c0_i32 = arith.constant 0 : i32
    return %arg2, %arg1 : i32, i32
  }
  func.func @transform_2(%arg0: i32, %arg1: i32, %arg2: i32) -> (i32, i32) {
    %c0_i32 = arith.constant 0 : i32
    %c0_i32_0 = arith.constant 0 : i32
    return %c0_i32, %arg1 : i32, i32
  }
  func.func @transform_3(%arg0: i32, %arg1: i32, %arg2: i32) -> (i32, i32) {
    %c0_i32 = arith.constant 0 : i32
    return %arg0, %arg1 : i32, i32
  }
  func.func @transform_4(%arg0: i32, %arg1: i32, %arg2: i32) -> (i32, i32) {
    %c0_i32 = arith.constant 0 : i32
    return %arg0, %arg1 : i32, i32
  }
}

module attributes {stable_mosaic.version = 11 : i64} {
  func.func @kernel(%arg0: i32, %arg1: i32, %arg2: i32, %arg3: memref<16x128xbf16, #tpu.memory_space<vmem>>, %arg4: memref<128x256xbf16, #tpu.memory_space<vmem>>, %arg5: memref<1x256xf32, #tpu.memory_space<vmem>>, %arg6: memref<16x256xbf16, #tpu.memory_space<vmem>>, %arg7: memref<16x256xf32, #tpu.memory_space<vmem>>) attributes {dimension_semantics = [#tpu.dimension_semantics<parallel>, #tpu.dimension_semantics<parallel>, #tpu.dimension_semantics<arbitrary>], iteration_bounds = array<i64: 1, 1, 1>, scalar_prefetch = 0 : i64, scratch_operands = 1 : i64, tpu.core_type = #tpu.core_type<tc>, window_params = [{transform_indices = @transform_0, window_bounds = array<i64: 16, 128>}, {transform_indices = @transform_1, window_bounds = array<i64: 128, 256>}, {transform_indices = @transform_2, window_bounds = array<i64: 1, 256>}, {transform_indices = @transform_3, window_bounds = array<i64: 16, 256>}]} {
    %c0_i32 = arith.constant 0 : i32
    %0 = arith.cmpi eq, %arg2, %c0_i32 : i32
    %1 = arith.extui %0 : i1 to i32
    %c0_i32_0 = arith.constant 0 : i32
    %2 = arith.cmpi ne, %1, %c0_i32_0 : i32
    scf.if %2 {
      %cst_10 = arith.constant 0.000000e+00 : f32
      %12 = vector.broadcast %cst_10 : f32 to vector<16x256xf32>
      %c0_11 = arith.constant 0 : index
      %c0_12 = arith.constant 0 : index
      %13 = vector.load %arg7[%c0_11, %c0_12] : memref<16x256xf32, #tpu.memory_space<vmem>>, vector<16x256xf32>
      tpu.vector_store %arg7[%c0_11, %c0_12], %12 {strides = array<i32>} : memref<16x256xf32, #tpu.memory_space<vmem>>, vector<16x256xf32>,
    } else {
    }
    %c0 = arith.constant 0 : index
    %c0_1 = arith.constant 0 : index
    %3 = vector.load %arg7[%c0, %c0_1] : memref<16x256xf32, #tpu.memory_space<vmem>>, vector<16x256xf32>
    %c0_2 = arith.constant 0 : index
    %c0_3 = arith.constant 0 : index
    %4 = vector.load %arg3[%c0_2, %c0_3] : memref<16x128xbf16, #tpu.memory_space<vmem>>, vector<16x128xbf16>
    %c0_4 = arith.constant 0 : index
    %c0_5 = arith.constant 0 : index
    %5 = vector.load %arg4[%c0_4, %c0_5] : memref<128x256xbf16, #tpu.memory_space<vmem>>, vector<128x256xbf16>
    %cst = arith.constant dense<0.000000e+00> : vector<16x256xf32>
    %6 = tpu.matmul %4, %5, %cst {dimension_numbers = #tpu.dot_dimension_numbers<[1], [0], [0], [1], [0, 0, 1, 1], [], []>} : vector<16x128xbf16>, vector<128x256xbf16>, vector<16x256xf32> -> vector<16x256xf32>
    %7 = arith.addf %3, %6 : vector<16x256xf32>
    %c0_6 = arith.constant 0 : index
    %c0_7 = arith.constant 0 : index
    %8 = vector.load %arg7[%c0_6, %c0_7] : memref<16x256xf32, #tpu.memory_space<vmem>>, vector<16x256xf32>
    tpu.vector_store %arg7[%c0_6, %c0_7], %7 {strides = array<i32>} : memref<16x256xf32, #tpu.memory_space<vmem>>, vector<16x256xf32>,
    %c0_i32_8 = arith.constant 0 : i32
    %9 = arith.cmpi eq, %arg2, %c0_i32_8 : i32
    %10 = arith.extui %9 : i1 to i32
    %c0_i32_9 = arith.constant 0 : i32
    %11 = arith.cmpi ne, %10, %c0_i32_9 : i32
    scf.if %11 {
      %c0_10 = arith.constant 0 : index
      %c0_11 = arith.constant 0 : index
      %12 = vector.load %arg7[%c0_10, %c0_11] : memref<16x256xf32, #tpu.memory_space<vmem>>, vector<16x256xf32>
      %c0_12 = arith.constant 0 : index
      %c0_13 = arith.constant 0 : index
      %13 = vector.load %arg5[%c0_12, %c0_13] : memref<1x256xf32, #tpu.memory_space<vmem>>, vector<1x256xf32>
      %14 = vector.broadcast %13 : vector<1x256xf32> to vector<16x256xf32>
      %15 = arith.addf %12, %14 : vector<16x256xf32>
      %cst_14 = arith.constant 5.000000e-01 : f32
      %16 = vector.broadcast %cst_14 : f32 to vector<16x256xf32>
      %17 = arith.mulf %16, %15 : vector<16x256xf32>
      %cst_15 = arith.constant 0.707106769 : f32
      %18 = vector.broadcast %cst_15 : f32 to vector<16x256xf32>
      %19 = arith.mulf %15, %18 : vector<16x256xf32>
      %20 = math.erf %19 : vector<16x256xf32>
      %cst_16 = arith.constant 1.000000e+00 : f32
      %21 = vector.broadcast %cst_16 : f32 to vector<16x256xf32>
      %22 = arith.addf %21, %20 : vector<16x256xf32>
      %23 = arith.mulf %17, %22 : vector<16x256xf32>
      %24 = arith.truncf %23 : vector<16x256xf32> to vector<16x256xbf16>
      %c0_17 = arith.constant 0 : index
      %c0_18 = arith.constant 0 : index
      %25 = vector.load %arg6[%c0_17, %c0_18] : memref<16x256xbf16, #tpu.memory_space<vmem>>, vector<16x256xbf16>
      tpu.vector_store %arg6[%c0_17, %c0_18], %24 {strides = array<i32>} : memref<16x256xbf16, #tpu.memory_space<vmem>>, vector<16x256xbf16>,
    } else {
    }
    return
  }
  func.func @transform_0(%arg0: i32, %arg1: i32, %arg2: i32) -> (i32, i32) {
    %c0_i32 = arith.constant 0 : i32
    return %arg0, %arg2 : i32, i32
  }
  func.func @transform_1(%arg0: i32, %arg1: i32, %arg2: i32) -> (i32, i32) {
    %c0_i32 = arith.constant 0 : i32
    return %arg2, %arg1 : i32, i32
  }
  func.func @transform_2(%arg0: i32, %arg1: i32, %arg2: i32) -> (i32, i32) {
    %c0_i32 = arith.constant 0 : i32
    %c0_i32_0 = arith.constant 0 : i32
    return %c0_i32, %arg1 : i32, i32
  }
  func.func @transform_3(%arg0: i32, %arg1: i32, %arg2: i32) -> (i32, i32) {
    %c0_i32 = arith.constant 0 : i32
    return %arg0, %arg1 : i32, i32
  }
}

module attributes {stable_mosaic.version = 11 : i64} {
  func.func @kernel(%arg0: i32, %arg1: i32, %arg2: i32, %arg3: memref<16x256xbf16, #tpu.memory_space<vmem>>, %arg4: memref<256x128xbf16, #tpu.memory_space<vmem>>, %arg5: memref<1x128xf32, #tpu.memory_space<vmem>>, %arg6: memref<16x128xf32, #tpu.memory_space<vmem>>, %arg7: memref<16x128xf32, #tpu.memory_space<vmem>>, %arg8: memref<16x128xf32, #tpu.memory_space<vmem>>) attributes {dimension_semantics = [#tpu.dimension_semantics<parallel>, #tpu.dimension_semantics<parallel>, #tpu.dimension_semantics<arbitrary>], iteration_bounds = array<i64: 1, 1, 1>, scalar_prefetch = 0 : i64, scratch_operands = 1 : i64, tpu.core_type = #tpu.core_type<tc>, window_params = [{transform_indices = @transform_0, window_bounds = array<i64: 16, 256>}, {transform_indices = @transform_1, window_bounds = array<i64: 256, 128>}, {transform_indices = @transform_2, window_bounds = array<i64: 1, 128>}, {transform_indices = @transform_3, window_bounds = array<i64: 16, 128>}, {transform_indices = @transform_4, window_bounds = array<i64: 16, 128>}]} {
    %c0_i32 = arith.constant 0 : i32
    %0 = arith.cmpi eq, %arg2, %c0_i32 : i32
    %1 = arith.extui %0 : i1 to i32
    %c0_i32_0 = arith.constant 0 : i32
    %2 = arith.cmpi ne, %1, %c0_i32_0 : i32
    scf.if %2 {
      %cst_10 = arith.constant 0.000000e+00 : f32
      %12 = vector.broadcast %cst_10 : f32 to vector<16x128xf32>
      %c0_11 = arith.constant 0 : index
      %c0_12 = arith.constant 0 : index
      %13 = vector.load %arg8[%c0_11, %c0_12] : memref<16x128xf32, #tpu.memory_space<vmem>>, vector<16x128xf32>
      tpu.vector_store %arg8[%c0_11, %c0_12], %12 {strides = array<i32>} : memref<16x128xf32, #tpu.memory_space<vmem>>, vector<16x128xf32>,
    } else {
    }
    %c0 = arith.constant 0 : index
    %c0_1 = arith.constant 0 : index
    %3 = vector.load %arg8[%c0, %c0_1] : memref<16x128xf32, #tpu.memory_space<vmem>>, vector<16x128xf32>
    %c0_2 = arith.constant 0 : index
    %c0_3 = arith.constant 0 : index
    %4 = vector.load %arg3[%c0_2, %c0_3] : memref<16x256xbf16, #tpu.memory_space<vmem>>, vector<16x256xbf16>
    %c0_4 = arith.constant 0 : index
    %c0_5 = arith.constant 0 : index
    %5 = vector.load %arg4[%c0_4, %c0_5] : memref<256x128xbf16, #tpu.memory_space<vmem>>, vector<256x128xbf16>
    %cst = arith.constant dense<0.000000e+00> : vector<16x128xf32>
    %6 = tpu.matmul %4, %5, %cst {dimension_numbers = #tpu.dot_dimension_numbers<[1], [0], [0], [1], [0, 0, 1, 1], [], []>} : vector<16x256xbf16>, vector<256x128xbf16>, vector<16x128xf32> -> vector<16x128xf32>
    %7 = arith.addf %3, %6 : vector<16x128xf32>
    %c0_6 = arith.constant 0 : index
    %c0_7 = arith.constant 0 : index
    %8 = vector.load %arg8[%c0_6, %c0_7] : memref<16x128xf32, #tpu.memory_space<vmem>>, vector<16x128xf32>
    tpu.vector_store %arg8[%c0_6, %c0_7], %7 {strides = array<i32>} : memref<16x128xf32, #tpu.memory_space<vmem>>, vector<16x128xf32>,
    %c0_i32_8 = arith.constant 0 : i32
    %9 = arith.cmpi eq, %arg2, %c0_i32_8 : i32
    %10 = arith.extui %9 : i1 to i32
    %c0_i32_9 = arith.constant 0 : i32
    %11 = arith.cmpi ne, %10, %c0_i32_9 : i32
    scf.if %11 {
      %c0_10 = arith.constant 0 : index
      %c0_11 = arith.constant 0 : index
      %12 = vector.load %arg8[%c0_10, %c0_11] : memref<16x128xf32, #tpu.memory_space<vmem>>, vector<16x128xf32>
      %c0_12 = arith.constant 0 : index
      %c0_13 = arith.constant 0 : index
      %13 = vector.load %arg5[%c0_12, %c0_13] : memref<1x128xf32, #tpu.memory_space<vmem>>, vector<1x128xf32>
      %14 = vector.broadcast %13 : vector<1x128xf32> to vector<16x128xf32>
      %15 = arith.addf %12, %14 : vector<16x128xf32>
      %c0_14 = arith.constant 0 : index
      %c0_15 = arith.constant 0 : index
      %16 = vector.load %arg6[%c0_14, %c0_15] : memref<16x128xf32, #tpu.memory_space<vmem>>, vector<16x128xf32>
      %17 = arith.addf %15, %16 : vector<16x128xf32>
      %c0_16 = arith.constant 0 : index
      %c0_17 = arith.constant 0 : index
      %18 = vector.load %arg7[%c0_16, %c0_17] : memref<16x128xf32, #tpu.memory_space<vmem>>, vector<16x128xf32>
      tpu.vector_store %arg7[%c0_16, %c0_17], %17 {strides = array<i32>} : memref<16x128xf32, #tpu.memory_space<vmem>>, vector<16x128xf32>,
    } else {
    }
    return
  }
  func.func @transform_0(%arg0: i32, %arg1: i32, %arg2: i32) -> (i32, i32) {
    %c0_i32 = arith.constant 0 : i32
    return %arg0, %arg2 : i32, i32
  }
  func.func @transform_1(%arg0: i32, %arg1: i32, %arg2: i32) -> (i32, i32) {
    %c0_i32 = arith.constant 0 : i32
    return %arg2, %arg1 : i32, i32
  }
  func.func @transform_2(%arg0: i32, %arg1: i32, %arg2: i32) -> (i32, i32) {
    %c0_i32 = arith.constant 0 : i32
    %c0_i32_0 = arith.constant 0 : i32
    return %c0_i32, %arg1 : i32, i32
  }
  func.func @transform_3(%arg0: i32, %arg1: i32, %arg2: i32) -> (i32, i32) {
    %c0_i32 = arith.constant 0 : i32
    return %arg0, %arg1 : i32, i32
  }
  func.func @transform_4(%arg0: i32, %arg1: i32, %arg2: i32) -> (i32, i32) {
    %c0_i32 = arith.constant 0 : i32
    return %arg0, %arg1 : i32, i32
  }
}

module attributes {stable_mosaic.version = 11 : i64} {
  func.func @kernel(%arg0: i32, %arg1: memref<16x64xf32, #tpu.memory_space<vmem>>, %arg2: memref<1x64xf32, #tpu.memory_space<vmem>>, %arg3: memref<1x64xf32, #tpu.memory_space<vmem>>, %arg4: memref<16x64xf32, #tpu.memory_space<vmem>>) attributes {dimension_semantics = [#tpu.dimension_semantics<parallel>], iteration_bounds = array<i64: 1>, scalar_prefetch = 0 : i64, scratch_operands = 0 : i64, tpu.core_type = #tpu.core_type<tc>, window_params = [{transform_indices = @transform_0, window_bounds = array<i64: 16, 64>}, {pipeline_mode = #tpu.pipeline_mode<synchronous>, transform_indices = @transform_1, window_bounds = array<i64: 1, 64>}, {pipeline_mode = #tpu.pipeline_mode<synchronous>, transform_indices = @transform_2, window_bounds = array<i64: 1, 64>}, {transform_indices = @transform_3, window_bounds = array<i64: 16, 64>}]} {
    %c0 = arith.constant 0 : index
    %c0_0 = arith.constant 0 : index
    %0 = vector.load %arg1[%c0, %c0_0] : memref<16x64xf32, #tpu.memory_space<vmem>>, vector<16x64xf32>
    %cst = arith.constant dense<0.000000e+00> : vector<16xf32>
    %1 = vector.multi_reduction <add>, %0, %cst [1] : vector<16x64xf32> to vector<16xf32>
    %2 = vector.shape_cast %1 : vector<16xf32> to vector<16x1xf32>
    %cst_1 = arith.constant 6.400000e+01 : f32
    %3 = vector.broadcast %cst_1 : f32 to vector<16x1xf32>
    %4 = arith.divf %2, %3 : vector<16x1xf32>
    %5 = vector.broadcast %4 : vector<16x1xf32> to vector<16x64xf32>
    %6 = arith.subf %0, %5 : vector<16x64xf32>
    %7 = arith.mulf %6, %6 : vector<16x64xf32>
    %cst_2 = arith.constant dense<0.000000e+00> : vector<16xf32>
    %8 = vector.multi_reduction <add>, %7, %cst_2 [1] : vector<16x64xf32> to vector<16xf32>
    %9 = vector.shape_cast %8 : vector<16xf32> to vector<16x1xf32>
    %cst_3 = arith.constant 6.400000e+01 : f32
    %10 = vector.broadcast %cst_3 : f32 to vector<16x1xf32>
    %11 = arith.divf %9, %10 : vector<16x1xf32>
    %cst_4 = arith.constant 9.99999997E-7 : f32
    %12 = vector.broadcast %cst_4 : f32 to vector<16x1xf32>
    %13 = arith.addf %11, %12 : vector<16x1xf32>
    %14 = math.rsqrt %13 : vector<16x1xf32>
    %15 = vector.broadcast %14 : vector<16x1xf32> to vector<16x64xf32>
    %16 = arith.mulf %6, %15 : vector<16x64xf32>
    %c0_5 = arith.constant 0 : index
    %c0_6 = arith.constant 0 : index
    %17 = vector.load %arg2[%c0_5, %c0_6] : memref<1x64xf32, #tpu.memory_space<vmem>>, vector<1x64xf32>
    %18 = vector.broadcast %17 : vector<1x64xf32> to vector<16x64xf32>
    %19 = arith.mulf %16, %18 : vector<16x64xf32>
    %c0_7 = arith.constant 0 : index
    %c0_8 = arith.constant 0 : index
    %20 = vector.load %arg3[%c0_7, %c0_8] : memref<1x64xf32, #tpu.memory_space<vmem>>, vector<1x64xf32>
    %21 = vector.broadcast %20 : vector<1x64xf32> to vector<16x64xf32>
    %22 = arith.addf %19, %21 : vector<16x64xf32>
    %c0_9 = arith.constant 0 : index
    %c0_10 = arith.constant 0 : index
    %23 = vector.load %arg4[%c0_9, %c0_10] : memref<16x64xf32, #tpu.memory_space<vmem>>, vector<16x64xf32>
    tpu.vector_store %arg4[%c0_9, %c0_10], %22 {strides = array<i32>} : memref<16x64xf32, #tpu.memory_space<vmem>>, vector<16x64xf32>,
    return
  }
  func.func @transform_0(%arg0: i32) -> (i32, i32) {
    %c0_i32 = arith.constant 0 : i32
    %c0_i32_0 = arith.constant 0 : i32
    return %arg0, %c0_i32 : i32, i32
  }
  func.func @transform_1(%arg0: i32) -> (i32, i32) {
    %c0_i32 = arith.constant 0 : i32
    %c0_i32_0 = arith.constant 0 : i32
    %c0_i32_1 = arith.constant 0 : i32
    return %c0_i32, %c0_i32_0 : i32, i32
  }
  func.func @transform_2(%arg0: i32) -> (i32, i32) {
    %c0_i32 = arith.constant 0 : i32
    %c0_i32_0 = arith.constant 0 : i32
    %c0_i32_1 = arith.constant 0 : i32
    return %c0_i32, %c0_i32_0 : i32, i32
  }
  func.func @transform_3(%arg0: i32) -> (i32, i32) {
    %c0_i32 = arith.constant 0 : i32
    %c0_i32_0 = arith.constant 0 : i32
    return %arg0, %c0_i32 : i32, i32
  }
}

module attributes {stable_mosaic.version = 11 : i64} {
  func.func @kernel(%arg0: i32, %arg1: i32, %arg2: i32, %arg3: memref<8x128xbf16, #tpu.memory_space<vmem>>, %arg4: memref<128x128xbf16, #tpu.memory_space<vmem>>, %arg5: memref<1x128xf32, #tpu.memory_space<vmem>>, %arg6: memref<8x128xf32, #tpu.memory_space<vmem>>, %arg7: memref<8x128xf32, #tpu.memory_space<vmem>>) attributes {dimension_semantics = [#tpu.dimension_semantics<parallel>, #tpu.dimension_semantics<parallel>, #tpu.dimension_semantics<arbitrary>], iteration_bounds = array<i64: 1, 1, 1>, scalar_prefetch = 0 : i64, scratch_operands = 1 : i64, tpu.core_type = #tpu.core_type<tc>, window_params = [{transform_indices = @transform_0, window_bounds = array<i64: 8, 128>}, {transform_indices = @transform_1, window_bounds = array<i64: 128, 128>}, {transform_indices = @transform_2, window_bounds = array<i64: 1, 128>}, {transform_indices = @transform_3, window_bounds = array<i64: 8, 128>}]} {
    %c0_i32 = arith.constant 0 : i32
    %0 = arith.cmpi eq, %arg2, %c0_i32 : i32
    %1 = arith.extui %0 : i1 to i32
    %c0_i32_0 = arith.constant 0 : i32
    %2 = arith.cmpi ne, %1, %c0_i32_0 : i32
    scf.if %2 {
      %cst_10 = arith.constant 0.000000e+00 : f32
      %12 = vector.broadcast %cst_10 : f32 to vector<8x128xf32>
      %c0_11 = arith.constant 0 : index
      %c0_12 = arith.constant 0 : index
      %13 = vector.load %arg7[%c0_11, %c0_12] : memref<8x128xf32, #tpu.memory_space<vmem>>, vector<8x128xf32>
      tpu.vector_store %arg7[%c0_11, %c0_12], %12 {strides = array<i32>} : memref<8x128xf32, #tpu.memory_space<vmem>>, vector<8x128xf32>,
    } else {
    }
    %c0 = arith.constant 0 : index
    %c0_1 = arith.constant 0 : index
    %3 = vector.load %arg7[%c0, %c0_1] : memref<8x128xf32, #tpu.memory_space<vmem>>, vector<8x128xf32>
    %c0_2 = arith.constant 0 : index
    %c0_3 = arith.constant 0 : index
    %4 = vector.load %arg3[%c0_2, %c0_3] : memref<8x128xbf16, #tpu.memory_space<vmem>>, vector<8x128xbf16>
    %c0_4 = arith.constant 0 : index
    %c0_5 = arith.constant 0 : index
    %5 = vector.load %arg4[%c0_4, %c0_5] : memref<128x128xbf16, #tpu.memory_space<vmem>>, vector<128x128xbf16>
    %cst = arith.constant dense<0.000000e+00> : vector<8x128xf32>
    %6 = tpu.matmul %4, %5, %cst {dimension_numbers = #tpu.dot_dimension_numbers<[1], [0], [0], [1], [0, 0, 1, 1], [], []>} : vector<8x128xbf16>, vector<128x128xbf16>, vector<8x128xf32> -> vector<8x128xf32>
    %7 = arith.addf %3, %6 : vector<8x128xf32>
    %c0_6 = arith.constant 0 : index
    %c0_7 = arith.constant 0 : index
    %8 = vector.load %arg7[%c0_6, %c0_7] : memref<8x128xf32, #tpu.memory_space<vmem>>, vector<8x128xf32>
    tpu.vector_store %arg7[%c0_6, %c0_7], %7 {strides = array<i32>} : memref<8x128xf32, #tpu.memory_space<vmem>>, vector<8x128xf32>,
    %c0_i32_8 = arith.constant 0 : i32
    %9 = arith.cmpi eq, %arg2, %c0_i32_8 : i32
    %10 = arith.extui %9 : i1 to i32
    %c0_i32_9 = arith.constant 0 : i32
    %11 = arith.cmpi ne, %10, %c0_i32_9 : i32
    scf.if %11 {
      %c0_10 = arith.constant 0 : index
      %c0_11 = arith.constant 0 : index
      %12 = vector.load %arg7[%c0_10, %c0_11] : memref<8x128xf32, #tpu.memory_space<vmem>>, vector<8x128xf32>
      %c0_12 = arith.constant 0 : index
      %c0_13 = arith.constant 0 : index
      %13 = vector.load %arg5[%c0_12, %c0_13] : memref<1x128xf32, #tpu.memory_space<vmem>>, vector<1x128xf32>
      %14 = vector.broadcast %13 : vector<1x128xf32> to vector<8x128xf32>
      %15 = arith.addf %12, %14 : vector<8x128xf32>
      %c0_14 = arith.constant 0 : index
      %c0_15 = arith.constant 0 : index
      %16 = vector.load %arg6[%c0_14, %c0_15] : memref<8x128xf32, #tpu.memory_space<vmem>>, vector<8x128xf32>
      tpu.vector_store %arg6[%c0_14, %c0_15], %15 {strides = array<i32>} : memref<8x128xf32, #tpu.memory_space<vmem>>, vector<8x128xf32>,
    } else {
    }
    return
  }
  func.func @transform_0(%arg0: i32, %arg1: i32, %arg2: i32) -> (i32, i32) {
    %c0_i32 = arith.constant 0 : i32
    return %arg0, %arg2 : i32, i32
  }
  func.func @transform_1(%arg0: i32, %arg1: i32, %arg2: i32) -> (i32, i32) {
    %c0_i32 = arith.constant 0 : i32
    return %arg2, %arg1 : i32, i32
  }
  func.func @transform_2(%arg0: i32, %arg1: i32, %arg2: i32) -> (i32, i32) {
    %c0_i32 = arith.constant 0 : i32
    %c0_i32_0 = arith.constant 0 : i32
    return %c0_i32, %arg1 : i32, i32
  }
  func.func @transform_3(%arg0: i32, %arg1: i32, %arg2: i32) -> (i32, i32) {
    %c0_i32 = arith.constant 0 : i32
    return %arg0, %arg1 : i32, i32
  }
}

</mosaic_0001>

<llo_original>
// kernel: _lambda_.19
$region0: #{_lambda_.19}
  #allocation0 [shape = 'u32[]', space=smem, size = 0x4, offset = 0x4, fixed_abs, tag = 'smem constant byte address 0x4 - core index']
  #allocation1 [shape = 'u32[144,128]{1,0:T(1,128)}', space=vmem, size = 0x12000, scoped, tag = 'internal scratch']
  #allocation2 [shape = 'f32[16,256]{1,0:T(8,128)}', space=vmem, size = 0x4000, scoped, tag = 'scratch operand']
  %s0 = inlined_call_operand.vmem [shape: bf16[16,128], index: 0, kind: input, shape index: {}]
  %s1 = inlined_call_operand.vmem [shape: bf16[128,256], index: 1, kind: input, shape index: {}]
  %s2 = inlined_call_operand.vmem [shape: f32[1,256], index: 2, kind: input, shape index: {}]
  %s3 = inlined_call_operand.vmem [shape: bf16[16,256], index: 3, kind: output, shape index: {}]
  %s4 = sld [smem:[#allocation0]]
  $region30: #{_lambda_.19} parent=0
    _
  %s6 = ssub.s32 1, %s4
  %s7 = scalar_select 0, %s6, %s4
  // Predicated region
  $region2: #{_lambda_.19} parent=0 // pred_check
    _
  $region3: #{_lambda_.19} parent=0 // pred_check_branch
    %9 = sbr.rel (0) target = $region5
  $region4: #{_lambda_.19} parent=0 // pred_region
    _
  $region5: #{_lambda_.19} parent=0 // pred_fallthru
    _
  // Predicated region
  $region6: #{_lambda_.19} parent=0 // pred_check
    _
  $region7: #{_lambda_.19} parent=0 // pred_check_branch
    %11 = sbr.rel (0) target = $region9
  $region8: #{_lambda_.19} parent=0 // pred_region
    _
  $region9: #{_lambda_.19} parent=0 // pred_fallthru
    _
  // Predicated region
  $region10: #{_lambda_.19} parent=0 // pred_check
    _
  $region11: #{_lambda_.19} parent=0 // pred_check_branch
    %13 = sbr.rel (0) target = $region13
  $region12: #{_lambda_.19} parent=0 // pred_region
    _
  $region13: #{_lambda_.19} parent=0 // pred_fallthru
    _
  %p15 = scmp.eq.s32.totalorder 0, 0
  // Predicated region
  $region14: #{_lambda_.19} parent=0 // pred_check
    %p16 = pneg %p15
  $region15: #{_lambda_.19} parent=0 // pred_check_branch
    %18 = sbr.rel (%p16) target = $region17
  $region16: #{_lambda_.19} parent=0 // pred_region
    %19 = vst [vmem:[#allocation2] sm:$0xff] 0.0
    %20 = vst [vmem:[#allocation2 + $0x8] sm:$0xff] 0.0
    %21 = vst [vmem:[#allocation2 + $0x10] sm:$0xff] 0.0
    %22 = vst [vmem:[#allocation2 + $0x18] sm:$0xff] 0.0
  $region17: #{_lambda_.19} parent=0 // pred_fallthru
    _
  %v23 = vld [vmem:[#allocation2] sm:$0xff]
  %v24 = vld [vmem:[#allocation2 + $0x8] sm:$0xff]
  %v25 = vld [vmem:[#allocation2 + $0x10] sm:$0xff]
  %v26 = vld [vmem:[#allocation2 + $0x18] sm:$0xff]
  %v27 = vld [vmem:[%s0] sm:$0xf]
  %v28 = vld [vmem:[%s0 + $0x4] sm:$0xf]
  %v29 = vld [vmem:[%s1] sm:$0xff]
  %v30 = vld [vmem:[%s1 + $0x8] sm:$0xff]
  %v31 = vld [vmem:[%s1 + $0x10] sm:$0xff]
  %v32 = vld [vmem:[%s1 + $0x18] sm:$0xff]
  %v33 = vld [vmem:[%s1 + $0x20] sm:$0xff]
  %v34 = vld [vmem:[%s1 + $0x28] sm:$0xff]
  %v35 = vld [vmem:[%s1 + $0x30] sm:$0xff]
  %v36 = vld [vmem:[%s1 + $0x38] sm:$0xff]
  %v37 = vld [vmem:[%s1 + $0x40] sm:$0xff]
  %v38 = vld [vmem:[%s1 + $0x48] sm:$0xff]
  %v39 = vld [vmem:[%s1 + $0x50] sm:$0xff]
  %v40 = vld [vmem:[%s1 + $0x58] sm:$0xff]
  %v41 = vld [vmem:[%s1 + $0x60] sm:$0xff]
  %v42 = vld [vmem:[%s1 + $0x68] sm:$0xff]
  %v43 = vld [vmem:[%s1 + $0x70] sm:$0xff]
  %v44 = vld [vmem:[%s1 + $0x78] sm:$0xff]
  %v47 = vunpack.c.l.b16 %v27
  %v48 = vunpack.c.l.b16 %v28
  %v49 = vpack.c.b16 %v48, %v47
  %v67 = vunpack.c.l.b16 %v29
  %v68 = vunpack.c.h.b16 %v29
  %v69 = vunpack.c.l.b16 %v30
  %v70 = vunpack.c.h.b16 %v30
  %v71 = vunpack.c.l.b16 %v31
  %v72 = vunpack.c.h.b16 %v31
  %v73 = vunpack.c.l.b16 %v32
  %v74 = vunpack.c.h.b16 %v32
  %v75 = vunpack.c.l.b16 %v33
  %v76 = vunpack.c.h.b16 %v33
  %v77 = vunpack.c.l.b16 %v34
  %v78 = vunpack.c.h.b16 %v34
  %v79 = vunpack.c.l.b16 %v35
  %v80 = vunpack.c.h.b16 %v35
  %v81 = vunpack.c.l.b16 %v36
  %v82 = vunpack.c.h.b16 %v36
  %v83 = vunpack.c.l.b16 %v37
  %v84 = vunpack.c.h.b16 %v37
  %v85 = vunpack.c.l.b16 %v38
  %v86 = vunpack.c.h.b16 %v38
  %v87 = vunpack.c.l.b16 %v39
  %v88 = vunpack.c.h.b16 %v39
  %v89 = vunpack.c.l.b16 %v40
  %v90 = vunpack.c.h.b16 %v40
  %v91 = vunpack.c.l.b16 %v41
  %v92 = vunpack.c.h.b16 %v41
  %v93 = vunpack.c.l.b16 %v42
  %v94 = vunpack.c.h.b16 %v42
  %v95 = vunpack.c.l.b16 %v43
  %v96 = vunpack.c.h.b16 %v43
  %v97 = vunpack.c.l.b16 %v44
  %v98 = vunpack.c.h.b16 %v44
  %v99 = vpack.c.b16 %v69, %v67
  %v100 = vpack.c.b16 %v70, %v68
  %v101 = vpack.c.b16 %v73, %v71
  %v102 = vpack.c.b16 %v74, %v72
  %v103 = vpack.c.b16 %v77, %v75
  %v104 = vpack.c.b16 %v78, %v76
  %v105 = vpack.c.b16 %v81, %v79
  %v106 = vpack.c.b16 %v82, %v80
  %v107 = vpack.c.b16 %v85, %v83
  %v108 = vpack.c.b16 %v86, %v84
  %v109 = vpack.c.b16 %v89, %v87
  %v110 = vpack.c.b16 %v90, %v88
  %v111 = vpack.c.b16 %v93, %v91
  %v112 = vpack.c.b16 %v94, %v92
  %v113 = vpack.c.b16 %v97, %v95
  %v114 = vpack.c.b16 %v98, %v96
  %131 = vmatprep.subr.bf16.mxu0 %v114
  %132 = vmatpush1.bf16.msra.mxu0 %v113
  %133 = vmatprep.subr.bf16.mxu0 %v112
  %134 = vmatpush1.bf16.msra.mxu0 %v111
  %135 = vmatprep.subr.bf16.mxu0 %v110
  %136 = vmatpush1.bf16.msra.mxu0 %v109
  %137 = vmatprep.subr.bf16.mxu0 %v108
  %138 = vmatpush1.bf16.msra.mxu0 %v107
  %139 = vmatprep.subr.bf16.mxu0 %v106
  %140 = vmatpush1.bf16.msra.mxu0 %v105
  %141 = vmatprep.subr.bf16.mxu0 %v104
  %142 = vmatpush1.bf16.msra.mxu0 %v103
  %143 = vmatprep.subr.bf16.mxu0 %v102
  %144 = vmatpush1.bf16.msra.mxu0 %v101
  %145 = vmatprep.subr.bf16.mxu0 %v100
  %146 = vmatpush1.bf16.msra.mxu0 %v99
  %147 = vmatprep.subr.bf16.mxu0 0
  %148 = vmatpush2.bf16.msra.mxu0 0
  %149 = vmatprep.subr.bf16.mxu0 0
  %150 = vmatpush2.bf16.msra.mxu0 0
  %151 = vmatprep.subr.bf16.mxu0 0
  %152 = vmatpush2.bf16.msra.mxu0 0
  %153 = vmatprep.subr.bf16.mxu0 0
  %154 = vmatpush2.bf16.msra.mxu0 0
  %155 = vmatprep.subr.bf16.mxu0 0
  %156 = vmatpush2.bf16.msra.mxu0 0
  %157 = vmatprep.subr.bf16.mxu0 0
  %158 = vmatpush2.bf16.msra.mxu0 0
  %159 = vmatprep.subr.bf16.mxu0 0
  %160 = vmatpush2.bf16.msra.mxu0 0
  %161 = vmatprep.subr.bf16.mxu0 0
  %162 = vmatpush2.bf16.msra.mxu0 0
  %163 = vmatprep.mubr.bf16.mxu0 0
  %164 = vmatmul.mubr.bf16.gmra.mxu0 %v49
  %v165 = vpop.f32.mrf.mxu0
  %v166 = vadd.f32 0.0, %v165
  %v167 = vpop.f32.mrf.mxu0
  %v168 = vadd.f32 0.0, %v167
  %v169 = vpop.f32.mrf.mxu0
  %v170 = vadd.f32 0.0, %v169
  %v171 = vpop.f32.mrf.mxu0
  %v172 = vadd.f32 0.0, %v171
  %173 = vdwg.mxu0
  %v174 = vadd.f32 %v23, %v166
  %v175 = vadd.f32 %v24, %v168
  %v176 = vadd.f32 %v25, %v170
  %v177 = vadd.f32 %v26, %v172
  %178 = vst [vmem:[#allocation2] sm:$0xff] %v174
  %179 = vst [vmem:[#allocation2 + $0x8] sm:$0xff] %v175
  %180 = vst [vmem:[#allocation2 + $0x10] sm:$0xff] %v176
  %181 = vst [vmem:[#allocation2 + $0x18] sm:$0xff] %v177
  // Predicated region
  $region18: #{_lambda_.19} parent=0 // pred_check
    %p182 = pneg %p15
  $region19: #{_lambda_.19} parent=0 // pred_check_branch
    %184 = sbr.rel (%p182) target = $region21
  $region20: #{_lambda_.19} parent=0 // pred_region
    %v185 = vld [vmem:[#allocation2] sm:$0xff]
    %v186 = vld [vmem:[#allocation2 + $0x8] sm:$0xff]
    %v187 = vld [vmem:[#allocation2 + $0x10] sm:$0xff]
    %v188 = vld [vmem:[#allocation2 + $0x18] sm:$0xff]
    %v189 = vld [vmem:[%s2] sm:$0x3]
    %v191 = vlaneseq
    %v192 = vshrl.u32 %v191, 7
    %v193 = vsub.s32 0, %v192
    %v194 = vrot.slane %v189, %v193
    %v195 = vlaneseq
    %v196 = vshrl.u32 %v195, 7
    %v197 = vsub.s32 1, %v196
    %v198 = vrot.slane %v189, %v197
    %v201 = vadd.f32 %v185, %v194
    %v202 = vadd.f32 %v186, %v198
    %v203 = vadd.f32 %v187, %v194
    %v204 = vadd.f32 %v188, %v198
    %v205 = vpack.c.bf16 %v203, %v201
    %v206 = vpack.c.bf16 %v204, %v202
    %v209 = vunpack.c.l.b16 %v205
    %v210 = vunpack.c.l.b16 %v206
    %v211 = vunpack.c.h.b16 %v205
    %v212 = vunpack.c.h.b16 %v206
    %v213 = vpack.c.b16 %v210, %v209
    %v214 = vpack.c.b16 %v212, %v211
    %217 = vst [vmem:[%s3] sm:$0xff] %v213
    %218 = vst [vmem:[%s3 + $0x8] sm:$0xff] %v214
  $region21: #{_lambda_.19} parent=0 // pred_fallthru
    _
  // Predicated region
  $region22: #{_lambda_.19} parent=0 // pred_check
    _
  $region23: #{_lambda_.19} parent=0 // pred_check_branch
    %220 = sbr.rel (0) target = $region25
  $region24: #{_lambda_.19} parent=0 // pred_region
    _
  $region25: #{_lambda_.19} parent=0 // pred_fallthru
    _
  // Predicated region
  $region26: #{_lambda_.19} parent=0 // pred_check
    _
  $region27: #{_lambda_.19} parent=0 // pred_check_branch
    %222 = sbr.rel (0) target = $region29
  $region28: #{_lambda_.19} parent=0 // pred_region
    _
  $region29: #{_lambda_.19} parent=0 // pred_fallthru
    _

// kernel: _lambda_.17
$region0: #{_lambda_.17}
  #allocation0 [shape = 'u32[]', space=smem, size = 0x4, offset = 0x4, fixed_abs, tag = 'smem constant byte address 0x4 - core index']
  #allocation1 [shape = 'u32[144,128]{1,0:T(1,128)}', space=vmem, size = 0x12000, scoped, tag = 'internal scratch']
  #allocation2 [shape = 'f32[8,128]{1,0:T(8,128)}', space=vmem, size = 0x1000, scoped, tag = 'scratch operand']
  %s0 = inlined_call_operand.vmem [shape: bf16[8,768], index: 0, kind: input, shape index: {}]
  %s1 = inlined_call_operand.vmem [shape: bf16[768,128], index: 1, kind: input, shape index: {}]
  %s2 = inlined_call_operand.vmem [shape: f32[1,128], index: 2, kind: input, shape index: {}]
  %s3 = inlined_call_operand.vmem [shape: f32[8,128], index: 3, kind: output, shape index: {}]
  %s4 = sld [smem:[#allocation0]]
  $region53: #{_lambda_.17} parent=0
    _
  %s6 = ssub.s32 1, %s4
  %s7 = scalar_select 0, %s6, %s4
  loop: start=0, step=1, limit=4
  $region2: #{_lambda_.17} parent=0 // loop_pre_header
    _
  $region3: #{_lambda_.17} parent=0 // loop_header
    %s9 = sphi 0, %s13
    %p10 = scmp.ge.s32.totalorder %s9, 4
    %s16 = sphi 0, %s35
    %s17 = sphi 0, %s31
    %s18 = sphi 0, %s27
    %s19 = sphi 0, %s16
    %s20 = sphi 0, %s17
    %s21 = sphi 0, %s18
    %s22 = sphi 0, %s19
    %s23 = sphi 0, %s20
    %s24 = sphi 0, %s21
    %s40 = sphi 0, %s42
    %s43 = sphi 0, %s40
    %s44 = sphi 0, %s43
    %s60 = sphi 0, %s44
    %s68 = sphi 0, %s70
    %s71 = sphi 0, %s68
    %s72 = sphi 0, %s71
    %s88 = sphi 0, %s72
    %s94 = sphi 0, %s96
    %s97 = sphi 0, %s94
    %s98 = sphi 0, %s97
    %s114 = sphi 0, %s98
    %s122 = sphi 0, %s124
    %s125 = sphi 0, %s122
    %s126 = sphi 0, %s125
    %s142 = sphi 0, %s126
  $region4: #{_lambda_.17} parent=0 // loop_header_branch
    %12 = sbr.rel (%p10) target = $region8
  $region5: #{_lambda_.17} parent=0 // loop_body
    %s14 = ssub.s32 %s9, 1
    %s15 = ssub.s32 %s9, 2
    %s25 = sadd.s32 1, %s18
    %p26 = scmp.ge.s32.totalorder %s25, 2
    %s27 = scalar_select %p26, 0, %s25
    %s28 = sadd.s32 1, %s17
    %s29 = scalar_select %p26, %s28, %s17
    %p30 = scmp.ge.s32.totalorder %s29, 1
    %s31 = scalar_select %p30, 0, %s29
    %s32 = sadd.s32 1, %s16
    %s33 = scalar_select %p30, %s32, %s16
    %p34 = scmp.ge.s32.totalorder %s33, 1
    %s35 = scalar_select %p34, 0, %s33
    %s36 = ssub.s32 %s16, %s35
    %s37 = ssub.s32 %s18, %s27
    %s38 = sor.u32 %s36, %s37
    %p39 = scmp.eq.s32.totalorder %s38, 0
    %s41 = sadd.s32 %s40, 1
    %s42 = scalar_select %p39, %s40, %s41
    %p45 = pneg %p39
    %p46 = scmp.eq.s32.totalorder %s9, 1
    %p47 = por %p45, %p46
    %p48 = scmp.ne.s32.totalorder %s40, %s43
    %p49 = scmp.eq.s32.totalorder %s9, 0
    %p50 = por %p48, %p49
    %p51 = scmp.ne.s32.totalorder %s40, %s43
    %p52 = scmp.eq.s32.totalorder %s14, 1
    %p53 = por %p51, %p52
    %p54 = scmp.ne.s32.totalorder %s43, %s44
    %p55 = scmp.eq.s32.totalorder %s14, 0
    %p56 = por %p54, %p55
    %p57 = scmp.ne.s32.totalorder %s43, %s44
    %p58 = scmp.eq.s32.totalorder %s15, 1
    %p59 = por %p57, %p58
    %p61 = scmp.ne.s32.totalorder %s44, %s60
    %p62 = scmp.eq.s32.totalorder %s15, 0
    %p63 = por %p61, %p62
    %s64 = ssub.s32 %s18, %s27
    %s65 = ssub.s32 %s17, %s31
    %s66 = sor.u32 %s64, %s65
    %p67 = scmp.eq.s32.totalorder %s66, 0
    %s69 = sadd.s32 %s68, 1
    %s70 = scalar_select %p67, %s68, %s69
    %p73 = pneg %p67
    %p74 = scmp.eq.s32.totalorder %s9, 1
    %p75 = por %p73, %p74
    %p76 = scmp.ne.s32.totalorder %s68, %s71
    %p77 = scmp.eq.s32.totalorder %s9, 0
    %p78 = por %p76, %p77
    %p79 = scmp.ne.s32.totalorder %s68, %s71
    %p80 = scmp.eq.s32.totalorder %s14, 1
    %p81 = por %p79, %p80
    %p82 = scmp.ne.s32.totalorder %s71, %s72
    %p83 = scmp.eq.s32.totalorder %s14, 0
    %p84 = por %p82, %p83
    %p85 = scmp.ne.s32.totalorder %s71, %s72
    %p86 = scmp.eq.s32.totalorder %s15, 1
    %p87 = por %p85, %p86
    %p89 = scmp.ne.s32.totalorder %s72, %s88
    %p90 = scmp.eq.s32.totalorder %s15, 0
    %p91 = por %p89, %p90
    %s92 = ssub.s32 %s17, %s31
    %p93 = scmp.eq.s32.totalorder %s92, 0
    %s95 = sadd.s32 %s94, 1
    %s96 = scalar_select %p93, %s94, %s95
    %p99 = pneg %p93
    %p100 = scmp.eq.s32.totalorder %s9, 1
    %p101 = por %p99, %p100
    %p102 = scmp.ne.s32.totalorder %s94, %s97
    %p103 = scmp.eq.s32.totalorder %s9, 0
    %p104 = por %p102, %p103
    %p105 = scmp.ne.s32.totalorder %s94, %s97
    %p106 = scmp.eq.s32.totalorder %s14, 1
    %p107 = por %p105, %p106
    %p108 = scmp.ne.s32.totalorder %s97, %s98
    %p109 = scmp.eq.s32.totalorder %s14, 0
    %p110 = por %p108, %p109
    %p111 = scmp.ne.s32.totalorder %s97, %s98
    %p112 = scmp.eq.s32.totalorder %s15, 1
    %p113 = por %p111, %p112
    %p115 = scmp.ne.s32.totalorder %s98, %s114
    %p116 = scmp.eq.s32.totalorder %s15, 0
    %p117 = por %p115, %p116
    %s118 = ssub.s32 %s16, %s35
    %s119 = ssub.s32 %s17, %s31
    %s120 = sor.u32 %s118, %s119
    %p121 = scmp.eq.s32.totalorder %s120, 0
    %s123 = sadd.s32 %s122, 1
    %s124 = scalar_select %p121, %s122, %s123
    %p127 = pneg %p121
    %p128 = scmp.eq.s32.totalorder %s9, 1
    %p129 = por %p127, %p128
    %p130 = scmp.ne.s32.totalorder %s122, %s125
    %p131 = scmp.eq.s32.totalorder %s9, 0
    %p132 = por %p130, %p131
    %p133 = scmp.ne.s32.totalorder %s122, %s125
    %p134 = scmp.eq.s32.totalorder %s14, 1
    %p135 = por %p133, %p134
    %p136 = scmp.ne.s32.totalorder %s125, %s126
    %p137 = scmp.eq.s32.totalorder %s14, 0
    %p138 = por %p136, %p137
    %p139 = scmp.ne.s32.totalorder %s125, %s126
    %p140 = scmp.eq.s32.totalorder %s15, 1
    %p141 = por %p139, %p140
    %p143 = scmp.ne.s32.totalorder %s126, %s142
    %p144 = scmp.eq.s32.totalorder %s15, 0
    %p145 = por %p143, %p144
    %p146 = scmp.le.s32.totalorder 1, %s9
    %p147 = scmp.lt.s32.totalorder %s9, 3
    %p148 = pnand %p146, %p147
    %p149 = pneg %p148
    // Predicated region
    $region9: #{_lambda_.17} parent=5 // pred_check
      _
    $region10: #{_lambda_.17} parent=5 // pred_check_branch
      %151 = sbr.rel (%p148) target = $region12
    $region11: #{_lambda_.17} parent=5 // pred_region
      %s152 = ssub.s32 %s9, 1
      // Predicated region
      $region13: #{_lambda_.17} parent=11 // pred_check
        %p153 = pneg %p110
      $region14: #{_lambda_.17} parent=11 // pred_check_branch
        %155 = sbr.rel (%p153) target = $region16
      $region15: #{_lambda_.17} parent=11 // pred_region
        %p156 = scmp.lt.s32.totalorder %s20, 0
        %s157 = scalar_select %p156, %s20, 0
        %s158 = scalar_lea.vmem %s2, %s157
      $region16: #{_lambda_.17} parent=11 // pred_fallthru
        _
    $region12: #{_lambda_.17} parent=5 // pred_fallthru
      _
    %p159 = scmp.lt.s32.totalorder %s9, 2
    // Predicated region
    $region17: #{_lambda_.17} parent=5 // pred_check
      %p160 = pneg %p159
    $region18: #{_lambda_.17} parent=5 // pred_check_branch
      %162 = sbr.rel (%p160) target = $region20
    $region19: #{_lambda_.17} parent=5 // pred_region
      // Predicated region
      $region21: #{_lambda_.17} parent=19 // pred_check
        %p163 = pneg %p50
      $region22: #{_lambda_.17} parent=19 // pred_check_branch
        %165 = sbr.rel (%p163) target = $region24
      $region23: #{_lambda_.17} parent=19 // pred_region
        %s166 = smul.u32 3, %s18
        %p167 = scmp.lt.s32.totalorder %s16, 0
        %s168 = scalar_select %p167, %s16, 0
        %p169 = scmp.lt.s32.totalorder %s166, 5
        %s170 = scalar_select %p169, %s166, 5
        %s171 = smul.addr %s168, 6
        %s172 = sadd.s32 %s170, %s171
        %s173 = smul.addr %s172, 4
        %s174 = scalar_lea.vmem %s0, %s173
        %s175 = smul.u32 3, %s18
      $region24: #{_lambda_.17} parent=19 // pred_fallthru
        _
      // Predicated region
      $region25: #{_lambda_.17} parent=19 // pred_check
        %p176 = pneg %p78
      $region26: #{_lambda_.17} parent=19 // pred_check_branch
        %178 = sbr.rel (%p176) target = $region28
      $region27: #{_lambda_.17} parent=19 // pred_region
        %s179 = smul.u32 48, %s18
        %p180 = scmp.lt.s32.totalorder %s179, 95
        %s181 = scalar_select %p180, %s179, 95
        %p182 = scmp.lt.s32.totalorder %s17, 0
        %s183 = scalar_select %p182, %s17, 0
        %s184 = sadd.s32 %s183, %s181
        %s185 = smul.addr %s184, 4
        %s186 = scalar_lea.vmem %s1, %s185
        %s187 = smul.u32 48, %s18
      $region28: #{_lambda_.17} parent=19 // pred_fallthru
        _
    $region20: #{_lambda_.17} parent=5 // pred_fallthru
      _
    %p188 = scmp.le.s32.totalorder 1, %s9
    %p189 = scmp.lt.s32.totalorder %s9, 3
    %p190 = pnand %p188, %p189
    %p191 = pneg %p190
    // Predicated region
    $region29: #{_lambda_.17} parent=5 // pred_check
      _
    $region30: #{_lambda_.17} parent=5 // pred_check_branch
      %193 = sbr.rel (%p190) target = $region32
    $region31: #{_lambda_.17} parent=5 // pred_region
      %s194 = ssub.s32 %s9, 1
      %s195 = smul.u32 3, %s21
      %p196 = scmp.lt.s32.totalorder %s19, 0
      %s197 = scalar_select %p196, %s19, 0
      %p198 = scmp.lt.s32.totalorder %s195, 5
      %s199 = scalar_select %p198, %s195, 5
      %s200 = smul.addr %s197, 6
      %s201 = sadd.s32 %s199, %s200
      %s202 = smul.addr %s201, 4
      %s203 = scalar_lea.vmem %s0, %s202
      %p204 = pneg %p56
      %p205 = pneg %p53
      %s206 = smul.u32 48, %s21
      %p207 = scmp.lt.s32.totalorder %s206, 95
      %s208 = scalar_select %p207, %s206, 95
      %p209 = scmp.lt.s32.totalorder %s20, 0
      %s210 = scalar_select %p209, %s20, 0
      %s211 = sadd.s32 %s210, %s208
      %s212 = smul.addr %s211, 4
      %s213 = scalar_lea.vmem %s1, %s212
      %p214 = pneg %p84
      %p215 = pneg %p81
      %p216 = scmp.lt.s32.totalorder %s20, 0
      %s217 = scalar_select %p216, %s20, 0
      %s218 = scalar_lea.vmem %s2, %s217
      %p219 = pneg %p110
      %p220 = pneg %p107
      %p221 = pneg %p138
      %p222 = pneg %p135
      %p223 = scmp.lt.s32.totalorder %s19, 0
      %s224 = scalar_select %p223, %s19, 0
      %p225 = scmp.lt.s32.totalorder %s20, 0
      %s226 = scalar_select %p225, %s20, 0
      %s227 = sadd.s32 %s226, %s224
      %s228 = smul.addr %s227, 8
      %s229 = scalar_lea.vmem %s3, %s228
      %s230 = smul.u32 3, %s21
      %p231 = scmp.lt.s32.totalorder %s19, 0
      %s232 = scalar_select %p231, %s19, 0
      %p233 = scmp.lt.s32.totalorder %s230, 5
      %s234 = scalar_select %p233, %s230, 5
      %s235 = smul.addr %s232, 6
      %s236 = sadd.s32 %s234, %s235
      %s237 = smul.addr %s236, 4
      %s238 = scalar_lea.vmem %s0, %s237
      %s239 = smul.u32 3, %s21
      %s240 = smul.u32 48, %s21
      %p241 = scmp.lt.s32.totalorder %s240, 95
      %s242 = scalar_select %p241, %s240, 95
      %p243 = scmp.lt.s32.totalorder %s20, 0
      %s244 = scalar_select %p243, %s20, 0
      %s245 = sadd.s32 %s244, %s242
      %s246 = smul.addr %s245, 4
      %s247 = scalar_lea.vmem %s1, %s246
      %s248 = smul.u32 48, %s21
      %p249 = scmp.lt.s32.totalorder %s20, 0
      %s250 = scalar_select %p249, %s20, 0
      %s251 = scalar_lea.vmem %s2, %s250
      %p252 = scmp.lt.s32.totalorder %s19, 0
      %s253 = scalar_select %p252, %s19, 0
      %p254 = scmp.lt.s32.totalorder %s20, 0
      %s255 = scalar_select %p254, %s20, 0
      %s256 = sadd.s32 %s255, %s253
      %s257 = smul.addr %s256, 8
      %s258 = scalar_lea.vmem %s3, %s257
      %p260 = scmp.eq.s32.totalorder %s21, 0
      // Predicated region
      $region33: #{_lambda_.17} parent=31 // pred_check
        %p261 = pneg %p260
      $region34: #{_lambda_.17} parent=31 // pred_check_branch
        %263 = sbr.rel (%p261) target = $region36
      $region35: #{_lambda_.17} parent=31 // pred_region
        %264 = vst [vmem:[#allocation2] sm:$0xff] 0.0
      $region36: #{_lambda_.17} parent=31 // pred_fallthru
        _
      %v265 = vld [vmem:[#allocation2] sm:$0xff]
      %v266 = vld [vmem:[%s238] sm:$0xff]
      %v267 = vld [vmem:[%s238 + $0x8] sm:$0xf]
      %v268 = vld [vmem:[%s247] sm:$0xf]
      %v269 = vld [vmem:[%s247 + $0x4] sm:$0xf]
      %v270 = vld [vmem:[%s247 + $0x8] sm:$0xf]
      %v271 = vld [vmem:[%s247 + $0xc] sm:$0xf]
      %v272 = vld [vmem:[%s247 + $0x10] sm:$0xf]
      %v273 = vld [vmem:[%s247 + $0x14] sm:$0xf]
      %v274 = vld [vmem:[%s247 + $0x18] sm:$0xf]
      %v275 = vld [vmem:[%s247 + $0x1c] sm:$0xf]
      %v276 = vld [vmem:[%s247 + $0x20] sm:$0xf]
      %v277 = vld [vmem:[%s247 + $0x24] sm:$0xf]
      %v278 = vld [vmem:[%s247 + $0x28] sm:$0xf]
      %v279 = vld [vmem:[%s247 + $0x2c] sm:$0xf]
      %v280 = vld [vmem:[%s247 + $0x30] sm:$0xf]
      %v281 = vld [vmem:[%s247 + $0x34] sm:$0xf]
      %v282 = vld [vmem:[%s247 + $0x38] sm:$0xf]
      %v283 = vld [vmem:[%s247 + $0x3c] sm:$0xf]
      %v284 = vld [vmem:[%s247 + $0x40] sm:$0xf]
      %v285 = vld [vmem:[%s247 + $0x44] sm:$0xf]
      %v286 = vld [vmem:[%s247 + $0x48] sm:$0xf]
      %v287 = vld [vmem:[%s247 + $0x4c] sm:$0xf]
      %v288 = vld [vmem:[%s247 + $0x50] sm:$0xf]
      %v289 = vld [vmem:[%s247 + $0x54] sm:$0xf]
      %v290 = vld [vmem:[%s247 + $0x58] sm:$0xf]
      %v291 = vld [vmem:[%s247 + $0x5c] sm:$0xf]
      %v292 = vld [vmem:[%s247 + $0x60] sm:$0xf]
      %v293 = vld [vmem:[%s247 + $0x64] sm:$0xf]
      %v294 = vld [vmem:[%s247 + $0x68] sm:$0xf]
      %v295 = vld [vmem:[%s247 + $0x6c] sm:$0xf]
      %v296 = vld [vmem:[%s247 + $0x70] sm:$0xf]
      %v297 = vld [vmem:[%s247 + $0x74] sm:$0xf]
      %v298 = vld [vmem:[%s247 + $0x78] sm:$0xf]
      %v299 = vld [vmem:[%s247 + $0x7c] sm:$0xf]
      %v300 = vld [vmem:[%s247 + $0x80] sm:$0xf]
      %v301 = vld [vmem:[%s247 + $0x84] sm:$0xf]
      %v302 = vld [vmem:[%s247 + $0x88] sm:$0xf]
      %v303 = vld [vmem:[%s247 + $0x8c] sm:$0xf]
      %v304 = vld [vmem:[%s247 + $0x90] sm:$0xf]
      %v305 = vld [vmem:[%s247 + $0x94] sm:$0xf]
      %v306 = vld [vmem:[%s247 + $0x98] sm:$0xf]
      %v307 = vld [vmem:[%s247 + $0x9c] sm:$0xf]
      %v308 = vld [vmem:[%s247 + $0xa0] sm:$0xf]
      %v309 = vld [vmem:[%s247 + $0xa4] sm:$0xf]
      %v310 = vld [vmem:[%s247 + $0xa8] sm:$0xf]
      %v311 = vld [vmem:[%s247 + $0xac] sm:$0xf]
      %v312 = vld [vmem:[%s247 + $0xb0] sm:$0xf]
      %v313 = vld [vmem:[%s247 + $0xb4] sm:$0xf]
      %v314 = vld [vmem:[%s247 + $0xb8] sm:$0xf]
      %v315 = vld [vmem:[%s247 + $0xbc] sm:$0xf]
      %v318 = vunpack.c.l.b16 %v266
      %v319 = vunpack.c.h.b16 %v266
      %v320 = vunpack.c.l.b16 %v267
      %v321 = vpack.c.b16 %v318, %v318
      %v322 = vpack.c.b16 %v319, %v319
      %v323 = vpack.c.b16 %v320, %v320
      %v375 = vunpack.c.l.b16 %v268
      %v376 = vunpack.c.l.b16 %v269
      %v377 = vunpack.c.l.b16 %v270
      %v378 = vunpack.c.l.b16 %v271
      %v379 = vunpack.c.l.b16 %v272
      %v380 = vunpack.c.l.b16 %v273
      %v381 = vunpack.c.l.b16 %v274
      %v382 = vunpack.c.l.b16 %v275
      %v383 = vunpack.c.l.b16 %v276
      %v384 = vunpack.c.l.b16 %v277
      %v385 = vunpack.c.l.b16 %v278
      %v386 = vunpack.c.l.b16 %v279
      %v387 = vunpack.c.l.b16 %v280
      %v388 = vunpack.c.l.b16 %v281
      %v389 = vunpack.c.l.b16 %v282
      %v390 = vunpack.c.l.b16 %v283
      %v391 = vunpack.c.l.b16 %v284
      %v392 = vunpack.c.l.b16 %v285
      %v393 = vunpack.c.l.b16 %v286
      %v394 = vunpack.c.l.b16 %v287
      %v395 = vunpack.c.l.b16 %v288
      %v396 = vunpack.c.l.b16 %v289
      %v397 = vunpack.c.l.b16 %v290
      %v398 = vunpack.c.l.b16 %v291
      %v399 = vunpack.c.l.b16 %v292
      %v400 = vunpack.c.l.b16 %v293
      %v401 = vunpack.c.l.b16 %v294
      %v402 = vunpack.c.l.b16 %v295
      %v403 = vunpack.c.l.b16 %v296
      %v404 = vunpack.c.l.b16 %v297
      %v405 = vunpack.c.l.b16 %v298
      %v406 = vunpack.c.l.b16 %v299
      %v407 = vunpack.c.l.b16 %v300
      %v408 = vunpack.c.l.b16 %v301
      %v409 = vunpack.c.l.b16 %v302
      %v410 = vunpack.c.l.b16 %v303
      %v411 = vunpack.c.l.b16 %v304
      %v412 = vunpack.c.l.b16 %v305
      %v413 = vunpack.c.l.b16 %v306
      %v414 = vunpack.c.l.b16 %v307
      %v415 = vunpack.c.l.b16 %v308
      %v416 = vunpack.c.l.b16 %v309
      %v417 = vunpack.c.l.b16 %v310
      %v418 = vunpack.c.l.b16 %v311
      %v419 = vunpack.c.l.b16 %v312
      %v420 = vunpack.c.l.b16 %v313
      %v421 = vunpack.c.l.b16 %v314
      %v422 = vunpack.c.l.b16 %v315
      %v423 = vpack.c.b16 %v376, %v375
      %v424 = vpack.c.b16 %v378, %v377
      %v425 = vpack.c.b16 %v380, %v379
      %v426 = vpack.c.b16 %v382, %v381
      %v427 = vpack.c.b16 %v384, %v383
      %v428 = vpack.c.b16 %v386, %v385
      %v429 = vpack.c.b16 %v388, %v387
      %v430 = vpack.c.b16 %v390, %v389
      %v431 = vpack.c.b16 %v392, %v391
      %v432 = vpack.c.b16 %v394, %v393
      %v433 = vpack.c.b16 %v396, %v395
      %v434 = vpack.c.b16 %v398, %v397
      %v435 = vpack.c.b16 %v400, %v399
      %v436 = vpack.c.b16 %v402, %v401
      %v437 = vpack.c.b16 %v404, %v403
      %v438 = vpack.c.b16 %v406, %v405
      %v439 = vpack.c.b16 %v408, %v407
      %v440 = vpack.c.b16 %v410, %v409
      %v441 = vpack.c.b16 %v412, %v411
      %v442 = vpack.c.b16 %v414, %v413
      %v443 = vpack.c.b16 %v416, %v415
      %v444 = vpack.c.b16 %v418, %v417
      %v445 = vpack.c.b16 %v420, %v419
      %v446 = vpack.c.b16 %v422, %v421
      %471 = vmatprep.subr.bf16.mxu0 0
      %472 = vmatpush1.bf16.msra.mxu0 %v430
      %473 = vmatprep.subr.bf16.mxu0 0
      %474 = vmatpush1.bf16.msra.mxu0 %v429
      %475 = vmatprep.subr.bf16.mxu0 0
      %476 = vmatpush1.bf16.msra.mxu0 %v428
      %477 = vmatprep.subr.bf16.mxu0 0
      %478 = vmatpush1.bf16.msra.mxu0 %v427
      %479 = vmatprep.subr.bf16.mxu0 0
      %480 = vmatpush1.bf16.msra.mxu0 %v426
      %481 = vmatprep.subr.bf16.mxu0 0
      %482 = vmatpush1.bf16.msra.mxu0 %v425
      %483 = vmatprep.subr.bf16.mxu0 0
      %484 = vmatpush1.bf16.msra.mxu0 %v424
      %485 = vmatprep.subr.bf16.mxu0 0
      %486 = vmatpush1.bf16.msra.mxu0 %v423
      %487 = vmatprep.subr.bf16.mxu0 0
      %488 = vmatpush2.bf16.msra.mxu0 %v438
      %489 = vmatprep.subr.bf16.mxu0 0
      %490 = vmatpush2.bf16.msra.mxu0 %v437
      %491 = vmatprep.subr.bf16.mxu0 0
      %492 = vmatpush2.bf16.msra.mxu0 %v436
      %493 = vmatprep.subr.bf16.mxu0 0
      %494 = vmatpush2.bf16.msra.mxu0 %v435
      %495 = vmatprep.subr.bf16.mxu0 0
      %496 = vmatpush2.bf16.msra.mxu0 %v434
      %497 = vmatprep.subr.bf16.mxu0 0
      %498 = vmatpush2.bf16.msra.mxu0 %v433
      %499 = vmatprep.subr.bf16.mxu0 0
      %500 = vmatpush2.bf16.msra.mxu0 %v432
      %501 = vmatprep.subr.bf16.mxu0 0
      %502 = vmatpush2.bf16.msra.mxu0 %v431
      %503 = vmatprep.mubr.bf16.mxu0 %v322
      %504 = vmatmul.mubr.bf16.gmra.mxu0 %v321
      %v505 = vpop.f32.mrf.mxu0
      %v506 = vadd.f32 0.0, %v505
      %v507 = vpop.f32.mrf.mxu0
      %v508 = vpop.f32.mrf.mxu0
      %v509 = vpop.f32.mrf.mxu0
      %510 = vdwg.mxu0
      %511 = vmatprep.subr.bf16.mxu0 0
      %512 = vmatpush1.bf16.msra.mxu0 %v446
      %513 = vmatprep.subr.bf16.mxu0 0
      %514 = vmatpush1.bf16.msra.mxu0 %v445
      %515 = vmatprep.subr.bf16.mxu0 0
      %516 = vmatpush1.bf16.msra.mxu0 %v444
      %517 = vmatprep.subr.bf16.mxu0 0
      %518 = vmatpush1.bf16.msra.mxu0 %v443
      %519 = vmatprep.subr.bf16.mxu0 0
      %520 = vmatpush1.bf16.msra.mxu0 %v442
      %521 = vmatprep.subr.bf16.mxu0 0
      %522 = vmatpush1.bf16.msra.mxu0 %v441
      %523 = vmatprep.subr.bf16.mxu0 0
      %524 = vmatpush1.bf16.msra.mxu0 %v440
      %525 = vmatprep.subr.bf16.mxu0 0
      %526 = vmatpush1.bf16.msra.mxu0 %v439
      %527 = vmatprep.subr.bf16.mxu0 0
      %528 = vmatpush2.bf16.msra.mxu0 0
      %529 = vmatprep.subr.bf16.mxu0 0
      %530 = vmatpush2.bf16.msra.mxu0 0
      %531 = vmatprep.subr.bf16.mxu0 0
      %532 = vmatpush2.bf16.msra.mxu0 0
      %533 = vmatprep.subr.bf16.mxu0 0
      %534 = vmatpush2.bf16.msra.mxu0 0
      %535 = vmatprep.subr.bf16.mxu0 0
      %536 = vmatpush2.bf16.msra.mxu0 0
      %537 = vmatprep.subr.bf16.mxu0 0
      %538 = vmatpush2.bf16.msra.mxu0 0
      %539 = vmatprep.subr.bf16.mxu0 0
      %540 = vmatpush2.bf16.msra.mxu0 0
      %541 = vmatprep.subr.bf16.mxu0 0
      %542 = vmatpush2.bf16.msra.mxu0 0
      %543 = vmatprep.mubr.bf16.mxu0 0
      %544 = vmatmul.mubr.bf16.gmra.mxu0 %v323
      %v545 = vpop.f32.mrf.mxu0
      %v546 = vadd.f32 %v506, %v545
      %v547 = vpop.f32.mrf.mxu0
      %v548 = vpop.f32.mrf.mxu0
      %v549 = vpop.f32.mrf.mxu0
      %550 = vdwg.mxu0
      %v551 = vadd.f32 %v265, %v546
      %552 = vst [vmem:[#allocation2] sm:$0xff] %v551
      %p553 = scmp.eq.s32.totalorder %s21, 1
      // Predicated region
      $region37: #{_lambda_.17} parent=31 // pred_check
        %p554 = pneg %p553
      $region38: #{_lambda_.17} parent=31 // pred_check_branch
        %556 = sbr.rel (%p554) target = $region40
      $region39: #{_lambda_.17} parent=31 // pred_region
        %v557 = vld [vmem:[#allocation2] sm:$0xff]
        %v558 = vld [vmem:[%s251] sm:$0x1]
        %v560 = vlaneseq
        %v561 = vshrl.u32 %v560, 7
        %v562 = vsub.s32 0, %v561
        %v563 = vrot.slane %v558, %v562
        %v565 = vadd.f32 %v557, %v563
        %566 = vst [vmem:[%s258] sm:$0xff] %v565
      $region40: #{_lambda_.17} parent=31 // pred_fallthru
        _
      %p567 = scmp.lt.s32.totalorder %s19, 0
      %s568 = scalar_select %p567, %s19, 0
      %p569 = scmp.lt.s32.totalorder %s20, 0
      %s570 = scalar_select %p569, %s20, 0
      %s571 = sadd.s32 %s570, %s568
      %s572 = smul.addr %s571, 8
      %s573 = scalar_lea.vmem %s3, %s572
      // Predicated region
      $region41: #{_lambda_.17} parent=31 // pred_check
        %p574 = pneg %p135
      $region42: #{_lambda_.17} parent=31 // pred_check_branch
        %576 = sbr.rel (%p574) target = $region44
      $region43: #{_lambda_.17} parent=31 // pred_region
        _
      $region44: #{_lambda_.17} parent=31 // pred_fallthru
        _
      // Predicated region
      $region45: #{_lambda_.17} parent=31 // pred_check
        %p577 = pneg %p135
      $region46: #{_lambda_.17} parent=31 // pred_check_branch
        %579 = sbr.rel (%p577) target = $region48
      $region47: #{_lambda_.17} parent=31 // pred_region
        %p580 = scmp.lt.s32.totalorder %s19, 0
        %s581 = scalar_select %p580, %s19, 0
        %p582 = scmp.lt.s32.totalorder %s20, 0
        %s583 = scalar_select %p582, %s20, 0
        %s584 = sadd.s32 %s583, %s581
        %s585 = smul.addr %s584, 8
        %s586 = scalar_lea.vmem %s3, %s585
      $region48: #{_lambda_.17} parent=31 // pred_fallthru
        _
    $region32: #{_lambda_.17} parent=5 // pred_fallthru
      _
    %p587 = scmp.le.s32.totalorder 2, %s9
    // Predicated region
    $region49: #{_lambda_.17} parent=5 // pred_check
      %p588 = pneg %p587
    $region50: #{_lambda_.17} parent=5 // pred_check_branch
      %590 = sbr.rel (%p588) target = $region52
    $region51: #{_lambda_.17} parent=5 // pred_region
      %s591 = ssub.s32 %s9, 2
    $region52: #{_lambda_.17} parent=5 // pred_fallthru
      _
  $region6: #{_lambda_.17} parent=0 // loop_footer
    %s13 = sadd.s32 1, %s9
  $region7: #{_lambda_.17} parent=0 // loop_footer_branch
    %8 = sbr.rel target = $region3
  $region8: #{_lambda_.17} parent=0 // loop_exit
    _

// kernel: _lambda_.18
$region0: #{_lambda_.18}
  #allocation0 [shape = 'u32[]', space=smem, size = 0x4, offset = 0x4, fixed_abs, tag = 'smem constant byte address 0x4 - core index']
  #allocation1 [shape = 'u32[144,128]{1,0:T(1,128)}', space=vmem, size = 0x12000, scoped, tag = 'internal scratch']
  %s0 = inlined_call_operand.vmem [shape: f32[16,64], index: 0, kind: input, shape index: {}]
  %s1 = inlined_call_operand.vmem [shape: f32[1,64], index: 1, kind: input, shape index: {}]
  %s2 = inlined_call_operand.vmem [shape: f32[1,64], index: 2, kind: input, shape index: {}]
  %s3 = inlined_call_operand.vmem [shape: bf16[16,64], index: 3, kind: output, shape index: {}]
  %s4 = sld [smem:[#allocation0]]
  $region22: #{_lambda_.18} parent=0
    _
  %s6 = ssub.s32 1, %s4
  %s7 = scalar_select 0, %s6, %s4
  // Predicated region
  $region2: #{_lambda_.18} parent=0 // pred_check
    _
  $region3: #{_lambda_.18} parent=0 // pred_check_branch
    %9 = sbr.rel (0) target = $region5
  $region4: #{_lambda_.18} parent=0 // pred_region
    _
  $region5: #{_lambda_.18} parent=0 // pred_fallthru
    _
  // Predicated region
  $region6: #{_lambda_.18} parent=0 // pred_check
    _
  $region7: #{_lambda_.18} parent=0 // pred_check_branch
    %11 = sbr.rel (0) target = $region9
  $region8: #{_lambda_.18} parent=0 // pred_region
    _
  $region9: #{_lambda_.18} parent=0 // pred_fallthru
    _
  // Predicated region
  $region10: #{_lambda_.18} parent=0 // pred_check
    _
  $region11: #{_lambda_.18} parent=0 // pred_check_branch
    %13 = sbr.rel (0) target = $region13
  $region12: #{_lambda_.18} parent=0 // pred_region
    _
  $region13: #{_lambda_.18} parent=0 // pred_fallthru
    _
  %v14 = vld [vmem:[%s0] sm:$0xff]
  %v15 = vld [vmem:[%s0 + $0x8] sm:$0xff]
  %vm16 = vcmask 523264
  %v17 = vsel %vm16, %v14, 0.0
  %18 = vadd.xlane.f32.xlu0 %v17
  %v19 = vpop.xlane.xlu0 %18
  %v20 = vsel %vm16, %v15, 0.0
  %21 = vadd.xlane.f32.xlu0 %v20
  %v22 = vpop.xlane.xlu0 %21
  %v23 = vrcp.pop 64.0
  %v24 = vmul.f32 %v19, %v23
  %v25 = vmul.f32 %v22, %v23
  %v26 = vsub.f32 %v14, %v24
  %v27 = vsub.f32 %v15, %v25
  %v28 = vmul.f32 %v26, %v26
  %v29 = vmul.f32 %v27, %v27
  %v30 = vsel %vm16, %v28, 0.0
  %31 = vadd.xlane.f32.xlu0 %v30
  %v32 = vpop.xlane.xlu0 %31
  %v33 = vsel %vm16, %v29, 0.0
  %34 = vadd.xlane.f32.xlu0 %v33
  %v35 = vpop.xlane.xlu0 %34
  %v36 = vmul.f32 %v32, %v23
  %v37 = vmul.f32 %v35, %v23
  %v38 = vadd.f32 %v36, 1e-06
  %v39 = vadd.f32 %v37, 1e-06
  %v40 = vrsqrt.pop %v38
  %v41 = vrsqrt.pop %v39
  %v42 = vmul.f32 %v26, %v40
  %v43 = vmul.f32 %v27, %v41
  %v44 = vld [vmem:[%s1] sm:$0x1]
  %v46 = vlaneseq
  %v47 = vshrl.u32 %v46, 7
  %v48 = vsub.s32 0, %v47
  %v49 = vrot.slane %v44, %v48
  %v51 = vmul.f32 %v42, %v49
  %v52 = vmul.f32 %v43, %v49
  %v53 = vld [vmem:[%s2] sm:$0x1]
  %v55 = vlaneseq
  %v56 = vshrl.u32 %v55, 7
  %v57 = vsub.s32 0, %v56
  %v58 = vrot.slane %v53, %v57
  %v60 = vadd.f32 %v51, %v58
  %v61 = vadd.f32 %v52, %v58
  %v62 = vpack.c.bf16 %v61, %v60
  %v64 = vunpack.c.l.b16 %v62
  %v65 = vunpack.c.h.b16 %v62
  %v66 = vpack.c.b16 %v64, %v64
  %v67 = vpack.c.b16 %v65, %v65
  %vm70 = vcmask 519168
  %71 = vst.msk [vmem:[%s3] sm:$0xf] %vm70, %v66
  %72 = vst.msk [vmem:[%s3 + $0x4] sm:$0xf] %vm70, %v67
  // Predicated region
  $region14: #{_lambda_.18} parent=0 // pred_check
    _
  $region15: #{_lambda_.18} parent=0 // pred_check_branch
    %74 = sbr.rel (0) target = $region17
  $region16: #{_lambda_.18} parent=0 // pred_region
    _
  $region17: #{_lambda_.18} parent=0 // pred_fallthru
    _
  // Predicated region
  $region18: #{_lambda_.18} parent=0 // pred_check
    _
  $region19: #{_lambda_.18} parent=0 // pred_check_branch
    %76 = sbr.rel (0) target = $region21
  $region20: #{_lambda_.18} parent=0 // pred_region
    _
  $region21: #{_lambda_.18} parent=0 // pred_fallthru
    _

// kernel: _lambda_.20
$region0: #{_lambda_.20}
  #allocation0 [shape = 'u32[]', space=smem, size = 0x4, offset = 0x4, fixed_abs, tag = 'smem constant byte address 0x4 - core index']
  #allocation1 [shape = 'u32[144,128]{1,0:T(1,128)}', space=vmem, size = 0x12000, scoped, tag = 'internal scratch']
  %s0 = inlined_call_operand.vmem [shape: bf16[2,4,8,16], index: 0, kind: input, shape index: {}]
  %s1 = inlined_call_operand.vmem [shape: bf16[2,4,8,16], index: 1, kind: input, shape index: {}]
  %s2 = inlined_call_operand.vmem [shape: bf16[2,4,8,16], index: 2, kind: input, shape index: {}]
  %s3 = inlined_call_operand.vmem [shape: bf16[2,4,8,16], index: 3, kind: output, shape index: {}]
  %s4 = sld [smem:[#allocation0]]
  $region45: #{_lambda_.20} parent=0
    _
  %s6 = ssub.s32 1, %s4
  %s7 = scalar_select 0, %s6, %s4
  loop: start=0, step=1, limit=4
  $region2: #{_lambda_.20} parent=0 // loop_pre_header
    _
  $region3: #{_lambda_.20} parent=0 // loop_header
    %s9 = sphi 0, %s13
    %p10 = scmp.ge.s32.totalorder %s9, 4
    %s19 = sphi 0, %s21
    %s22 = sphi 0, %s19
    %s23 = sphi 0, %s22
    %s39 = sphi 0, %s23
    %s45 = sphi 0, %s47
    %s48 = sphi 0, %s45
    %s49 = sphi 0, %s48
    %s65 = sphi 0, %s49
    %s71 = sphi 0, %s73
    %s74 = sphi 0, %s71
    %s75 = sphi 0, %s74
    %s91 = sphi 0, %s75
    %s97 = sphi 0, %s99
    %s100 = sphi 0, %s97
    %s101 = sphi 0, %s100
    %s117 = sphi 0, %s101
  $region4: #{_lambda_.20} parent=0 // loop_header_branch
    %12 = sbr.rel (%p10) target = $region8
  $region5: #{_lambda_.20} parent=0 // loop_body
    %s14 = ssub.s32 %s9, 1
    %s15 = ssub.s32 %s9, 2
    %s16 = sadd.s32 %s9, 1
    %s17 = ssub.s32 %s9, %s16
    %p18 = scmp.eq.s32.totalorder %s17, 0
    %s20 = sadd.s32 %s19, 1
    %s21 = scalar_select %p18, %s19, %s20
    %p24 = pneg %p18
    %p25 = scmp.eq.s32.totalorder %s9, 1
    %p26 = por %p24, %p25
    %p27 = scmp.ne.s32.totalorder %s19, %s22
    %p28 = scmp.eq.s32.totalorder %s9, 0
    %p29 = por %p27, %p28
    %p30 = scmp.ne.s32.totalorder %s19, %s22
    %p31 = scmp.eq.s32.totalorder %s14, 1
    %p32 = por %p30, %p31
    %p33 = scmp.ne.s32.totalorder %s22, %s23
    %p34 = scmp.eq.s32.totalorder %s14, 0
    %p35 = por %p33, %p34
    %p36 = scmp.ne.s32.totalorder %s22, %s23
    %p37 = scmp.eq.s32.totalorder %s15, 1
    %p38 = por %p36, %p37
    %p40 = scmp.ne.s32.totalorder %s23, %s39
    %p41 = scmp.eq.s32.totalorder %s15, 0
    %p42 = por %p40, %p41
    %s43 = ssub.s32 %s9, %s16
    %p44 = scmp.eq.s32.totalorder %s43, 0
    %s46 = sadd.s32 %s45, 1
    %s47 = scalar_select %p44, %s45, %s46
    %p50 = pneg %p44
    %p51 = scmp.eq.s32.totalorder %s9, 1
    %p52 = por %p50, %p51
    %p53 = scmp.ne.s32.totalorder %s45, %s48
    %p54 = scmp.eq.s32.totalorder %s9, 0
    %p55 = por %p53, %p54
    %p56 = scmp.ne.s32.totalorder %s45, %s48
    %p57 = scmp.eq.s32.totalorder %s14, 1
    %p58 = por %p56, %p57
    %p59 = scmp.ne.s32.totalorder %s48, %s49
    %p60 = scmp.eq.s32.totalorder %s14, 0
    %p61 = por %p59, %p60
    %p62 = scmp.ne.s32.totalorder %s48, %s49
    %p63 = scmp.eq.s32.totalorder %s15, 1
    %p64 = por %p62, %p63
    %p66 = scmp.ne.s32.totalorder %s49, %s65
    %p67 = scmp.eq.s32.totalorder %s15, 0
    %p68 = por %p66, %p67
    %s69 = ssub.s32 %s9, %s16
    %p70 = scmp.eq.s32.totalorder %s69, 0
    %s72 = sadd.s32 %s71, 1
    %s73 = scalar_select %p70, %s71, %s72
    %p76 = pneg %p70
    %p77 = scmp.eq.s32.totalorder %s9, 1
    %p78 = por %p76, %p77
    %p79 = scmp.ne.s32.totalorder %s71, %s74
    %p80 = scmp.eq.s32.totalorder %s9, 0
    %p81 = por %p79, %p80
    %p82 = scmp.ne.s32.totalorder %s71, %s74
    %p83 = scmp.eq.s32.totalorder %s14, 1
    %p84 = por %p82, %p83
    %p85 = scmp.ne.s32.totalorder %s74, %s75
    %p86 = scmp.eq.s32.totalorder %s14, 0
    %p87 = por %p85, %p86
    %p88 = scmp.ne.s32.totalorder %s74, %s75
    %p89 = scmp.eq.s32.totalorder %s15, 1
    %p90 = por %p88, %p89
    %p92 = scmp.ne.s32.totalorder %s75, %s91
    %p93 = scmp.eq.s32.totalorder %s15, 0
    %p94 = por %p92, %p93
    %s95 = ssub.s32 %s9, %s16
    %p96 = scmp.eq.s32.totalorder %s95, 0
    %s98 = sadd.s32 %s97, 1
    %s99 = scalar_select %p96, %s97, %s98
    %p102 = pneg %p96
    %p103 = scmp.eq.s32.totalorder %s9, 1
    %p104 = por %p102, %p103
    %p105 = scmp.ne.s32.totalorder %s97, %s100
    %p106 = scmp.eq.s32.totalorder %s9, 0
    %p107 = por %p105, %p106
    %p108 = scmp.ne.s32.totalorder %s97, %s100
    %p109 = scmp.eq.s32.totalorder %s14, 1
    %p110 = por %p108, %p109
    %p111 = scmp.ne.s32.totalorder %s100, %s101
    %p112 = scmp.eq.s32.totalorder %s14, 0
    %p113 = por %p111, %p112
    %p114 = scmp.ne.s32.totalorder %s100, %s101
    %p115 = scmp.eq.s32.totalorder %s15, 1
    %p116 = por %p114, %p115
    %p118 = scmp.ne.s32.totalorder %s101, %s117
    %p119 = scmp.eq.s32.totalorder %s15, 0
    %p120 = por %p118, %p119
    %p121 = scmp.le.s32.totalorder 1, %s9
    %p122 = scmp.lt.s32.totalorder %s9, 3
    %p123 = pnand %p121, %p122
    %p124 = pneg %p123
    // Predicated region
    $region9: #{_lambda_.20} parent=5 // pred_check
      _
    $region10: #{_lambda_.20} parent=5 // pred_check_branch
      %126 = sbr.rel (%p123) target = $region12
    $region11: #{_lambda_.20} parent=5 // pred_region
      %s127 = ssub.s32 %s9, 1
    $region12: #{_lambda_.20} parent=5 // pred_fallthru
      _
    %p128 = scmp.lt.s32.totalorder %s9, 2
    // Predicated region
    $region13: #{_lambda_.20} parent=5 // pred_check
      %p129 = pneg %p128
    $region14: #{_lambda_.20} parent=5 // pred_check_branch
      %131 = sbr.rel (%p129) target = $region16
    $region15: #{_lambda_.20} parent=5 // pred_region
      // Predicated region
      $region17: #{_lambda_.20} parent=15 // pred_check
        %p132 = pneg %p29
      $region18: #{_lambda_.20} parent=15 // pred_check_branch
        %134 = sbr.rel (%p132) target = $region20
      $region19: #{_lambda_.20} parent=15 // pred_region
        %p135 = scmp.lt.s32.totalorder %s9, 1
        %s136 = scalar_select %p135, %s9, 1
        %s137 = smul.addr %s136, 4
        %s138 = smul.addr %s137, 4
        %s139 = scalar_lea.vmem %s0, %s138
      $region20: #{_lambda_.20} parent=15 // pred_fallthru
        _
      // Predicated region
      $region21: #{_lambda_.20} parent=15 // pred_check
        %p140 = pneg %p55
      $region22: #{_lambda_.20} parent=15 // pred_check_branch
        %142 = sbr.rel (%p140) target = $region24
      $region23: #{_lambda_.20} parent=15 // pred_region
        %p143 = scmp.lt.s32.totalorder %s9, 1
        %s144 = scalar_select %p143, %s9, 1
        %s145 = smul.addr %s144, 4
        %s146 = smul.addr %s145, 4
        %s147 = scalar_lea.vmem %s1, %s146
      $region24: #{_lambda_.20} parent=15 // pred_fallthru
        _
      // Predicated region
      $region25: #{_lambda_.20} parent=15 // pred_check
        %p148 = pneg %p81
      $region26: #{_lambda_.20} parent=15 // pred_check_branch
        %150 = sbr.rel (%p148) target = $region28
      $region27: #{_lambda_.20} parent=15 // pred_region
        %p151 = scmp.lt.s32.totalorder %s9, 1
        %s152 = scalar_select %p151, %s9, 1
        %s153 = smul.addr %s152, 4
        %s154 = smul.addr %s153, 4
        %s155 = scalar_lea.vmem %s2, %s154
      $region28: #{_lambda_.20} parent=15 // pred_fallthru
        _
    $region16: #{_lambda_.20} parent=5 // pred_fallthru
      _
    %p156 = scmp.le.s32.totalorder 1, %s9
    %p157 = scmp.lt.s32.totalorder %s9, 3
    %p158 = pnand %p156, %p157
    %p159 = pneg %p158
    // Predicated region
    $region29: #{_lambda_.20} parent=5 // pred_check
      _
    $region30: #{_lambda_.20} parent=5 // pred_check_branch
      %161 = sbr.rel (%p158) target = $region32
    $region31: #{_lambda_.20} parent=5 // pred_region
      %s162 = ssub.s32 %s9, 1
      %p163 = scmp.lt.s32.totalorder %s14, 1
      %s164 = scalar_select %p163, %s14, 1
      %s165 = smul.addr %s164, 4
      %s166 = smul.addr %s165, 4
      %s167 = scalar_lea.vmem %s0, %s166
      %p168 = pneg %p35
      %p169 = pneg %p32
      %p170 = scmp.lt.s32.totalorder %s14, 1
      %s171 = scalar_select %p170, %s14, 1
      %s172 = smul.addr %s171, 4
      %s173 = smul.addr %s172, 4
      %s174 = scalar_lea.vmem %s1, %s173
      %p175 = pneg %p61
      %p176 = pneg %p58
      %p177 = scmp.lt.s32.totalorder %s14, 1
      %s178 = scalar_select %p177, %s14, 1
      %s179 = smul.addr %s178, 4
      %s180 = smul.addr %s179, 4
      %s181 = scalar_lea.vmem %s2, %s180
      %p182 = pneg %p87
      %p183 = pneg %p84
      %p184 = pneg %p113
      %p185 = pneg %p110
      %p186 = scmp.lt.s32.totalorder %s14, 1
      %s187 = scalar_select %p186, %s14, 1
      %s188 = smul.addr %s187, 4
      %s189 = smul.addr %s188, 4
      %s190 = scalar_lea.vmem %s3, %s189
      %p191 = scmp.lt.s32.totalorder %s14, 1
      %s192 = scalar_select %p191, %s14, 1
      %s193 = smul.addr %s192, 4
      %s194 = smul.addr %s193, 4
      %s195 = scalar_lea.vmem %s0, %s194
      %p196 = scmp.lt.s32.totalorder %s14, 1
      %s197 = scalar_select %p196, %s14, 1
      %s198 = smul.addr %s197, 4
      %s199 = smul.addr %s198, 4
      %s200 = scalar_lea.vmem %s1, %s199
      %p201 = scmp.lt.s32.totalorder %s14, 1
      %s202 = scalar_select %p201, %s14, 1
      %s203 = smul.addr %s202, 4
      %s204 = smul.addr %s203, 4
      %s205 = scalar_lea.vmem %s2, %s204
      %p206 = scmp.lt.s32.totalorder %s14, 1
      %s207 = scalar_select %p206, %s14, 1
      %s208 = smul.addr %s207, 4
      %s209 = smul.addr %s208, 4
      %s210 = scalar_lea.vmem %s3, %s209
      %v212 = vld [vmem:[%s195] sm:$0xf]
      %v213 = vld [vmem:[%s195 + $0x4] sm:$0xf]
      %v214 = vld [vmem:[%s195 + $0x8] sm:$0xf]
      %v215 = vld [vmem:[%s195 + $0xc] sm:$0xf]
      %v216 = vld [vmem:[%s200] sm:$0xf]
      %v217 = vld [vmem:[%s200 + $0x4] sm:$0xf]
      %v218 = vld [vmem:[%s200 + $0x8] sm:$0xf]
      %v219 = vld [vmem:[%s200 + $0xc] sm:$0xf]
      %v220 = vld [vmem:[%s205] sm:$0xf]
      %v221 = vld [vmem:[%s205 + $0x4] sm:$0xf]
      %v222 = vld [vmem:[%s205 + $0x8] sm:$0xf]
      %v223 = vld [vmem:[%s205 + $0xc] sm:$0xf]
      %vm224 = vcmask 130048
      %v226 = vsel %vm224, %v212, 0
      %v229 = vsel %vm224, %v216, 0
      %231 = vmatprep.subr.bf16.mxu0 0
      %232 = vmatpush1.bf16.xpose.msra.mxu0 0
      %233 = vmatprep.subr.bf16.mxu0 0
      %234 = vmatpush1.bf16.xpose.msra.mxu0 0
      %235 = vmatprep.subr.bf16.mxu0 0
      %236 = vmatpush1.bf16.xpose.msra.mxu0 0
      %237 = vmatprep.subr.bf16.mxu0 0
      %238 = vmatpush1.bf16.xpose.msra.mxu0 0
      %239 = vmatprep.subr.bf16.mxu0 0
      %240 = vmatpush1.bf16.xpose.msra.mxu0 0
      %241 = vmatprep.subr.bf16.mxu0 0
      %242 = vmatpush1.bf16.xpose.msra.mxu0 0
      %243 = vmatprep.subr.bf16.mxu0 0
      %244 = vmatpush1.bf16.xpose.msra.mxu0 0
      %245 = vmatprep.subr.bf16.mxu0 0
      %246 = vmatpush1.bf16.xpose.msra.mxu0 %v229
      %247 = vmatprep.subr.bf16.mxu0 0
      %248 = vmatpush2.bf16.xpose.msra.mxu0 0
      %249 = vmatprep.subr.bf16.mxu0 0
      %250 = vmatpush2.bf16.xpose.msra.mxu0 0
      %251 = vmatprep.subr.bf16.mxu0 0
      %252 = vmatpush2.bf16.xpose.msra.mxu0 0
      %253 = vmatprep.subr.bf16.mxu0 0
      %254 = vmatpush2.bf16.xpose.msra.mxu0 0
      %255 = vmatprep.subr.bf16.mxu0 0
      %256 = vmatpush2.bf16.xpose.msra.mxu0 0
      %257 = vmatprep.subr.bf16.mxu0 0
      %258 = vmatpush2.bf16.xpose.msra.mxu0 0
      %259 = vmatprep.subr.bf16.mxu0 0
      %260 = vmatpush2.bf16.xpose.msra.mxu0 0
      %261 = vmatprep.subr.bf16.mxu0 0
      %262 = vmatpush2.bf16.xpose.msra.mxu0 0
      %263 = vmatprep.mubr.bf16.mxu0 0
      %264 = vmatmul.mubr.bf16.gmra.mxu0 %v226
      %v265 = vpop.f32.mrf.mxu0
      %v266 = vadd.f32 0.0, %v265
      %v267 = vpop.f32.mrf.mxu0
      %v268 = vpop.f32.mrf.mxu0
      %v269 = vpop.f32.mrf.mxu0
      %270 = vdwg.mxu0
      %v272 = vsel %vm224, %v213, 0
      %v275 = vsel %vm224, %v217, 0
      %277 = vmatprep.subr.bf16.mxu0 0
      %278 = vmatpush1.bf16.xpose.msra.mxu0 0
      %279 = vmatprep.subr.bf16.mxu0 0
      %280 = vmatpush1.bf16.xpose.msra.mxu0 0
      %281 = vmatprep.subr.bf16.mxu0 0
      %282 = vmatpush1.bf16.xpose.msra.mxu0 0
      %283 = vmatprep.subr.bf16.mxu0 0
      %284 = vmatpush1.bf16.xpose.msra.mxu0 0
      %285 = vmatprep.subr.bf16.mxu0 0
      %286 = vmatpush1.bf16.xpose.msra.mxu0 0
      %287 = vmatprep.subr.bf16.mxu0 0
      %288 = vmatpush1.bf16.xpose.msra.mxu0 0
      %289 = vmatprep.subr.bf16.mxu0 0
      %290 = vmatpush1.bf16.xpose.msra.mxu0 0
      %291 = vmatprep.subr.bf16.mxu0 0
      %292 = vmatpush1.bf16.xpose.msra.mxu0 %v275
      %293 = vmatprep.subr.bf16.mxu0 0
      %294 = vmatpush2.bf16.xpose.msra.mxu0 0
      %295 = vmatprep.subr.bf16.mxu0 0
      %296 = vmatpush2.bf16.xpose.msra.mxu0 0
      %297 = vmatprep.subr.bf16.mxu0 0
      %298 = vmatpush2.bf16.xpose.msra.mxu0 0
      %299 = vmatprep.subr.bf16.mxu0 0
      %300 = vmatpush2.bf16.xpose.msra.mxu0 0
      %301 = vmatprep.subr.bf16.mxu0 0
      %302 = vmatpush2.bf16.xpose.msra.mxu0 0
      %303 = vmatprep.subr.bf16.mxu0 0
      %304 = vmatpush2.bf16.xpose.msra.mxu0 0
      %305 = vmatprep.subr.bf16.mxu0 0
      %306 = vmatpush2.bf16.xpose.msra.mxu0 0
      %307 = vmatprep.subr.bf16.mxu0 0
      %308 = vmatpush2.bf16.xpose.msra.mxu0 0
      %309 = vmatprep.mubr.bf16.mxu0 0
      %310 = vmatmul.mubr.bf16.gmra.mxu0 %v272
      %v311 = vpop.f32.mrf.mxu0
      %v312 = vadd.f32 0.0, %v311
      %v313 = vpop.f32.mrf.mxu0
      %v314 = vpop.f32.mrf.mxu0
      %v315 = vpop.f32.mrf.mxu0
      %316 = vdwg.mxu0
      %v318 = vsel %vm224, %v214, 0
      %v321 = vsel %vm224, %v218, 0
      %323 = vmatprep.subr.bf16.mxu0 0
      %324 = vmatpush1.bf16.xpose.msra.mxu0 0
      %325 = vmatprep.subr.bf16.mxu0 0
      %326 = vmatpush1.bf16.xpose.msra.mxu0 0
      %327 = vmatprep.subr.bf16.mxu0 0
      %328 = vmatpush1.bf16.xpose.msra.mxu0 0
      %329 = vmatprep.subr.bf16.mxu0 0
      %330 = vmatpush1.bf16.xpose.msra.mxu0 0
      %331 = vmatprep.subr.bf16.mxu0 0
      %332 = vmatpush1.bf16.xpose.msra.mxu0 0
      %333 = vmatprep.subr.bf16.mxu0 0
      %334 = vmatpush1.bf16.xpose.msra.mxu0 0
      %335 = vmatprep.subr.bf16.mxu0 0
      %336 = vmatpush1.bf16.xpose.msra.mxu0 0
      %337 = vmatprep.subr.bf16.mxu0 0
      %338 = vmatpush1.bf16.xpose.msra.mxu0 %v321
      %339 = vmatprep.subr.bf16.mxu0 0
      %340 = vmatpush2.bf16.xpose.msra.mxu0 0
      %341 = vmatprep.subr.bf16.mxu0 0
      %342 = vmatpush2.bf16.xpose.msra.mxu0 0
      %343 = vmatprep.subr.bf16.mxu0 0
      %344 = vmatpush2.bf16.xpose.msra.mxu0 0
      %345 = vmatprep.subr.bf16.mxu0 0
      %346 = vmatpush2.bf16.xpose.msra.mxu0 0
      %347 = vmatprep.subr.bf16.mxu0 0
      %348 = vmatpush2.bf16.xpose.msra.mxu0 0
      %349 = vmatprep.subr.bf16.mxu0 0
      %350 = vmatpush2.bf16.xpose.msra.mxu0 0
      %351 = vmatprep.subr.bf16.mxu0 0
      %352 = vmatpush2.bf16.xpose.msra.mxu0 0
      %353 = vmatprep.subr.bf16.mxu0 0
      %354 = vmatpush2.bf16.xpose.msra.mxu0 0
      %355 = vmatprep.mubr.bf16.mxu0 0
      %356 = vmatmul.mubr.bf16.gmra.mxu0 %v318
      %v357 = vpop.f32.mrf.mxu0
      %v358 = vadd.f32 0.0, %v357
      %v359 = vpop.f32.mrf.mxu0
      %v360 = vpop.f32.mrf.mxu0
      %v361 = vpop.f32.mrf.mxu0
      %362 = vdwg.mxu0
      %v364 = vsel %vm224, %v215, 0
      %v367 = vsel %vm224, %v219, 0
      %369 = vmatprep.subr.bf16.mxu0 0
      %370 = vmatpush1.bf16.xpose.msra.mxu0 0
      %371 = vmatprep.subr.bf16.mxu0 0
      %372 = vmatpush1.bf16.xpose.msra.mxu0 0
      %373 = vmatprep.subr.bf16.mxu0 0
      %374 = vmatpush1.bf16.xpose.msra.mxu0 0
      %375 = vmatprep.subr.bf16.mxu0 0
      %376 = vmatpush1.bf16.xpose.msra.mxu0 0
      %377 = vmatprep.subr.bf16.mxu0 0
      %378 = vmatpush1.bf16.xpose.msra.mxu0 0
      %379 = vmatprep.subr.bf16.mxu0 0
      %380 = vmatpush1.bf16.xpose.msra.mxu0 0
      %381 = vmatprep.subr.bf16.mxu0 0
      %382 = vmatpush1.bf16.xpose.msra.mxu0 0
      %383 = vmatprep.subr.bf16.mxu0 0
      %384 = vmatpush1.bf16.xpose.msra.mxu0 %v367
      %385 = vmatprep.subr.bf16.mxu0 0
      %386 = vmatpush2.bf16.xpose.msra.mxu0 0
      %387 = vmatprep.subr.bf16.mxu0 0
      %388 = vmatpush2.bf16.xpose.msra.mxu0 0
      %389 = vmatprep.subr.bf16.mxu0 0
      %390 = vmatpush2.bf16.xpose.msra.mxu0 0
      %391 = vmatprep.subr.bf16.mxu0 0
      %392 = vmatpush2.bf16.xpose.msra.mxu0 0
      %393 = vmatprep.subr.bf16.mxu0 0
      %394 = vmatpush2.bf16.xpose.msra.mxu0 0
      %395 = vmatprep.subr.bf16.mxu0 0
      %396 = vmatpush2.bf16.xpose.msra.mxu0 0
      %397 = vmatprep.subr.bf16.mxu0 0
      %398 = vmatpush2.bf16.xpose.msra.mxu0 0
      %399 = vmatprep.subr.bf16.mxu0 0
      %400 = vmatpush2.bf16.xpose.msra.mxu0 0
      %401 = vmatprep.mubr.bf16.mxu0 0
      %402 = vmatmul.mubr.bf16.gmra.mxu0 %v364
      %v403 = vpop.f32.mrf.mxu0
      %v404 = vadd.f32 0.0, %v403
      %v405 = vpop.f32.mrf.mxu0
      %v406 = vpop.f32.mrf.mxu0
      %v407 = vpop.f32.mrf.mxu0
      %408 = vdwg.mxu0
      %v409 = vmul.f32 %v266, 0.25
      %v410 = vmul.f32 %v312, 0.25
      %v411 = vmul.f32 %v358, 0.25
      %v412 = vmul.f32 %v404, 0.25
      %v413 = vlaneseq
      %v414 = vand.u32 %v413, 127
      %vm415 = vcmp.lt.s32.totalorder %v414, 5
      %v416 = vsel %vm415, %v409, -1e+30
      %v417 = vsel %vm415, %v410, -1e+30
      %v418 = vsel %vm415, %v411, -1e+30
      %v419 = vsel %vm415, %v412, -1e+30
      %vm420 = vcmask 64512
      %v421 = vsel %vm420, %v416, -inf
      %422 = vmax.xlane.f32.xlu0 %v421
      %v423 = vpop.xlane.xlu0 %422
      %v424 = vsel %vm420, %v417, -inf
      %425 = vmax.xlane.f32.xlu0 %v424
      %v426 = vpop.xlane.xlu0 %425
      %v427 = vsel %vm420, %v418, -inf
      %428 = vmax.xlane.f32.xlu0 %v427
      %v429 = vpop.xlane.xlu0 %428
      %v430 = vsel %vm420, %v419, -inf
      %431 = vmax.xlane.f32.xlu0 %v430
      %v432 = vpop.xlane.xlu0 %431
      %v433 = vsub.f32 %v416, %v423
      %v434 = vsub.f32 %v417, %v426
      %v435 = vsub.f32 %v418, %v429
      %v436 = vsub.f32 %v419, %v432
      %v437 = vmul.f32 %v433, 1.442695
      %v438 = vpow.pop %v437
      %v439 = vmul.f32 %v434, 1.442695
      %v440 = vpow.pop %v439
      %v441 = vmul.f32 %v435, 1.442695
      %v442 = vpow.pop %v441
      %v443 = vmul.f32 %v436, 1.442695
      %v444 = vpow.pop %v443
      %v445 = vsel %vm420, %v438, 0.0
      %446 = vadd.xlane.f32.xlu0 %v445
      %v447 = vpop.xlane.xlu0 %446
      %v448 = vsel %vm420, %v440, 0.0
      %449 = vadd.xlane.f32.xlu0 %v448
      %v450 = vpop.xlane.xlu0 %449
      %v451 = vsel %vm420, %v442, 0.0
      %452 = vadd.xlane.f32.xlu0 %v451
      %v453 = vpop.xlane.xlu0 %452
      %v454 = vsel %vm420, %v444, 0.0
      %455 = vadd.xlane.f32.xlu0 %v454
      %v456 = vpop.xlane.xlu0 %455
      %v457 = vpack.c.bf16 %v438, %v438
      %v458 = vpack.c.bf16 %v440, %v440
      %v459 = vpack.c.bf16 %v442, %v442
      %v460 = vpack.c.bf16 %v444, %v444
      %v462 = vsel %vm420, %v457, 0
      %vm464 = vcmask 1043456
      %v466 = vsel %vm464, %v220, 0
      %468 = vmatprep.subr.bf16.mxu0 0
      %469 = vmatpush1.bf16.msra.mxu0 0
      %470 = vmatprep.subr.bf16.mxu0 0
      %471 = vmatpush1.bf16.msra.mxu0 0
      %472 = vmatprep.subr.bf16.mxu0 0
      %473 = vmatpush1.bf16.msra.mxu0 0
      %474 = vmatprep.subr.bf16.mxu0 0
      %475 = vmatpush1.bf16.msra.mxu0 0
      %476 = vmatprep.subr.bf16.mxu0 0
      %477 = vmatpush1.bf16.msra.mxu0 0
      %478 = vmatprep.subr.bf16.mxu0 0
      %479 = vmatpush1.bf16.msra.mxu0 0
      %480 = vmatprep.subr.bf16.mxu0 0
      %481 = vmatpush1.bf16.msra.mxu0 0
      %482 = vmatprep.subr.bf16.mxu0 0
      %483 = vmatpush1.bf16.msra.mxu0 %v466
      %484 = vmatprep.subr.bf16.mxu0 0
      %485 = vmatpush2.bf16.msra.mxu0 0
      %486 = vmatprep.subr.bf16.mxu0 0
      %487 = vmatpush2.bf16.msra.mxu0 0
      %488 = vmatprep.subr.bf16.mxu0 0
      %489 = vmatpush2.bf16.msra.mxu0 0
      %490 = vmatprep.subr.bf16.mxu0 0
      %491 = vmatpush2.bf16.msra.mxu0 0
      %492 = vmatprep.subr.bf16.mxu0 0
      %493 = vmatpush2.bf16.msra.mxu0 0
      %494 = vmatprep.subr.bf16.mxu0 0
      %495 = vmatpush2.bf16.msra.mxu0 0
      %496 = vmatprep.subr.bf16.mxu0 0
      %497 = vmatpush2.bf16.msra.mxu0 0
      %498 = vmatprep.subr.bf16.mxu0 0
      %499 = vmatpush2.bf16.msra.mxu0 0
      %500 = vmatprep.mubr.bf16.mxu0 0
      %501 = vmatmul.mubr.bf16.gmra.mxu0 %v462
      %v502 = vpop.f32.mrf.mxu0
      %v503 = vadd.f32 0.0, %v502
      %v504 = vpop.f32.mrf.mxu0
      %v505 = vpop.f32.mrf.mxu0
      %v506 = vpop.f32.mrf.mxu0
      %507 = vdwg.mxu0
      %v509 = vsel %vm420, %v458, 0
      %v512 = vsel %vm464, %v221, 0
      %514 = vmatprep.subr.bf16.mxu0 0
      %515 = vmatpush1.bf16.msra.mxu0 0
      %516 = vmatprep.subr.bf16.mxu0 0
      %517 = vmatpush1.bf16.msra.mxu0 0
      %518 = vmatprep.subr.bf16.mxu0 0
      %519 = vmatpush1.bf16.msra.mxu0 0
      %520 = vmatprep.subr.bf16.mxu0 0
      %521 = vmatpush1.bf16.msra.mxu0 0
      %522 = vmatprep.subr.bf16.mxu0 0
      %523 = vmatpush1.bf16.msra.mxu0 0
      %524 = vmatprep.subr.bf16.mxu0 0
      %525 = vmatpush1.bf16.msra.mxu0 0
      %526 = vmatprep.subr.bf16.mxu0 0
      %527 = vmatpush1.bf16.msra.mxu0 0
      %528 = vmatprep.subr.bf16.mxu0 0
      %529 = vmatpush1.bf16.msra.mxu0 %v512
      %530 = vmatprep.subr.bf16.mxu0 0
      %531 = vmatpush2.bf16.msra.mxu0 0
      %532 = vmatprep.subr.bf16.mxu0 0
      %533 = vmatpush2.bf16.msra.mxu0 0
      %534 = vmatprep.subr.bf16.mxu0 0
      %535 = vmatpush2.bf16.msra.mxu0 0
      %536 = vmatprep.subr.bf16.mxu0 0
      %537 = vmatpush2.bf16.msra.mxu0 0
      %538 = vmatprep.subr.bf16.mxu0 0
      %539 = vmatpush2.bf16.msra.mxu0 0
      %540 = vmatprep.subr.bf16.mxu0 0
      %541 = vmatpush2.bf16.msra.mxu0 0
      %542 = vmatprep.subr.bf16.mxu0 0
      %543 = vmatpush2.bf16.msra.mxu0 0
      %544 = vmatprep.subr.bf16.mxu0 0
      %545 = vmatpush2.bf16.msra.mxu0 0
      %546 = vmatprep.mubr.bf16.mxu0 0
      %547 = vmatmul.mubr.bf16.gmra.mxu0 %v509
      %v548 = vpop.f32.mrf.mxu0
      %v549 = vadd.f32 0.0, %v548
      %v550 = vpop.f32.mrf.mxu0
      %v551 = vpop.f32.mrf.mxu0
      %v552 = vpop.f32.mrf.mxu0
      %553 = vdwg.mxu0
      %v555 = vsel %vm420, %v459, 0
      %v558 = vsel %vm464, %v222, 0
      %560 = vmatprep.subr.bf16.mxu0 0
      %561 = vmatpush1.bf16.msra.mxu0 0
      %562 = vmatprep.subr.bf16.mxu0 0
      %563 = vmatpush1.bf16.msra.mxu0 0
      %564 = vmatprep.subr.bf16.mxu0 0
      %565 = vmatpush1.bf16.msra.mxu0 0
      %566 = vmatprep.subr.bf16.mxu0 0
      %567 = vmatpush1.bf16.msra.mxu0 0
      %568 = vmatprep.subr.bf16.mxu0 0
      %569 = vmatpush1.bf16.msra.mxu0 0
      %570 = vmatprep.subr.bf16.mxu0 0
      %571 = vmatpush1.bf16.msra.mxu0 0
      %572 = vmatprep.subr.bf16.mxu0 0
      %573 = vmatpush1.bf16.msra.mxu0 0
      %574 = vmatprep.subr.bf16.mxu0 0
      %575 = vmatpush1.bf16.msra.mxu0 %v558
      %576 = vmatprep.subr.bf16.mxu0 0
      %577 = vmatpush2.bf16.msra.mxu0 0
      %578 = vmatprep.subr.bf16.mxu0 0
      %579 = vmatpush2.bf16.msra.mxu0 0
      %580 = vmatprep.subr.bf16.mxu0 0
      %581 = vmatpush2.bf16.msra.mxu0 0
      %582 = vmatprep.subr.bf16.mxu0 0
      %583 = vmatpush2.bf16.msra.mxu0 0
      %584 = vmatprep.subr.bf16.mxu0 0
      %585 = vmatpush2.bf16.msra.mxu0 0
      %586 = vmatprep.subr.bf16.mxu0 0
      %587 = vmatpush2.bf16.msra.mxu0 0
      %588 = vmatprep.subr.bf16.mxu0 0
      %589 = vmatpush2.bf16.msra.mxu0 0
      %590 = vmatprep.subr.bf16.mxu0 0
      %591 = vmatpush2.bf16.msra.mxu0 0
      %592 = vmatprep.mubr.bf16.mxu0 0
      %593 = vmatmul.mubr.bf16.gmra.mxu0 %v555
      %v594 = vpop.f32.mrf.mxu0
      %v595 = vadd.f32 0.0, %v594
      %v596 = vpop.f32.mrf.mxu0
      %v597 = vpop.f32.mrf.mxu0
      %v598 = vpop.f32.mrf.mxu0
      %599 = vdwg.mxu0
      %v601 = vsel %vm420, %v460, 0
      %v604 = vsel %vm464, %v223, 0
      %606 = vmatprep.subr.bf16.mxu0 0
      %607 = vmatpush1.bf16.msra.mxu0 0
      %608 = vmatprep.subr.bf16.mxu0 0
      %609 = vmatpush1.bf16.msra.mxu0 0
      %610 = vmatprep.subr.bf16.mxu0 0
      %611 = vmatpush1.bf16.msra.mxu0 0
      %612 = vmatprep.subr.bf16.mxu0 0
      %613 = vmatpush1.bf16.msra.mxu0 0
      %614 = vmatprep.subr.bf16.mxu0 0
      %615 = vmatpush1.bf16.msra.mxu0 0
      %616 = vmatprep.subr.bf16.mxu0 0
      %617 = vmatpush1.bf16.msra.mxu0 0
      %618 = vmatprep.subr.bf16.mxu0 0
      %619 = vmatpush1.bf16.msra.mxu0 0
      %620 = vmatprep.subr.bf16.mxu0 0
      %621 = vmatpush1.bf16.msra.mxu0 %v604
      %622 = vmatprep.subr.bf16.mxu0 0
      %623 = vmatpush2.bf16.msra.mxu0 0
      %624 = vmatprep.subr.bf16.mxu0 0
      %625 = vmatpush2.bf16.msra.mxu0 0
      %626 = vmatprep.subr.bf16.mxu0 0
      %627 = vmatpush2.bf16.msra.mxu0 0
      %628 = vmatprep.subr.bf16.mxu0 0
      %629 = vmatpush2.bf16.msra.mxu0 0
      %630 = vmatprep.subr.bf16.mxu0 0
      %631 = vmatpush2.bf16.msra.mxu0 0
      %632 = vmatprep.subr.bf16.mxu0 0
      %633 = vmatpush2.bf16.msra.mxu0 0
      %634 = vmatprep.subr.bf16.mxu0 0
      %635 = vmatpush2.bf16.msra.mxu0 0
      %636 = vmatprep.subr.bf16.mxu0 0
      %637 = vmatpush2.bf16.msra.mxu0 0
      %638 = vmatprep.mubr.bf16.mxu0 0
      %639 = vmatmul.mubr.bf16.gmra.mxu0 %v601
      %v640 = vpop.f32.mrf.mxu0
      %v641 = vadd.f32 0.0, %v640
      %v642 = vpop.f32.mrf.mxu0
      %v643 = vpop.f32.mrf.mxu0
      %v644 = vpop.f32.mrf.mxu0
      %645 = vdwg.mxu0
      %v646 = vrcp.pop %v447
      %v647 = vrcp.pop %v450
      %v648 = vrcp.pop %v453
      %v649 = vrcp.pop %v456
      %v650 = vmul.f32 %v503, %v646
      %v651 = vmul.f32 %v549, %v647
      %v652 = vmul.f32 %v595, %v648
      %v653 = vmul.f32 %v641, %v649
      %v654 = vpack.c.bf16 %v650, %v650
      %v655 = vpack.c.bf16 %v651, %v651
      %v656 = vpack.c.bf16 %v652, %v652
      %v657 = vpack.c.bf16 %v653, %v653
      %vm658 = vcmask 125952
      %659 = vst.msk [vmem:[%s210] sm:$0xf] %vm658, %v654
      %660 = vst.msk [vmem:[%s210 + $0x4] sm:$0xf] %vm658, %v655
      %661 = vst.msk [vmem:[%s210 + $0x8] sm:$0xf] %vm658, %v656
      %662 = vst.msk [vmem:[%s210 + $0xc] sm:$0xf] %vm658, %v657
      %p663 = scmp.lt.s32.totalorder %s14, 1
      %s664 = scalar_select %p663, %s14, 1
      %s665 = smul.addr %s664, 4
      %s666 = smul.addr %s665, 4
      %s667 = scalar_lea.vmem %s3, %s666
      // Predicated region
      $region33: #{_lambda_.20} parent=31 // pred_check
        %p668 = pneg %p110
      $region34: #{_lambda_.20} parent=31 // pred_check_branch
        %670 = sbr.rel (%p668) target = $region36
      $region35: #{_lambda_.20} parent=31 // pred_region
        _
      $region36: #{_lambda_.20} parent=31 // pred_fallthru
        _
    $region32: #{_lambda_.20} parent=5 // pred_fallthru
      _
    %p671 = scmp.le.s32.totalorder 2, %s9
    // Predicated region
    $region37: #{_lambda_.20} parent=5 // pred_check
      %p672 = pneg %p671
    $region38: #{_lambda_.20} parent=5 // pred_check_branch
      %674 = sbr.rel (%p672) target = $region40
    $region39: #{_lambda_.20} parent=5 // pred_region
      %s675 = ssub.s32 %s9, 2
      // Predicated region
      $region41: #{_lambda_.20} parent=39 // pred_check
        %p676 = pneg %p116
      $region42: #{_lambda_.20} parent=39 // pred_check_branch
        %678 = sbr.rel (%p676) target = $region44
      $region43: #{_lambda_.20} parent=39 // pred_region
        %p679 = scmp.lt.s32.totalorder %s15, 1
        %s680 = scalar_select %p679, %s15, 1
        %s681 = smul.addr %s680, 4
        %s682 = smul.addr %s681, 4
        %s683 = scalar_lea.vmem %s3, %s682
      $region44: #{_lambda_.20} parent=39 // pred_fallthru
        _
    $region40: #{_lambda_.20} parent=5 // pred_fallthru
      _
  $region6: #{_lambda_.20} parent=0 // loop_footer
    %s13 = sadd.s32 1, %s9
  $region7: #{_lambda_.20} parent=0 // loop_footer_branch
    %8 = sbr.rel target = $region3
  $region8: #{_lambda_.20} parent=0 // loop_exit
    _

// kernel: _lambda_.21
$region0: #{_lambda_.21}
  #allocation0 [shape = 'u32[]', space=smem, size = 0x4, offset = 0x4, fixed_abs, tag = 'smem constant byte address 0x4 - core index']
  #allocation1 [shape = 'u32[144,128]{1,0:T(1,128)}', space=vmem, size = 0x12000, scoped, tag = 'internal scratch']
  #allocation2 [shape = 'f32[16,128]{1,0:T(8,128)}', space=vmem, size = 0x2000, scoped, tag = 'scratch operand']
  %s0 = inlined_call_operand.vmem [shape: bf16[16,128], index: 0, kind: input, shape index: {}]
  %s1 = inlined_call_operand.vmem [shape: bf16[128,128], index: 1, kind: input, shape index: {}]
  %s2 = inlined_call_operand.vmem [shape: f32[1,128], index: 2, kind: input, shape index: {}]
  %s3 = inlined_call_operand.vmem [shape: f32[16,128], index: 3, kind: input, shape index: {}]
  %s4 = inlined_call_operand.vmem [shape: f32[16,128], index: 4, kind: output, shape index: {}]
  %s5 = sld [smem:[#allocation0]]
  $region34: #{_lambda_.21} parent=0
    _
  %s7 = ssub.s32 1, %s5
  %s8 = scalar_select 0, %s7, %s5
  // Predicated region
  $region2: #{_lambda_.21} parent=0 // pred_check
    _
  $region3: #{_lambda_.21} parent=0 // pred_check_branch
    %10 = sbr.rel (0) target = $region5
  $region4: #{_lambda_.21} parent=0 // pred_region
    _
  $region5: #{_lambda_.21} parent=0 // pred_fallthru
    _
  // Predicated region
  $region6: #{_lambda_.21} parent=0 // pred_check
    _
  $region7: #{_lambda_.21} parent=0 // pred_check_branch
    %12 = sbr.rel (0) target = $region9
  $region8: #{_lambda_.21} parent=0 // pred_region
    _
  $region9: #{_lambda_.21} parent=0 // pred_fallthru
    _
  // Predicated region
  $region10: #{_lambda_.21} parent=0 // pred_check
    _
  $region11: #{_lambda_.21} parent=0 // pred_check_branch
    %14 = sbr.rel (0) target = $region13
  $region12: #{_lambda_.21} parent=0 // pred_region
    _
  $region13: #{_lambda_.21} parent=0 // pred_fallthru
    _
  // Predicated region
  $region14: #{_lambda_.21} parent=0 // pred_check
    _
  $region15: #{_lambda_.21} parent=0 // pred_check_branch
    %16 = sbr.rel (0) target = $region17
  $region16: #{_lambda_.21} parent=0 // pred_region
    _
  $region17: #{_lambda_.21} parent=0 // pred_fallthru
    _
  %p18 = scmp.eq.s32.totalorder 0, 0
  // Predicated region
  $region18: #{_lambda_.21} parent=0 // pred_check
    %p19 = pneg %p18
  $region19: #{_lambda_.21} parent=0 // pred_check_branch
    %21 = sbr.rel (%p19) target = $region21
  $region20: #{_lambda_.21} parent=0 // pred_region
    %22 = vst [vmem:[#allocation2] sm:$0xff] 0.0
    %23 = vst [vmem:[#allocation2 + $0x8] sm:$0xff] 0.0
  $region21: #{_lambda_.21} parent=0 // pred_fallthru
    _
  %v24 = vld [vmem:[#allocation2] sm:$0xff]
  %v25 = vld [vmem:[#allocation2 + $0x8] sm:$0xff]
  %v26 = vld [vmem:[%s0] sm:$0xf]
  %v27 = vld [vmem:[%s0 + $0x4] sm:$0xf]
  %v28 = vld [vmem:[%s1] sm:$0xf]
  %v29 = vld [vmem:[%s1 + $0x4] sm:$0xf]
  %v30 = vld [vmem:[%s1 + $0x8] sm:$0xf]
  %v31 = vld [vmem:[%s1 + $0xc] sm:$0xf]
  %v32 = vld [vmem:[%s1 + $0x10] sm:$0xf]
  %v33 = vld [vmem:[%s1 + $0x14] sm:$0xf]
  %v34 = vld [vmem:[%s1 + $0x18] sm:$0xf]
  %v35 = vld [vmem:[%s1 + $0x1c] sm:$0xf]
  %v36 = vld [vmem:[%s1 + $0x20] sm:$0xf]
  %v37 = vld [vmem:[%s1 + $0x24] sm:$0xf]
  %v38 = vld [vmem:[%s1 + $0x28] sm:$0xf]
  %v39 = vld [vmem:[%s1 + $0x2c] sm:$0xf]
  %v40 = vld [vmem:[%s1 + $0x30] sm:$0xf]
  %v41 = vld [vmem:[%s1 + $0x34] sm:$0xf]
  %v42 = vld [vmem:[%s1 + $0x38] sm:$0xf]
  %v43 = vld [vmem:[%s1 + $0x3c] sm:$0xf]
  %v46 = vunpack.c.l.b16 %v26
  %v47 = vunpack.c.l.b16 %v27
  %v48 = vpack.c.b16 %v47, %v46
  %v66 = vunpack.c.l.b16 %v28
  %v67 = vunpack.c.l.b16 %v29
  %v68 = vunpack.c.l.b16 %v30
  %v69 = vunpack.c.l.b16 %v31
  %v70 = vunpack.c.l.b16 %v32
  %v71 = vunpack.c.l.b16 %v33
  %v72 = vunpack.c.l.b16 %v34
  %v73 = vunpack.c.l.b16 %v35
  %v74 = vunpack.c.l.b16 %v36
  %v75 = vunpack.c.l.b16 %v37
  %v76 = vunpack.c.l.b16 %v38
  %v77 = vunpack.c.l.b16 %v39
  %v78 = vunpack.c.l.b16 %v40
  %v79 = vunpack.c.l.b16 %v41
  %v80 = vunpack.c.l.b16 %v42
  %v81 = vunpack.c.l.b16 %v43
  %v82 = vpack.c.b16 %v67, %v66
  %v83 = vpack.c.b16 %v69, %v68
  %v84 = vpack.c.b16 %v71, %v70
  %v85 = vpack.c.b16 %v73, %v72
  %v86 = vpack.c.b16 %v75, %v74
  %v87 = vpack.c.b16 %v77, %v76
  %v88 = vpack.c.b16 %v79, %v78
  %v89 = vpack.c.b16 %v81, %v80
  %98 = vmatprep.subr.bf16.mxu0 0
  %99 = vmatpush1.bf16.msra.mxu0 %v89
  %100 = vmatprep.subr.bf16.mxu0 0
  %101 = vmatpush1.bf16.msra.mxu0 %v88
  %102 = vmatprep.subr.bf16.mxu0 0
  %103 = vmatpush1.bf16.msra.mxu0 %v87
  %104 = vmatprep.subr.bf16.mxu0 0
  %105 = vmatpush1.bf16.msra.mxu0 %v86
  %106 = vmatprep.subr.bf16.mxu0 0
  %107 = vmatpush1.bf16.msra.mxu0 %v85
  %108 = vmatprep.subr.bf16.mxu0 0
  %109 = vmatpush1.bf16.msra.mxu0 %v84
  %110 = vmatprep.subr.bf16.mxu0 0
  %111 = vmatpush1.bf16.msra.mxu0 %v83
  %112 = vmatprep.subr.bf16.mxu0 0
  %113 = vmatpush1.bf16.msra.mxu0 %v82
  %114 = vmatprep.subr.bf16.mxu0 0
  %115 = vmatpush2.bf16.msra.mxu0 0
  %116 = vmatprep.subr.bf16.mxu0 0
  %117 = vmatpush2.bf16.msra.mxu0 0
  %118 = vmatprep.subr.bf16.mxu0 0
  %119 = vmatpush2.bf16.msra.mxu0 0
  %120 = vmatprep.subr.bf16.mxu0 0
  %121 = vmatpush2.bf16.msra.mxu0 0
  %122 = vmatprep.subr.bf16.mxu0 0
  %123 = vmatpush2.bf16.msra.mxu0 0
  %124 = vmatprep.subr.bf16.mxu0 0
  %125 = vmatpush2.bf16.msra.mxu0 0
  %126 = vmatprep.subr.bf16.mxu0 0
  %127 = vmatpush2.bf16.msra.mxu0 0
  %128 = vmatprep.subr.bf16.mxu0 0
  %129 = vmatpush2.bf16.msra.mxu0 0
  %130 = vmatprep.mubr.bf16.mxu0 0
  %131 = vmatmul.mubr.bf16.gmra.mxu0 %v48
  %v132 = vpop.f32.mrf.mxu0
  %v133 = vadd.f32 0.0, %v132
  %v134 = vpop.f32.mrf.mxu0
  %v135 = vpop.f32.mrf.mxu0
  %v136 = vadd.f32 0.0, %v135
  %v137 = vpop.f32.mrf.mxu0
  %138 = vdwg.mxu0
  %v139 = vadd.f32 %v24, %v133
  %v140 = vadd.f32 %v25, %v136
  %141 = vst [vmem:[#allocation2] sm:$0xff] %v139
  %142 = vst [vmem:[#allocation2 + $0x8] sm:$0xff] %v140
  // Predicated region
  $region22: #{_lambda_.21} parent=0 // pred_check
    %p143 = pneg %p18
  $region23: #{_lambda_.21} parent=0 // pred_check_branch
    %145 = sbr.rel (%p143) target = $region25
  $region24: #{_lambda_.21} parent=0 // pred_region
    %v146 = vld [vmem:[#allocation2] sm:$0xff]
    %v147 = vld [vmem:[#allocation2 + $0x8] sm:$0xff]
    %v148 = vld [vmem:[%s2] sm:$0x1]
    %v150 = vlaneseq
    %v151 = vshrl.u32 %v150, 7
    %v152 = vsub.s32 0, %v151
    %v153 = vrot.slane %v148, %v152
    %v155 = vadd.f32 %v146, %v153
    %v156 = vadd.f32 %v147, %v153
    %v157 = vld [vmem:[%s3] sm:$0xff]
    %v158 = vld [vmem:[%s3 + $0x8] sm:$0xff]
    %v159 = vadd.f32 %v155, %v157
    %v160 = vadd.f32 %v156, %v158
    %161 = vst [vmem:[%s4] sm:$0xff] %v159
    %162 = vst [vmem:[%s4 + $0x8] sm:$0xff] %v160
  $region25: #{_lambda_.21} parent=0 // pred_fallthru
    _
  // Predicated region
  $region26: #{_lambda_.21} parent=0 // pred_check
    _
  $region27: #{_lambda_.21} parent=0 // pred_check_branch
    %164 = sbr.rel (0) target = $region29
  $region28: #{_lambda_.21} parent=0 // pred_region
    _
  $region29: #{_lambda_.21} parent=0 // pred_fallthru
    _
  // Predicated region
  $region30: #{_lambda_.21} parent=0 // pred_check
    _
  $region31: #{_lambda_.21} parent=0 // pred_check_branch
    %166 = sbr.rel (0) target = $region33
  $region32: #{_lambda_.21} parent=0 // pred_region
    _
  $region33: #{_lambda_.21} parent=0 // pred_fallthru
    _

// kernel: _lambda_.23
$region0: #{_lambda_.23}
  #allocation0 [shape = 'u32[]', space=smem, size = 0x4, offset = 0x4, fixed_abs, tag = 'smem constant byte address 0x4 - core index']
  #allocation1 [shape = 'u32[144,128]{1,0:T(1,128)}', space=vmem, size = 0x12000, scoped, tag = 'internal scratch']
  #allocation2 [shape = 'f32[16,256]{1,0:T(8,128)}', space=vmem, size = 0x4000, scoped, tag = 'scratch operand']
  %s0 = inlined_call_operand.vmem [shape: bf16[16,128], index: 0, kind: input, shape index: {}]
  %s1 = inlined_call_operand.vmem [shape: bf16[128,256], index: 1, kind: input, shape index: {}]
  %s2 = inlined_call_operand.vmem [shape: f32[1,256], index: 2, kind: input, shape index: {}]
  %s3 = inlined_call_operand.vmem [shape: bf16[16,256], index: 3, kind: output, shape index: {}]
  %s4 = sld [smem:[#allocation0]]
  $region30: #{_lambda_.23} parent=0
    _
  %s6 = ssub.s32 1, %s4
  %s7 = scalar_select 0, %s6, %s4
  // Predicated region
  $region2: #{_lambda_.23} parent=0 // pred_check
    _
  $region3: #{_lambda_.23} parent=0 // pred_check_branch
    %9 = sbr.rel (0) target = $region5
  $region4: #{_lambda_.23} parent=0 // pred_region
    _
  $region5: #{_lambda_.23} parent=0 // pred_fallthru
    _
  // Predicated region
  $region6: #{_lambda_.23} parent=0 // pred_check
    _
  $region7: #{_lambda_.23} parent=0 // pred_check_branch
    %11 = sbr.rel (0) target = $region9
  $region8: #{_lambda_.23} parent=0 // pred_region
    _
  $region9: #{_lambda_.23} parent=0 // pred_fallthru
    _
  // Predicated region
  $region10: #{_lambda_.23} parent=0 // pred_check
    _
  $region11: #{_lambda_.23} parent=0 // pred_check_branch
    %13 = sbr.rel (0) target = $region13
  $region12: #{_lambda_.23} parent=0 // pred_region
    _
  $region13: #{_lambda_.23} parent=0 // pred_fallthru
    _
  %p15 = scmp.eq.s32.totalorder 0, 0
  // Predicated region
  $region14: #{_lambda_.23} parent=0 // pred_check
    %p16 = pneg %p15
  $region15: #{_lambda_.23} parent=0 // pred_check_branch
    %18 = sbr.rel (%p16) target = $region17
  $region16: #{_lambda_.23} parent=0 // pred_region
    %19 = vst [vmem:[#allocation2] sm:$0xff] 0.0
    %20 = vst [vmem:[#allocation2 + $0x8] sm:$0xff] 0.0
    %21 = vst [vmem:[#allocation2 + $0x10] sm:$0xff] 0.0
    %22 = vst [vmem:[#allocation2 + $0x18] sm:$0xff] 0.0
  $region17: #{_lambda_.23} parent=0 // pred_fallthru
    _
  %v23 = vld [vmem:[#allocation2] sm:$0xff]
  %v24 = vld [vmem:[#allocation2 + $0x8] sm:$0xff]
  %v25 = vld [vmem:[#allocation2 + $0x10] sm:$0xff]
  %v26 = vld [vmem:[#allocation2 + $0x18] sm:$0xff]
  %v27 = vld [vmem:[%s0] sm:$0xf]
  %v28 = vld [vmem:[%s0 + $0x4] sm:$0xf]
  %v29 = vld [vmem:[%s1] sm:$0xff]
  %v30 = vld [vmem:[%s1 + $0x8] sm:$0xff]
  %v31 = vld [vmem:[%s1 + $0x10] sm:$0xff]
  %v32 = vld [vmem:[%s1 + $0x18] sm:$0xff]
  %v33 = vld [vmem:[%s1 + $0x20] sm:$0xff]
  %v34 = vld [vmem:[%s1 + $0x28] sm:$0xff]
  %v35 = vld [vmem:[%s1 + $0x30] sm:$0xff]
  %v36 = vld [vmem:[%s1 + $0x38] sm:$0xff]
  %v37 = vld [vmem:[%s1 + $0x40] sm:$0xff]
  %v38 = vld [vmem:[%s1 + $0x48] sm:$0xff]
  %v39 = vld [vmem:[%s1 + $0x50] sm:$0xff]
  %v40 = vld [vmem:[%s1 + $0x58] sm:$0xff]
  %v41 = vld [vmem:[%s1 + $0x60] sm:$0xff]
  %v42 = vld [vmem:[%s1 + $0x68] sm:$0xff]
  %v43 = vld [vmem:[%s1 + $0x70] sm:$0xff]
  %v44 = vld [vmem:[%s1 + $0x78] sm:$0xff]
  %v47 = vunpack.c.l.b16 %v27
  %v48 = vunpack.c.l.b16 %v28
  %v49 = vpack.c.b16 %v48, %v47
  %v67 = vunpack.c.l.b16 %v29
  %v68 = vunpack.c.h.b16 %v29
  %v69 = vunpack.c.l.b16 %v30
  %v70 = vunpack.c.h.b16 %v30
  %v71 = vunpack.c.l.b16 %v31
  %v72 = vunpack.c.h.b16 %v31
  %v73 = vunpack.c.l.b16 %v32
  %v74 = vunpack.c.h.b16 %v32
  %v75 = vunpack.c.l.b16 %v33
  %v76 = vunpack.c.h.b16 %v33
  %v77 = vunpack.c.l.b16 %v34
  %v78 = vunpack.c.h.b16 %v34
  %v79 = vunpack.c.l.b16 %v35
  %v80 = vunpack.c.h.b16 %v35
  %v81 = vunpack.c.l.b16 %v36
  %v82 = vunpack.c.h.b16 %v36
  %v83 = vunpack.c.l.b16 %v37
  %v84 = vunpack.c.h.b16 %v37
  %v85 = vunpack.c.l.b16 %v38
  %v86 = vunpack.c.h.b16 %v38
  %v87 = vunpack.c.l.b16 %v39
  %v88 = vunpack.c.h.b16 %v39
  %v89 = vunpack.c.l.b16 %v40
  %v90 = vunpack.c.h.b16 %v40
  %v91 = vunpack.c.l.b16 %v41
  %v92 = vunpack.c.h.b16 %v41
  %v93 = vunpack.c.l.b16 %v42
  %v94 = vunpack.c.h.b16 %v42
  %v95 = vunpack.c.l.b16 %v43
  %v96 = vunpack.c.h.b16 %v43
  %v97 = vunpack.c.l.b16 %v44
  %v98 = vunpack.c.h.b16 %v44
  %v99 = vpack.c.b16 %v69, %v67
  %v100 = vpack.c.b16 %v70, %v68
  %v101 = vpack.c.b16 %v73, %v71
  %v102 = vpack.c.b16 %v74, %v72
  %v103 = vpack.c.b16 %v77, %v75
  %v104 = vpack.c.b16 %v78, %v76
  %v105 = vpack.c.b16 %v81, %v79
  %v106 = vpack.c.b16 %v82, %v80
  %v107 = vpack.c.b16 %v85, %v83
  %v108 = vpack.c.b16 %v86, %v84
  %v109 = vpack.c.b16 %v89, %v87
  %v110 = vpack.c.b16 %v90, %v88
  %v111 = vpack.c.b16 %v93, %v91
  %v112 = vpack.c.b16 %v94, %v92
  %v113 = vpack.c.b16 %v97, %v95
  %v114 = vpack.c.b16 %v98, %v96
  %131 = vmatprep.subr.bf16.mxu0 %v114
  %132 = vmatpush1.bf16.msra.mxu0 %v113
  %133 = vmatprep.subr.bf16.mxu0 %v112
  %134 = vmatpush1.bf16.msra.mxu0 %v111
  %135 = vmatprep.subr.bf16.mxu0 %v110
  %136 = vmatpush1.bf16.msra.mxu0 %v109
  %137 = vmatprep.subr.bf16.mxu0 %v108
  %138 = vmatpush1.bf16.msra.mxu0 %v107
  %139 = vmatprep.subr.bf16.mxu0 %v106
  %140 = vmatpush1.bf16.msra.mxu0 %v105
  %141 = vmatprep.subr.bf16.mxu0 %v104
  %142 = vmatpush1.bf16.msra.mxu0 %v103
  %143 = vmatprep.subr.bf16.mxu0 %v102
  %144 = vmatpush1.bf16.msra.mxu0 %v101
  %145 = vmatprep.subr.bf16.mxu0 %v100
  %146 = vmatpush1.bf16.msra.mxu0 %v99
  %147 = vmatprep.subr.bf16.mxu0 0
  %148 = vmatpush2.bf16.msra.mxu0 0
  %149 = vmatprep.subr.bf16.mxu0 0
  %150 = vmatpush2.bf16.msra.mxu0 0
  %151 = vmatprep.subr.bf16.mxu0 0
  %152 = vmatpush2.bf16.msra.mxu0 0
  %153 = vmatprep.subr.bf16.mxu0 0
  %154 = vmatpush2.bf16.msra.mxu0 0
  %155 = vmatprep.subr.bf16.mxu0 0
  %156 = vmatpush2.bf16.msra.mxu0 0
  %157 = vmatprep.subr.bf16.mxu0 0
  %158 = vmatpush2.bf16.msra.mxu0 0
  %159 = vmatprep.subr.bf16.mxu0 0
  %160 = vmatpush2.bf16.msra.mxu0 0
  %161 = vmatprep.subr.bf16.mxu0 0
  %162 = vmatpush2.bf16.msra.mxu0 0
  %163 = vmatprep.mubr.bf16.mxu0 0
  %164 = vmatmul.mubr.bf16.gmra.mxu0 %v49
  %v165 = vpop.f32.mrf.mxu0
  %v166 = vadd.f32 0.0, %v165
  %v167 = vpop.f32.mrf.mxu0
  %v168 = vadd.f32 0.0, %v167
  %v169 = vpop.f32.mrf.mxu0
  %v170 = vadd.f32 0.0, %v169
  %v171 = vpop.f32.mrf.mxu0
  %v172 = vadd.f32 0.0, %v171
  %173 = vdwg.mxu0
  %v174 = vadd.f32 %v23, %v166
  %v175 = vadd.f32 %v24, %v168
  %v176 = vadd.f32 %v25, %v170
  %v177 = vadd.f32 %v26, %v172
  %178 = vst [vmem:[#allocation2] sm:$0xff] %v174
  %179 = vst [vmem:[#allocation2 + $0x8] sm:$0xff] %v175
  %180 = vst [vmem:[#allocation2 + $0x10] sm:$0xff] %v176
  %181 = vst [vmem:[#allocation2 + $0x18] sm:$0xff] %v177
  // Predicated region
  $region18: #{_lambda_.23} parent=0 // pred_check
    %p182 = pneg %p15
  $region19: #{_lambda_.23} parent=0 // pred_check_branch
    %184 = sbr.rel (%p182) target = $region21
  $region20: #{_lambda_.23} parent=0 // pred_region
    %v185 = vld [vmem:[#allocation2] sm:$0xff]
    %v186 = vld [vmem:[#allocation2 + $0x8] sm:$0xff]
    %v187 = vld [vmem:[#allocation2 + $0x10] sm:$0xff]
    %v188 = vld [vmem:[#allocation2 + $0x18] sm:$0xff]
    %v189 = vld [vmem:[%s2] sm:$0x3]
    %v191 = vlaneseq
    %v192 = vshrl.u32 %v191, 7
    %v193 = vsub.s32 0, %v192
    %v194 = vrot.slane %v189, %v193
    %v195 = vlaneseq
    %v196 = vshrl.u32 %v195, 7
    %v197 = vsub.s32 1, %v196
    %v198 = vrot.slane %v189, %v197
    %v201 = vadd.f32 %v185, %v194
    %v202 = vadd.f32 %v186, %v198
    %v203 = vadd.f32 %v187, %v194
    %v204 = vadd.f32 %v188, %v198
    %v205 = vmul.f32 %v201, 0.5
    %v206 = vmul.f32 %v202, 0.5
    %v207 = vmul.f32 %v203, 0.5
    %v208 = vmul.f32 %v204, 0.5
    %v209 = vmul.f32 %v201, 0.70710677
    %v210 = vmul.f32 %v202, 0.70710677
    %v211 = vmul.f32 %v203, 0.70710677
    %v212 = vmul.f32 %v204, 0.70710677
    %v213 = verf.f32.pop %v209
    %v214 = verf.f32.pop %v210
    %v215 = verf.f32.pop %v211
    %v216 = verf.f32.pop %v212
    %v217 = vadd.f32 %v213, 1.0
    %v218 = vadd.f32 %v214, 1.0
    %v219 = vadd.f32 %v215, 1.0
    %v220 = vadd.f32 %v216, 1.0
    %v221 = vmul.f32 %v205, %v217
    %v222 = vmul.f32 %v206, %v218
    %v223 = vmul.f32 %v207, %v219
    %v224 = vmul.f32 %v208, %v220
    %v225 = vpack.c.bf16 %v223, %v221
    %v226 = vpack.c.bf16 %v224, %v222
    %v229 = vunpack.c.l.b16 %v225
    %v230 = vunpack.c.l.b16 %v226
    %v231 = vunpack.c.h.b16 %v225
    %v232 = vunpack.c.h.b16 %v226
    %v233 = vpack.c.b16 %v230, %v229
    %v234 = vpack.c.b16 %v232, %v231
    %237 = vst [vmem:[%s3] sm:$0xff] %v233
    %238 = vst [vmem:[%s3 + $0x8] sm:$0xff] %v234
  $region21: #{_lambda_.23} parent=0 // pred_fallthru
    _
  // Predicated region
  $region22: #{_lambda_.23} parent=0 // pred_check
    _
  $region23: #{_lambda_.23} parent=0 // pred_check_branch
    %240 = sbr.rel (0) target = $region25
  $region24: #{_lambda_.23} parent=0 // pred_region
    _
  $region25: #{_lambda_.23} parent=0 // pred_fallthru
    _
  // Predicated region
  $region26: #{_lambda_.23} parent=0 // pred_check
    _
  $region27: #{_lambda_.23} parent=0 // pred_check_branch
    %242 = sbr.rel (0) target = $region29
  $region28: #{_lambda_.23} parent=0 // pred_region
    _
  $region29: #{_lambda_.23} parent=0 // pred_fallthru
    _

// kernel: _lambda_.24
$region0: #{_lambda_.24}
  #allocation0 [shape = 'u32[]', space=smem, size = 0x4, offset = 0x4, fixed_abs, tag = 'smem constant byte address 0x4 - core index']
  #allocation1 [shape = 'u32[144,128]{1,0:T(1,128)}', space=vmem, size = 0x12000, scoped, tag = 'internal scratch']
  #allocation2 [shape = 'f32[16,128]{1,0:T(8,128)}', space=vmem, size = 0x2000, scoped, tag = 'scratch operand']
  %s0 = inlined_call_operand.vmem [shape: bf16[16,256], index: 0, kind: input, shape index: {}]
  %s1 = inlined_call_operand.vmem [shape: bf16[256,128], index: 1, kind: input, shape index: {}]
  %s2 = inlined_call_operand.vmem [shape: f32[1,128], index: 2, kind: input, shape index: {}]
  %s3 = inlined_call_operand.vmem [shape: f32[16,128], index: 3, kind: input, shape index: {}]
  %s4 = inlined_call_operand.vmem [shape: f32[16,128], index: 4, kind: output, shape index: {}]
  %s5 = sld [smem:[#allocation0]]
  $region34: #{_lambda_.24} parent=0
    _
  %s7 = ssub.s32 1, %s5
  %s8 = scalar_select 0, %s7, %s5
  // Predicated region
  $region2: #{_lambda_.24} parent=0 // pred_check
    _
  $region3: #{_lambda_.24} parent=0 // pred_check_branch
    %10 = sbr.rel (0) target = $region5
  $region4: #{_lambda_.24} parent=0 // pred_region
    _
  $region5: #{_lambda_.24} parent=0 // pred_fallthru
    _
  // Predicated region
  $region6: #{_lambda_.24} parent=0 // pred_check
    _
  $region7: #{_lambda_.24} parent=0 // pred_check_branch
    %12 = sbr.rel (0) target = $region9
  $region8: #{_lambda_.24} parent=0 // pred_region
    _
  $region9: #{_lambda_.24} parent=0 // pred_fallthru
    _
  // Predicated region
  $region10: #{_lambda_.24} parent=0 // pred_check
    _
  $region11: #{_lambda_.24} parent=0 // pred_check_branch
    %14 = sbr.rel (0) target = $region13
  $region12: #{_lambda_.24} parent=0 // pred_region
    _
  $region13: #{_lambda_.24} parent=0 // pred_fallthru
    _
  // Predicated region
  $region14: #{_lambda_.24} parent=0 // pred_check
    _
  $region15: #{_lambda_.24} parent=0 // pred_check_branch
    %16 = sbr.rel (0) target = $region17
  $region16: #{_lambda_.24} parent=0 // pred_region
    _
  $region17: #{_lambda_.24} parent=0 // pred_fallthru
    _
  %p18 = scmp.eq.s32.totalorder 0, 0
  // Predicated region
  $region18: #{_lambda_.24} parent=0 // pred_check
    %p19 = pneg %p18
  $region19: #{_lambda_.24} parent=0 // pred_check_branch
    %21 = sbr.rel (%p19) target = $region21
  $region20: #{_lambda_.24} parent=0 // pred_region
    %22 = vst [vmem:[#allocation2] sm:$0xff] 0.0
    %23 = vst [vmem:[#allocation2 + $0x8] sm:$0xff] 0.0
  $region21: #{_lambda_.24} parent=0 // pred_fallthru
    _
  %v24 = vld [vmem:[#allocation2] sm:$0xff]
  %v25 = vld [vmem:[#allocation2 + $0x8] sm:$0xff]
  %v26 = vld [vmem:[%s0] sm:$0xff]
  %v27 = vld [vmem:[%s0 + $0x8] sm:$0xff]
  %v28 = vld [vmem:[%s1] sm:$0xf]
  %v29 = vld [vmem:[%s1 + $0x4] sm:$0xf]
  %v30 = vld [vmem:[%s1 + $0x8] sm:$0xf]
  %v31 = vld [vmem:[%s1 + $0xc] sm:$0xf]
  %v32 = vld [vmem:[%s1 + $0x10] sm:$0xf]
  %v33 = vld [vmem:[%s1 + $0x14] sm:$0xf]
  %v34 = vld [vmem:[%s1 + $0x18] sm:$0xf]
  %v35 = vld [vmem:[%s1 + $0x1c] sm:$0xf]
  %v36 = vld [vmem:[%s1 + $0x20] sm:$0xf]
  %v37 = vld [vmem:[%s1 + $0x24] sm:$0xf]
  %v38 = vld [vmem:[%s1 + $0x28] sm:$0xf]
  %v39 = vld [vmem:[%s1 + $0x2c] sm:$0xf]
  %v40 = vld [vmem:[%s1 + $0x30] sm:$0xf]
  %v41 = vld [vmem:[%s1 + $0x34] sm:$0xf]
  %v42 = vld [vmem:[%s1 + $0x38] sm:$0xf]
  %v43 = vld [vmem:[%s1 + $0x3c] sm:$0xf]
  %v44 = vld [vmem:[%s1 + $0x40] sm:$0xf]
  %v45 = vld [vmem:[%s1 + $0x44] sm:$0xf]
  %v46 = vld [vmem:[%s1 + $0x48] sm:$0xf]
  %v47 = vld [vmem:[%s1 + $0x4c] sm:$0xf]
  %v48 = vld [vmem:[%s1 + $0x50] sm:$0xf]
  %v49 = vld [vmem:[%s1 + $0x54] sm:$0xf]
  %v50 = vld [vmem:[%s1 + $0x58] sm:$0xf]
  %v51 = vld [vmem:[%s1 + $0x5c] sm:$0xf]
  %v52 = vld [vmem:[%s1 + $0x60] sm:$0xf]
  %v53 = vld [vmem:[%s1 + $0x64] sm:$0xf]
  %v54 = vld [vmem:[%s1 + $0x68] sm:$0xf]
  %v55 = vld [vmem:[%s1 + $0x6c] sm:$0xf]
  %v56 = vld [vmem:[%s1 + $0x70] sm:$0xf]
  %v57 = vld [vmem:[%s1 + $0x74] sm:$0xf]
  %v58 = vld [vmem:[%s1 + $0x78] sm:$0xf]
  %v59 = vld [vmem:[%s1 + $0x7c] sm:$0xf]
  %v62 = vunpack.c.l.b16 %v26
  %v63 = vunpack.c.h.b16 %v26
  %v64 = vunpack.c.l.b16 %v27
  %v65 = vunpack.c.h.b16 %v27
  %v66 = vpack.c.b16 %v64, %v62
  %v67 = vpack.c.b16 %v65, %v63
  %v102 = vunpack.c.l.b16 %v28
  %v103 = vunpack.c.l.b16 %v29
  %v104 = vunpack.c.l.b16 %v30
  %v105 = vunpack.c.l.b16 %v31
  %v106 = vunpack.c.l.b16 %v32
  %v107 = vunpack.c.l.b16 %v33
  %v108 = vunpack.c.l.b16 %v34
  %v109 = vunpack.c.l.b16 %v35
  %v110 = vunpack.c.l.b16 %v36
  %v111 = vunpack.c.l.b16 %v37
  %v112 = vunpack.c.l.b16 %v38
  %v113 = vunpack.c.l.b16 %v39
  %v114 = vunpack.c.l.b16 %v40
  %v115 = vunpack.c.l.b16 %v41
  %v116 = vunpack.c.l.b16 %v42
  %v117 = vunpack.c.l.b16 %v43
  %v118 = vunpack.c.l.b16 %v44
  %v119 = vunpack.c.l.b16 %v45
  %v120 = vunpack.c.l.b16 %v46
  %v121 = vunpack.c.l.b16 %v47
  %v122 = vunpack.c.l.b16 %v48
  %v123 = vunpack.c.l.b16 %v49
  %v124 = vunpack.c.l.b16 %v50
  %v125 = vunpack.c.l.b16 %v51
  %v126 = vunpack.c.l.b16 %v52
  %v127 = vunpack.c.l.b16 %v53
  %v128 = vunpack.c.l.b16 %v54
  %v129 = vunpack.c.l.b16 %v55
  %v130 = vunpack.c.l.b16 %v56
  %v131 = vunpack.c.l.b16 %v57
  %v132 = vunpack.c.l.b16 %v58
  %v133 = vunpack.c.l.b16 %v59
  %v134 = vpack.c.b16 %v103, %v102
  %v135 = vpack.c.b16 %v105, %v104
  %v136 = vpack.c.b16 %v107, %v106
  %v137 = vpack.c.b16 %v109, %v108
  %v138 = vpack.c.b16 %v111, %v110
  %v139 = vpack.c.b16 %v113, %v112
  %v140 = vpack.c.b16 %v115, %v114
  %v141 = vpack.c.b16 %v117, %v116
  %v142 = vpack.c.b16 %v119, %v118
  %v143 = vpack.c.b16 %v121, %v120
  %v144 = vpack.c.b16 %v123, %v122
  %v145 = vpack.c.b16 %v125, %v124
  %v146 = vpack.c.b16 %v127, %v126
  %v147 = vpack.c.b16 %v129, %v128
  %v148 = vpack.c.b16 %v131, %v130
  %v149 = vpack.c.b16 %v133, %v132
  %166 = vmatprep.subr.bf16.mxu0 0
  %167 = vmatpush1.bf16.msra.mxu0 %v141
  %168 = vmatprep.subr.bf16.mxu0 0
  %169 = vmatpush1.bf16.msra.mxu0 %v140
  %170 = vmatprep.subr.bf16.mxu0 0
  %171 = vmatpush1.bf16.msra.mxu0 %v139
  %172 = vmatprep.subr.bf16.mxu0 0
  %173 = vmatpush1.bf16.msra.mxu0 %v138
  %174 = vmatprep.subr.bf16.mxu0 0
  %175 = vmatpush1.bf16.msra.mxu0 %v137
  %176 = vmatprep.subr.bf16.mxu0 0
  %177 = vmatpush1.bf16.msra.mxu0 %v136
  %178 = vmatprep.subr.bf16.mxu0 0
  %179 = vmatpush1.bf16.msra.mxu0 %v135
  %180 = vmatprep.subr.bf16.mxu0 0
  %181 = vmatpush1.bf16.msra.mxu0 %v134
  %182 = vmatprep.subr.bf16.mxu0 0
  %183 = vmatpush2.bf16.msra.mxu0 %v149
  %184 = vmatprep.subr.bf16.mxu0 0
  %185 = vmatpush2.bf16.msra.mxu0 %v148
  %186 = vmatprep.subr.bf16.mxu0 0
  %187 = vmatpush2.bf16.msra.mxu0 %v147
  %188 = vmatprep.subr.bf16.mxu0 0
  %189 = vmatpush2.bf16.msra.mxu0 %v146
  %190 = vmatprep.subr.bf16.mxu0 0
  %191 = vmatpush2.bf16.msra.mxu0 %v145
  %192 = vmatprep.subr.bf16.mxu0 0
  %193 = vmatpush2.bf16.msra.mxu0 %v144
  %194 = vmatprep.subr.bf16.mxu0 0
  %195 = vmatpush2.bf16.msra.mxu0 %v143
  %196 = vmatprep.subr.bf16.mxu0 0
  %197 = vmatpush2.bf16.msra.mxu0 %v142
  %198 = vmatprep.mubr.bf16.mxu0 %v67
  %199 = vmatmul.mubr.bf16.gmra.mxu0 %v66
  %v200 = vpop.f32.mrf.mxu0
  %v201 = vadd.f32 0.0, %v200
  %v202 = vpop.f32.mrf.mxu0
  %v203 = vpop.f32.mrf.mxu0
  %v204 = vadd.f32 0.0, %v203
  %v205 = vpop.f32.mrf.mxu0
  %206 = vdwg.mxu0
  %v207 = vadd.f32 %v24, %v201
  %v208 = vadd.f32 %v25, %v204
  %209 = vst [vmem:[#allocation2] sm:$0xff] %v207
  %210 = vst [vmem:[#allocation2 + $0x8] sm:$0xff] %v208
  // Predicated region
  $region22: #{_lambda_.24} parent=0 // pred_check
    %p211 = pneg %p18
  $region23: #{_lambda_.24} parent=0 // pred_check_branch
    %213 = sbr.rel (%p211) target = $region25
  $region24: #{_lambda_.24} parent=0 // pred_region
    %v214 = vld [vmem:[#allocation2] sm:$0xff]
    %v215 = vld [vmem:[#allocation2 + $0x8] sm:$0xff]
    %v216 = vld [vmem:[%s2] sm:$0x1]
    %v218 = vlaneseq
    %v219 = vshrl.u32 %v218, 7
    %v220 = vsub.s32 0, %v219
    %v221 = vrot.slane %v216, %v220
    %v223 = vadd.f32 %v214, %v221
    %v224 = vadd.f32 %v215, %v221
    %v225 = vld [vmem:[%s3] sm:$0xff]
    %v226 = vld [vmem:[%s3 + $0x8] sm:$0xff]
    %v227 = vadd.f32 %v223, %v225
    %v228 = vadd.f32 %v224, %v226
    %229 = vst [vmem:[%s4] sm:$0xff] %v227
    %230 = vst [vmem:[%s4 + $0x8] sm:$0xff] %v228
  $region25: #{_lambda_.24} parent=0 // pred_fallthru
    _
  // Predicated region
  $region26: #{_lambda_.24} parent=0 // pred_check
    _
  $region27: #{_lambda_.24} parent=0 // pred_check_branch
    %232 = sbr.rel (0) target = $region29
  $region28: #{_lambda_.24} parent=0 // pred_region
    _
  $region29: #{_lambda_.24} parent=0 // pred_fallthru
    _
  // Predicated region
  $region30: #{_lambda_.24} parent=0 // pred_check
    _
  $region31: #{_lambda_.24} parent=0 // pred_check_branch
    %234 = sbr.rel (0) target = $region33
  $region32: #{_lambda_.24} parent=0 // pred_region
    _
  $region33: #{_lambda_.24} parent=0 // pred_fallthru
    _

// kernel: _lambda_.32
$region0: #{_lambda_.32}
  #allocation0 [shape = 'u32[]', space=smem, size = 0x4, offset = 0x4, fixed_abs, tag = 'smem constant byte address 0x4 - core index']
  #allocation1 [shape = 'u32[144,128]{1,0:T(1,128)}', space=vmem, size = 0x12000, scoped, tag = 'internal scratch']
  %s0 = inlined_call_operand.vmem [shape: f32[16,64], index: 0, kind: input, shape index: {}]
  %s1 = inlined_call_operand.vmem [shape: f32[1,64], index: 1, kind: input, shape index: {}]
  %s2 = inlined_call_operand.vmem [shape: f32[1,64], index: 2, kind: input, shape index: {}]
  %s3 = inlined_call_operand.vmem [shape: f32[16,64], index: 3, kind: output, shape index: {}]
  %s4 = sld [smem:[#allocation0]]
  $region22: #{_lambda_.32} parent=0
    _
  %s6 = ssub.s32 1, %s4
  %s7 = scalar_select 0, %s6, %s4
  // Predicated region
  $region2: #{_lambda_.32} parent=0 // pred_check
    _
  $region3: #{_lambda_.32} parent=0 // pred_check_branch
    %9 = sbr.rel (0) target = $region5
  $region4: #{_lambda_.32} parent=0 // pred_region
    _
  $region5: #{_lambda_.32} parent=0 // pred_fallthru
    _
  // Predicated region
  $region6: #{_lambda_.32} parent=0 // pred_check
    _
  $region7: #{_lambda_.32} parent=0 // pred_check_branch
    %11 = sbr.rel (0) target = $region9
  $region8: #{_lambda_.32} parent=0 // pred_region
    _
  $region9: #{_lambda_.32} parent=0 // pred_fallthru
    _
  // Predicated region
  $region10: #{_lambda_.32} parent=0 // pred_check
    _
  $region11: #{_lambda_.32} parent=0 // pred_check_branch
    %13 = sbr.rel (0) target = $region13
  $region12: #{_lambda_.32} parent=0 // pred_region
    _
  $region13: #{_lambda_.32} parent=0 // pred_fallthru
    _
  %v14 = vld [vmem:[%s0] sm:$0xff]
  %v15 = vld [vmem:[%s0 + $0x8] sm:$0xff]
  %vm16 = vcmask 523264
  %v17 = vsel %vm16, %v14, 0.0
  %18 = vadd.xlane.f32.xlu0 %v17
  %v19 = vpop.xlane.xlu0 %18
  %v20 = vsel %vm16, %v15, 0.0
  %21 = vadd.xlane.f32.xlu0 %v20
  %v22 = vpop.xlane.xlu0 %21
  %v23 = vrcp.pop 64.0
  %v24 = vmul.f32 %v19, %v23
  %v25 = vmul.f32 %v22, %v23
  %v26 = vsub.f32 %v14, %v24
  %v27 = vsub.f32 %v15, %v25
  %v28 = vmul.f32 %v26, %v26
  %v29 = vmul.f32 %v27, %v27
  %v30 = vsel %vm16, %v28, 0.0
  %31 = vadd.xlane.f32.xlu0 %v30
  %v32 = vpop.xlane.xlu0 %31
  %v33 = vsel %vm16, %v29, 0.0
  %34 = vadd.xlane.f32.xlu0 %v33
  %v35 = vpop.xlane.xlu0 %34
  %v36 = vmul.f32 %v32, %v23
  %v37 = vmul.f32 %v35, %v23
  %v38 = vadd.f32 %v36, 1e-06
  %v39 = vadd.f32 %v37, 1e-06
  %v40 = vrsqrt.pop %v38
  %v41 = vrsqrt.pop %v39
  %v42 = vmul.f32 %v26, %v40
  %v43 = vmul.f32 %v27, %v41
  %v44 = vld [vmem:[%s1] sm:$0x1]
  %v46 = vlaneseq
  %v47 = vshrl.u32 %v46, 7
  %v48 = vsub.s32 0, %v47
  %v49 = vrot.slane %v44, %v48
  %v51 = vmul.f32 %v42, %v49
  %v52 = vmul.f32 %v43, %v49
  %v53 = vld [vmem:[%s2] sm:$0x1]
  %v55 = vlaneseq
  %v56 = vshrl.u32 %v55, 7
  %v57 = vsub.s32 0, %v56
  %v58 = vrot.slane %v53, %v57
  %v60 = vadd.f32 %v51, %v58
  %v61 = vadd.f32 %v52, %v58
  %62 = vst.msk [vmem:[%s3] sm:$0xff] %vm16, %v60
  %63 = vst.msk [vmem:[%s3 + $0x8] sm:$0xff] %vm16, %v61
  // Predicated region
  $region14: #{_lambda_.32} parent=0 // pred_check
    _
  $region15: #{_lambda_.32} parent=0 // pred_check_branch
    %65 = sbr.rel (0) target = $region17
  $region16: #{_lambda_.32} parent=0 // pred_region
    _
  $region17: #{_lambda_.32} parent=0 // pred_fallthru
    _
  // Predicated region
  $region18: #{_lambda_.32} parent=0 // pred_check
    _
  $region19: #{_lambda_.32} parent=0 // pred_check_branch
    %67 = sbr.rel (0) target = $region21
  $region20: #{_lambda_.32} parent=0 // pred_region
    _
  $region21: #{_lambda_.32} parent=0 // pred_fallthru
    _

// kernel: _lambda_.33
$region0: #{_lambda_.33}
  #allocation0 [shape = 'u32[]', space=smem, size = 0x4, offset = 0x4, fixed_abs, tag = 'smem constant byte address 0x4 - core index']
  #allocation1 [shape = 'u32[144,128]{1,0:T(1,128)}', space=vmem, size = 0x12000, scoped, tag = 'internal scratch']
  #allocation2 [shape = 'f32[8,128]{1,0:T(8,128)}', space=vmem, size = 0x1000, scoped, tag = 'scratch operand']
  %s0 = inlined_call_operand.vmem [shape: bf16[8,128], index: 0, kind: input, shape index: {}]
  %s1 = inlined_call_operand.vmem [shape: bf16[128,128], index: 1, kind: input, shape index: {}]
  %s2 = inlined_call_operand.vmem [shape: f32[1,128], index: 2, kind: input, shape index: {}]
  %s3 = inlined_call_operand.vmem [shape: f32[8,128], index: 3, kind: output, shape index: {}]
  %s4 = sld [smem:[#allocation0]]
  $region30: #{_lambda_.33} parent=0
    _
  %s6 = ssub.s32 1, %s4
  %s7 = scalar_select 0, %s6, %s4
  // Predicated region
  $region2: #{_lambda_.33} parent=0 // pred_check
    _
  $region3: #{_lambda_.33} parent=0 // pred_check_branch
    %9 = sbr.rel (0) target = $region5
  $region4: #{_lambda_.33} parent=0 // pred_region
    _
  $region5: #{_lambda_.33} parent=0 // pred_fallthru
    _
  // Predicated region
  $region6: #{_lambda_.33} parent=0 // pred_check
    _
  $region7: #{_lambda_.33} parent=0 // pred_check_branch
    %11 = sbr.rel (0) target = $region9
  $region8: #{_lambda_.33} parent=0 // pred_region
    _
  $region9: #{_lambda_.33} parent=0 // pred_fallthru
    _
  // Predicated region
  $region10: #{_lambda_.33} parent=0 // pred_check
    _
  $region11: #{_lambda_.33} parent=0 // pred_check_branch
    %13 = sbr.rel (0) target = $region13
  $region12: #{_lambda_.33} parent=0 // pred_region
    _
  $region13: #{_lambda_.33} parent=0 // pred_fallthru
    _
  %p15 = scmp.eq.s32.totalorder 0, 0
  // Predicated region
  $region14: #{_lambda_.33} parent=0 // pred_check
    %p16 = pneg %p15
  $region15: #{_lambda_.33} parent=0 // pred_check_branch
    %18 = sbr.rel (%p16) target = $region17
  $region16: #{_lambda_.33} parent=0 // pred_region
    %19 = vst [vmem:[#allocation2] sm:$0xff] 0.0
  $region17: #{_lambda_.33} parent=0 // pred_fallthru
    _
  %v20 = vld [vmem:[#allocation2] sm:$0xff]
  %v21 = vld [vmem:[%s0] sm:$0xf]
  %v22 = vld [vmem:[%s1] sm:$0xf]
  %v23 = vld [vmem:[%s1 + $0x4] sm:$0xf]
  %v24 = vld [vmem:[%s1 + $0x8] sm:$0xf]
  %v25 = vld [vmem:[%s1 + $0xc] sm:$0xf]
  %v26 = vld [vmem:[%s1 + $0x10] sm:$0xf]
  %v27 = vld [vmem:[%s1 + $0x14] sm:$0xf]
  %v28 = vld [vmem:[%s1 + $0x18] sm:$0xf]
  %v29 = vld [vmem:[%s1 + $0x1c] sm:$0xf]
  %v30 = vld [vmem:[%s1 + $0x20] sm:$0xf]
  %v31 = vld [vmem:[%s1 + $0x24] sm:$0xf]
  %v32 = vld [vmem:[%s1 + $0x28] sm:$0xf]
  %v33 = vld [vmem:[%s1 + $0x2c] sm:$0xf]
  %v34 = vld [vmem:[%s1 + $0x30] sm:$0xf]
  %v35 = vld [vmem:[%s1 + $0x34] sm:$0xf]
  %v36 = vld [vmem:[%s1 + $0x38] sm:$0xf]
  %v37 = vld [vmem:[%s1 + $0x3c] sm:$0xf]
  %v54 = vunpack.c.l.b16 %v22
  %v55 = vunpack.c.l.b16 %v23
  %v56 = vunpack.c.l.b16 %v24
  %v57 = vunpack.c.l.b16 %v25
  %v58 = vunpack.c.l.b16 %v26
  %v59 = vunpack.c.l.b16 %v27
  %v60 = vunpack.c.l.b16 %v28
  %v61 = vunpack.c.l.b16 %v29
  %v62 = vunpack.c.l.b16 %v30
  %v63 = vunpack.c.l.b16 %v31
  %v64 = vunpack.c.l.b16 %v32
  %v65 = vunpack.c.l.b16 %v33
  %v66 = vunpack.c.l.b16 %v34
  %v67 = vunpack.c.l.b16 %v35
  %v68 = vunpack.c.l.b16 %v36
  %v69 = vunpack.c.l.b16 %v37
  %v70 = vpack.c.b16 %v55, %v54
  %v71 = vpack.c.b16 %v57, %v56
  %v72 = vpack.c.b16 %v59, %v58
  %v73 = vpack.c.b16 %v61, %v60
  %v74 = vpack.c.b16 %v63, %v62
  %v75 = vpack.c.b16 %v65, %v64
  %v76 = vpack.c.b16 %v67, %v66
  %v77 = vpack.c.b16 %v69, %v68
  %86 = vmatprep.subr.bf16.mxu0 0
  %87 = vmatpush1.bf16.msra.mxu0 %v77
  %88 = vmatprep.subr.bf16.mxu0 0
  %89 = vmatpush1.bf16.msra.mxu0 %v76
  %90 = vmatprep.subr.bf16.mxu0 0
  %91 = vmatpush1.bf16.msra.mxu0 %v75
  %92 = vmatprep.subr.bf16.mxu0 0
  %93 = vmatpush1.bf16.msra.mxu0 %v74
  %94 = vmatprep.subr.bf16.mxu0 0
  %95 = vmatpush1.bf16.msra.mxu0 %v73
  %96 = vmatprep.subr.bf16.mxu0 0
  %97 = vmatpush1.bf16.msra.mxu0 %v72
  %98 = vmatprep.subr.bf16.mxu0 0
  %99 = vmatpush1.bf16.msra.mxu0 %v71
  %100 = vmatprep.subr.bf16.mxu0 0
  %101 = vmatpush1.bf16.msra.mxu0 %v70
  %102 = vmatprep.subr.bf16.mxu0 0
  %103 = vmatpush2.bf16.msra.mxu0 0
  %104 = vmatprep.subr.bf16.mxu0 0
  %105 = vmatpush2.bf16.msra.mxu0 0
  %106 = vmatprep.subr.bf16.mxu0 0
  %107 = vmatpush2.bf16.msra.mxu0 0
  %108 = vmatprep.subr.bf16.mxu0 0
  %109 = vmatpush2.bf16.msra.mxu0 0
  %110 = vmatprep.subr.bf16.mxu0 0
  %111 = vmatpush2.bf16.msra.mxu0 0
  %112 = vmatprep.subr.bf16.mxu0 0
  %113 = vmatpush2.bf16.msra.mxu0 0
  %114 = vmatprep.subr.bf16.mxu0 0
  %115 = vmatpush2.bf16.msra.mxu0 0
  %116 = vmatprep.subr.bf16.mxu0 0
  %117 = vmatpush2.bf16.msra.mxu0 0
  %118 = vmatprep.mubr.bf16.mxu0 0
  %119 = vmatmul.mubr.bf16.gmra.mxu0 %v21
  %v120 = vpop.f32.mrf.mxu0
  %v121 = vadd.f32 0.0, %v120
  %v122 = vpop.f32.mrf.mxu0
  %v123 = vpop.f32.mrf.mxu0
  %v124 = vpop.f32.mrf.mxu0
  %125 = vdwg.mxu0
  %v126 = vadd.f32 %v20, %v121
  %127 = vst [vmem:[#allocation2] sm:$0xff] %v126
  // Predicated region
  $region18: #{_lambda_.33} parent=0 // pred_check
    %p128 = pneg %p15
  $region19: #{_lambda_.33} parent=0 // pred_check_branch
    %130 = sbr.rel (%p128) target = $region21
  $region20: #{_lambda_.33} parent=0 // pred_region
    %v131 = vld [vmem:[#allocation2] sm:$0xff]
    %v132 = vld [vmem:[%s2] sm:$0x1]
    %v134 = vlaneseq
    %v135 = vshrl.u32 %v134, 7
    %v136 = vsub.s32 0, %v135
    %v137 = vrot.slane %v132, %v136
    %v139 = vadd.f32 %v131, %v137
    %140 = vst [vmem:[%s3] sm:$0xff] %v139
  $region21: #{_lambda_.33} parent=0 // pred_fallthru
    _
  // Predicated region
  $region22: #{_lambda_.33} parent=0 // pred_check
    _
  $region23: #{_lambda_.33} parent=0 // pred_check_branch
    %142 = sbr.rel (0) target = $region25
  $region24: #{_lambda_.33} parent=0 // pred_region
    _
  $region25: #{_lambda_.33} parent=0 // pred_fallthru
    _
  // Predicated region
  $region26: #{_lambda_.33} parent=0 // pred_check
    _
  $region27: #{_lambda_.33} parent=0 // pred_check_branch
    %144 = sbr.rel (0) target = $region29
  $region28: #{_lambda_.33} parent=0 // pred_region
    _
  $region29: #{_lambda_.33} parent=0 // pred_fallthru
    _

</llo_original>
